<compile_context>
chip_gen: v7x
topology: tpu7x:2x2x1
jax: 0.10.0
libtpu: 0.0.40
codegen_flags: <defaults>
</compile_context>

<pallas_src>
import jax
import jax.numpy as jnp
from jax.experimental import pallas as pl
from jax.experimental.pallas import tpu as pltpu

NSWEEPS = 10                      # points per voxel == nsweeps
C_IN = 4                          # num_input_features
HIDDEN = 16
H9 = HIDDEN * (NSWEEPS - 1)       # 144
KPAD = 8                          # per-sweep diff block padded to 8 sublanes
K1 = KPAD * (NSWEEPS - 1)         # 72 = layer1 contraction dim
BIAS_ROW = C_IN                   # row of the diff scratch held at 1.0 (b1 fold)
OUT_DIM = HIDDEN + C_IN           # cat([temp_features(16), points_mean(4)])


def sm_vfe_kernel(f_ref, nv_ref, w1_ref, w2_ref, w3_ref, b2_ref, b3_ref,
                  o_ref, dall_ref):
    tv = f_ref.shape[-1]
    p = f_ref.shape[1]

    f = f_ref[...].astype(jnp.float32)            # [C, P, TV] (voxels on lanes)
    t = f[C_IN - 1]                               # time channel, [P, TV]

    # "not padding" mask: any channel nonzero
    nz = f[0] != 0.0
    for c in range(1, C_IN):
        nz = jnp.logical_or(nz, f[c] != 0.0)

    # Append a constant ones "channel" so per-sweep counts come out of the same
    # sublane reduction as the masked channel sums (one reduce per sweep).
    f5 = jnp.concatenate([f, jnp.ones((1, p, tv), jnp.float32)], axis=0)  # [C+1,P,TV]

    # Masked per-sweep means.  Each (split0 - split_i) is written immediately
    # into an 8-row-aligned block of the [72, TV] VMEM scratch; the 4 padding
    # rows of every block are rewritten too (zeros, except the ones-row used
    # for the layer1 bias fold), so no cross-step state and no pl.when init.
    split0 = None
    for s in range(NSWEEPS):
        if s == 0:
            m = jnp.logical_and(t == 0.0, nz)
        elif s == NSWEEPS - 1:
            m = t > (0.05 * s - 0.005)
        else:
            m = jnp.logical_and(t >= (0.05 * s - 0.005),
                                t < (0.05 * s + 0.005))
        mf = m.astype(jnp.float32)                                  # [P, TV]
        red = jnp.sum(f5 * mf[None, :, :], axis=1)                  # [C+1, TV]
        cnt = red[C_IN:C_IN + 1, :]                                 # [1, TV]
        inv = pl.reciprocal(jnp.maximum(cnt, 1.0), approx=True)     # EUP, clamp 0->1
        mean = red[0:C_IN, :] * inv                                 # [C, TV]
        if s == 0:
            split0 = mean
        else:
            if s == 1:
                pad_rows = jnp.concatenate(
                    [jnp.ones((1, tv), jnp.float32),                # bias ones-row
                     jnp.zeros((KPAD - C_IN - 1, tv), jnp.float32)], axis=0)
            else:
                pad_rows = jnp.zeros((KPAD - C_IN, tv), jnp.float32)
            blk = jnp.concatenate([split0 - mean, pad_rows], axis=0)   # [8, TV]
            dall_ref[KPAD * (s - 1):KPAD * s, :] = blk

    # Batched point-motion encoding: 3 bf16 MXU matmuls (f32 accumulation)
    # instead of 27 skinny f32 ones.  layer1 bias is folded into w1 via the
    # ones-row of dall, so no explicit b1 add.
    dall = dall_ref[...].astype(jnp.bfloat16)                           # [72, TV]
    mot = jnp.maximum(
        jnp.dot(w1_ref[...], dall, preferred_element_type=jnp.float32), 0.0)  # [144, TV]
    z2 = jnp.dot(w2_ref[...], mot.astype(jnp.bfloat16),
                 preferred_element_type=jnp.float32) + b2_ref[...]            # [144, TV]
    gate = 0.5 * jnp.tanh(0.5 * z2) + 0.5                # exact sigmoid, EUP tanh
    gm = gate * mot                                                           # [144, TV]
    temp = jnp.maximum(
        jnp.dot(w3_ref[...], gm.astype(jnp.bfloat16),
                preferred_element_type=jnp.float32) + b3_ref[...], 0.0)       # [16, TV]

    # raw points mean over all points, divided by num_voxels (f32 path)
    nv = nv_ref[...].astype(jnp.float32)                             # [1, TV]
    pmean = jnp.sum(f, axis=1) * pl.reciprocal(nv, approx=True)      # [C, TV]

    # lane-dense stores; no lane concat needed
    o_ref[0:HIDDEN, :] = temp.astype(o_ref.dtype)
    o_ref[HIDDEN:OUT_DIM, :] = pmean.astype(o_ref.dtype)


def _pack_params(params):
    """Block-diagonal weight packing (done once, outside the kernel).

    Returns bf16 matmul operands (MXU-native) and f32 biases for layers 2/3.
    layer1's bias is folded into column BIAS_ROW of the packed weight; the
    kernel keeps row BIAS_ROW of the diff operand at 1.0.
    """
    w1, b1, w2, b2, w3, b3 = params
    w1t_pad = jnp.concatenate(
        [w1.T.astype(jnp.float32),
         jnp.zeros((HIDDEN, KPAD - C_IN), jnp.float32)], axis=1)      # [16, 8]
    eye = jnp.eye(NSWEEPS - 1, dtype=jnp.float32)
    w1b = jnp.kron(eye, w1t_pad)                                      # [144, 72]
    w1b = w1b.at[:, BIAS_ROW].set(
        jnp.tile(b1.reshape(-1).astype(jnp.float32), NSWEEPS - 1))    # b1 fold
    w2b = jnp.kron(eye, w2.T.astype(jnp.float32))                     # [144, 144]
    w3t = w3.T.astype(jnp.float32)                                    # [16, 144]

    b2t = jnp.tile(b2.reshape(-1).astype(jnp.float32), NSWEEPS - 1).reshape(H9, 1)
    b3t = b3.reshape(HIDDEN, 1).astype(jnp.float32)
    return (w1b.astype(jnp.bfloat16), w2b.astype(jnp.bfloat16),
            w3t.astype(jnp.bfloat16), b2t, b3t)


def sm_vfe_forward(features, num_voxels, params, tv=2048):
    """features: [V, P, C], num_voxels: [V] -> [V, OUT_DIM].

    tv: voxel tile (lane) size, multiple of 128.  Default 2048 fits every
    generation's scoped-VMEM default in f32; on v6e/v7x it can be swept to
    4096 with CompilerParams(vmem_limit_bytes=...) — keep 2048 on v5e.
    """
    V, P, C = features.shape
    assert P == NSWEEPS and C == C_IN
    assert tv % 128 == 0, "voxel tile must be lane-aligned (multiple of 128)"

    # Keep >= ~4 grid steps when possible so v7x's 2 TensorCores each get >= 2
    # steps and double-buffering stays effective.
    while tv > 128 and pl.cdiv(V, tv) < 4:
        tv = max(128, (tv // 2 // 128) * 128)

    w1b, w2b, w3t, b2t, b3t = _pack_params(params)

    # Voxels-on-lanes layout.  bf16 features are accepted as-is (upcast happens
    # in-kernel).  No jnp.pad: Pallas handles the ragged last tile (OOB lanes
    # are lane-local garbage and their output stores are masked).
    # TODO(synk): have the producer emit features as [C, P, V] directly — this
    # transpose is the only remaining extra HBM pass in the wrapper.
    f_t = jnp.transpose(features, (2, 1, 0))                          # [C, P, V]
    nv = num_voxels.astype(jnp.float32).reshape(1, V)

    out_t = pl.pallas_call(
        sm_vfe_kernel,
        out_shape=jax.ShapeDtypeStruct((OUT_DIM, V), jnp.float32),
        grid_spec=pltpu.PrefetchScalarGridSpec(
            num_scalar_prefetch=0,
            grid=(pl.cdiv(V, tv),),
            in_specs=[
                pl.BlockSpec((C_IN, NSWEEPS, tv), lambda i: (0, 0, i)),  # features
                pl.BlockSpec((1, tv), lambda i: (0, i)),                 # num_voxels
                pl.BlockSpec((H9, K1), lambda i: (0, 0)),                # w1 (block-diag, b1 folded)
                pl.BlockSpec((H9, H9), lambda i: (0, 0)),                # w2 (block-diag)
                pl.BlockSpec((HIDDEN, H9), lambda i: (0, 0)),            # w3^T
                pl.BlockSpec((H9, 1), lambda i: (0, 0)),                 # b2 (tiled)
                pl.BlockSpec((HIDDEN, 1), lambda i: (0, 0)),             # b3
            ],
            out_specs=pl.BlockSpec((OUT_DIM, tv), lambda i: (0, i)),
            scratch_shapes=[pltpu.VMEM((K1, tv), jnp.float32)],          # diff staging
        ),
        compiler_params=pltpu.CompilerParams(
            # single grid axis, parallel -> shards across v7x's 2 TensorCores
            dimension_semantics=("parallel",),
        ),
    )(f_t, nv, w1b, w2b, w3t, b2t, b3t)

    return jnp.transpose(out_t)                                       # [V, OUT_DIM]


def sm_vfe_reference(features, num_voxels, params):
    """Pure-JAX f32 (HIGHEST precision) mirror of the PyTorch forward."""
    w1, b1, w2, b2, w3, b3 = params
    hp = jax.lax.Precision.HIGHEST
    f = features.astype(jnp.float32)
    t = f[:, :, -1]

    def temp_voxelize(mask):
        mf = mask.astype(jnp.float32)
        cnt = jnp.sum(mf, axis=1, keepdims=True)
        cnt = jnp.where(cnt == 0.0, 1.0, cnt)
        return jnp.sum(f * mf[:, :, None], axis=1) / cnt

    split = []
    pad = jnp.all(f == 0.0, axis=-1)
    split.append(temp_voxelize((t == 0.0) & (~pad)))
    for i in range(1, NSWEEPS):
        prev = 0.05 * i - 0.005
        if i == NSWEEPS - 1:
            m = prev < t
        else:
            m = (prev <= t) & (t < 0.05 * i + 0.005)
        split.append(temp_voxelize(m))

    cur = split[0]
    mots = []
    for i in range(1, NSWEEPS):
        mv = jax.nn.relu(jnp.dot(cur - split[i], w1, precision=hp) + b1)
        mots.append(jax.nn.sigmoid(jnp.dot(mv, w2, precision=hp) + b2) * mv)
    temp = jax.nn.relu(jnp.dot(jnp.concatenate(mots, axis=1), w3, precision=hp) + b3)
    pm = jnp.sum(f, axis=1) / num_voxels.astype(jnp.float32)[:, None]
    return jnp.concatenate([temp, pm], axis=1)


def init_params(key):
    ks = jax.random.split(key, 6)
    w1 = 0.2 * jax.random.normal(ks[0], (C_IN, HIDDEN), jnp.float32)
    b1 = 0.1 * jax.random.normal(ks[1], (1, HIDDEN), jnp.float32)
    w2 = 0.2 * jax.random.normal(ks[2], (HIDDEN, HIDDEN), jnp.float32)
    b2 = 0.1 * jax.random.normal(ks[3], (1, HIDDEN), jnp.float32)
    w3 = 0.2 * jax.random.normal(ks[4], (H9, HIDDEN), jnp.float32)
    b3 = 0.1 * jax.random.normal(ks[5], (1, HIDDEN), jnp.float32)
    return (w1, b1, w2, b2, w3, b3)


if __name__ == "__main__":
    key = jax.random.PRNGKey(0)
    k_param, k_feat, k_nv = jax.random.split(key, 3)

    V, P, C = 1000, NSWEEPS, C_IN
    params = init_params(k_param)

    feats = jax.random.normal(k_feat, (V, P, C), jnp.float32)
    # deterministic per-sweep timestamps in the last channel: 0.0, 0.05, ..., 0.45
    times = jnp.arange(P, dtype=jnp.float32) * 0.05
    feats = feats.at[:, :, C - 1].set(jnp.broadcast_to(times, (V, P)))
    # number of valid points per voxel in [1, P]; zero out padded points
    num_voxels = jax.random.randint(k_nv, (V,), 1, P + 1).astype(jnp.int32)
    valid = (jnp.arange(P)[None, :] < num_voxels[:, None]).astype(jnp.float32)
    feats = feats * valid[:, :, None]

    # Default tv=2048 auto-shrinks to 256 here (keeps >= 4 grid steps), which
    # also exercises the ragged last tile (1000 = 3*256 + 232).
    out = jax.block_until_ready(sm_vfe_forward(feats, num_voxels, params))
    ref = sm_vfe_reference(feats, num_voxels, params)

    assert out.shape == (V, OUT_DIM)
    assert bool(jnp.all(jnp.isfinite(out)))
    # temp_features path uses bf16 MXU operands + approx reciprocals -> loose
    # tolerance vs the f32 HIGHEST-precision reference.
    assert jnp.allclose(out[:, :HIDDEN], ref[:, :HIDDEN], atol=1e-1, rtol=1e-1), \
        "temp_features mismatch vs reference"
    # points_mean path stays f32 (approx reciprocal only) -> tight tolerance.
    assert jnp.allclose(out[:, HIDDEN:], ref[:, HIDDEN:], atol=5e-3, rtol=5e-3), \
        "points_mean mismatch vs reference"

    print("KERNEL_OK")
</pallas_src>

<mosaic_0001>
module attributes {stable_mosaic.version = 11 : i64} {
  func.func @sm_vfe_kernel(%arg0: i32, %arg1: memref<4x10x256xf32, #tpu.memory_space<vmem>>, %arg2: memref<1x256xf32, #tpu.memory_space<vmem>>, %arg3: memref<144x72xbf16, #tpu.memory_space<vmem>>, %arg4: memref<144x144xbf16, #tpu.memory_space<vmem>>, %arg5: memref<16x144xbf16, #tpu.memory_space<vmem>>, %arg6: memref<144x1xf32, #tpu.memory_space<vmem>>, %arg7: memref<16x1xf32, #tpu.memory_space<vmem>>, %arg8: memref<20x256xf32, #tpu.memory_space<vmem>>, %arg9: memref<72x256xf32, #tpu.memory_space<vmem>>) attributes {dimension_semantics = [#tpu.dimension_semantics<parallel>], iteration_bounds = array<i64: 4>, scalar_prefetch = 0 : i64, scratch_operands = 1 : i64, tpu.core_type = #tpu.core_type<tc>, window_params = [{transform_indices = @transform_0, window_bounds = array<i64: 4, 10, 256>}, {transform_indices = @transform_1, window_bounds = array<i64: 1, 256>}, {pipeline_mode = #tpu.pipeline_mode<synchronous>, transform_indices = @transform_2, window_bounds = array<i64: 144, 72>}, {pipeline_mode = #tpu.pipeline_mode<synchronous>, transform_indices = @transform_3, window_bounds = array<i64: 144, 144>}, {pipeline_mode = #tpu.pipeline_mode<synchronous>, transform_indices = @transform_4, window_bounds = array<i64: 16, 144>}, {pipeline_mode = #tpu.pipeline_mode<synchronous>, transform_indices = @transform_5, window_bounds = array<i64: 144, 1>}, {pipeline_mode = #tpu.pipeline_mode<synchronous>, transform_indices = @transform_6, window_bounds = array<i64: 16, 1>}, {transform_indices = @transform_7, window_bounds = array<i64: 20, 256>}]} {
    %c0 = arith.constant 0 : index
    %c0_0 = arith.constant 0 : index
    %c0_1 = arith.constant 0 : index
    %0 = vector.load %arg1[%c0, %c0_0, %c0_1] : memref<4x10x256xf32, #tpu.memory_space<vmem>>, vector<4x10x256xf32>
    %1 = vector.extract_strided_slice %0 {offsets = [3, 0, 0], sizes = [1, 10, 256], strides = [1, 1, 1]} : vector<4x10x256xf32> to vector<1x10x256xf32>
    %2 = vector.shape_cast %1 : vector<1x10x256xf32> to vector<10x256xf32>
    %3 = vector.extract_strided_slice %0 {offsets = [0, 0, 0], sizes = [1, 10, 256], strides = [1, 1, 1]} : vector<4x10x256xf32> to vector<1x10x256xf32>
    %4 = vector.shape_cast %3 : vector<1x10x256xf32> to vector<10x256xf32>
    %cst = arith.constant 0.000000e+00 : f32
    %5 = vector.broadcast %cst : f32 to vector<10x256xf32>
    %6 = arith.cmpf one, %4, %5 : vector<10x256xf32>
    %7 = vector.extract_strided_slice %0 {offsets = [1, 0, 0], sizes = [1, 10, 256], strides = [1, 1, 1]} : vector<4x10x256xf32> to vector<1x10x256xf32>
    %8 = vector.shape_cast %7 : vector<1x10x256xf32> to vector<10x256xf32>
    %cst_2 = arith.constant 0.000000e+00 : f32
    %9 = vector.broadcast %cst_2 : f32 to vector<10x256xf32>
    %10 = arith.cmpf one, %8, %9 : vector<10x256xf32>
    %11 = arith.ori %6, %10 : vector<10x256xi1>
    %12 = vector.extract_strided_slice %0 {offsets = [2, 0, 0], sizes = [1, 10, 256], strides = [1, 1, 1]} : vector<4x10x256xf32> to vector<1x10x256xf32>
    %13 = vector.shape_cast %12 : vector<1x10x256xf32> to vector<10x256xf32>
    %cst_3 = arith.constant 0.000000e+00 : f32
    %14 = vector.broadcast %cst_3 : f32 to vector<10x256xf32>
    %15 = arith.cmpf one, %13, %14 : vector<10x256xf32>
    %16 = arith.ori %11, %15 : vector<10x256xi1>
    %17 = vector.extract_strided_slice %0 {offsets = [3, 0, 0], sizes = [1, 10, 256], strides = [1, 1, 1]} : vector<4x10x256xf32> to vector<1x10x256xf32>
    %18 = vector.shape_cast %17 : vector<1x10x256xf32> to vector<10x256xf32>
    %cst_4 = arith.constant 0.000000e+00 : f32
    %19 = vector.broadcast %cst_4 : f32 to vector<10x256xf32>
    %20 = arith.cmpf one, %18, %19 : vector<10x256xf32>
    %21 = arith.ori %16, %20 : vector<10x256xi1>
    %cst_5 = arith.constant 1.000000e+00 : f32
    %22 = vector.broadcast %cst_5 : f32 to vector<1x10x256xf32>
    %23 = tpu.concatenate %0, %22 in 0 : vector<4x10x256xf32>, vector<1x10x256xf32> -> vector<5x10x256xf32>
    %cst_6 = arith.constant 0.000000e+00 : f32
    %24 = vector.broadcast %cst_6 : f32 to vector<10x256xf32>
    %25 = arith.cmpf oeq, %2, %24 : vector<10x256xf32>
    %26 = arith.andi %25, %21 : vector<10x256xi1>
    %27 = arith.extui %26 : vector<10x256xi1> to vector<10x256xi32>
    %28 = arith.sitofp %27 : vector<10x256xi32> to vector<10x256xf32>
    %29 = vector.shape_cast %28 : vector<10x256xf32> to vector<1x10x256xf32>
    %30 = vector.broadcast %29 : vector<1x10x256xf32> to vector<5x10x256xf32>
    %31 = arith.mulf %23, %30 : vector<5x10x256xf32>
    %cst_7 = arith.constant dense<0.000000e+00> : vector<5x256xf32>
    %32 = vector.multi_reduction <add>, %31, %cst_7 [1] : vector<5x10x256xf32> to vector<5x256xf32>
    %33 = vector.extract_strided_slice %32 {offsets = [4, 0], sizes = [1, 256], strides = [1, 1]} : vector<5x256xf32> to vector<1x256xf32>
    %cst_8 = arith.constant 1.000000e+00 : f32
    %34 = vector.broadcast %cst_8 : f32 to vector<1x256xf32>
    %35 = arith.maximumf %33, %34 : vector<1x256xf32>
    %36 = tpu.reciprocal %35 {approx = true} : vector<1x256xf32> -> vector<1x256xf32>
    %37 = vector.extract_strided_slice %32 {offsets = [0, 0], sizes = [4, 256], strides = [1, 1]} : vector<5x256xf32> to vector<4x256xf32>
    %38 = vector.broadcast %36 : vector<1x256xf32> to vector<4x256xf32>
    %39 = arith.mulf %37, %38 : vector<4x256xf32>
    %cst_9 = arith.constant 4.500000e-02 : f32
    %40 = vector.broadcast %cst_9 : f32 to vector<10x256xf32>
    %41 = arith.cmpf oge, %2, %40 : vector<10x256xf32>
    %cst_10 = arith.constant 5.500000e-02 : f32
    %42 = vector.broadcast %cst_10 : f32 to vector<10x256xf32>
    %43 = arith.cmpf olt, %2, %42 : vector<10x256xf32>
    %44 = arith.andi %41, %43 : vector<10x256xi1>
    %45 = arith.extui %44 : vector<10x256xi1> to vector<10x256xi32>
    %46 = arith.sitofp %45 : vector<10x256xi32> to vector<10x256xf32>
    %47 = vector.shape_cast %46 : vector<10x256xf32> to vector<1x10x256xf32>
    %48 = vector.broadcast %47 : vector<1x10x256xf32> to vector<5x10x256xf32>
    %49 = arith.mulf %23, %48 : vector<5x10x256xf32>
    %cst_11 = arith.constant dense<0.000000e+00> : vector<5x256xf32>
    %50 = vector.multi_reduction <add>, %49, %cst_11 [1] : vector<5x10x256xf32> to vector<5x256xf32>
    %51 = vector.extract_strided_slice %50 {offsets = [4, 0], sizes = [1, 256], strides = [1, 1]} : vector<5x256xf32> to vector<1x256xf32>
    %cst_12 = arith.constant 1.000000e+00 : f32
    %52 = vector.broadcast %cst_12 : f32 to vector<1x256xf32>
    %53 = arith.maximumf %51, %52 : vector<1x256xf32>
    %54 = tpu.reciprocal %53 {approx = true} : vector<1x256xf32> -> vector<1x256xf32>
    %55 = vector.extract_strided_slice %50 {offsets = [0, 0], sizes = [4, 256], strides = [1, 1]} : vector<5x256xf32> to vector<4x256xf32>
    %56 = vector.broadcast %54 : vector<1x256xf32> to vector<4x256xf32>
    %57 = arith.mulf %55, %56 : vector<4x256xf32>
    %cst_13 = arith.constant 1.000000e+00 : f32
    %58 = vector.broadcast %cst_13 : f32 to vector<1x256xf32>
    %cst_14 = arith.constant 0.000000e+00 : f32
    %59 = vector.broadcast %cst_14 : f32 to vector<3x256xf32>
    %60 = tpu.concatenate %58, %59 in 0 : vector<1x256xf32>, vector<3x256xf32> -> vector<4x256xf32>
    %61 = arith.subf %39, %57 : vector<4x256xf32>
    %62 = tpu.concatenate %61, %60 in 0 : vector<4x256xf32>, vector<4x256xf32> -> vector<8x256xf32>
    %c0_15 = arith.constant 0 : index
    %c0_16 = arith.constant 0 : index
    %63 = vector.load %arg9[%c0_15, %c0_16] : memref<72x256xf32, #tpu.memory_space<vmem>>, vector<8x256xf32>
    tpu.vector_store %arg9[%c0_15, %c0_16], %62 {strides = array<i32>} : memref<72x256xf32, #tpu.memory_space<vmem>>, vector<8x256xf32>,
    %cst_17 = arith.constant 0.0949999988 : f32
    %64 = vector.broadcast %cst_17 : f32 to vector<10x256xf32>
    %65 = arith.cmpf oge, %2, %64 : vector<10x256xf32>
    %cst_18 = arith.constant 1.050000e-01 : f32
    %66 = vector.broadcast %cst_18 : f32 to vector<10x256xf32>
    %67 = arith.cmpf olt, %2, %66 : vector<10x256xf32>
    %68 = arith.andi %65, %67 : vector<10x256xi1>
    %69 = arith.extui %68 : vector<10x256xi1> to vector<10x256xi32>
    %70 = arith.sitofp %69 : vector<10x256xi32> to vector<10x256xf32>
    %71 = vector.shape_cast %70 : vector<10x256xf32> to vector<1x10x256xf32>
    %72 = vector.broadcast %71 : vector<1x10x256xf32> to vector<5x10x256xf32>
    %73 = arith.mulf %23, %72 : vector<5x10x256xf32>
    %cst_19 = arith.constant dense<0.000000e+00> : vector<5x256xf32>
    %74 = vector.multi_reduction <add>, %73, %cst_19 [1] : vector<5x10x256xf32> to vector<5x256xf32>
    %75 = vector.extract_strided_slice %74 {offsets = [4, 0], sizes = [1, 256], strides = [1, 1]} : vector<5x256xf32> to vector<1x256xf32>
    %cst_20 = arith.constant 1.000000e+00 : f32
    %76 = vector.broadcast %cst_20 : f32 to vector<1x256xf32>
    %77 = arith.maximumf %75, %76 : vector<1x256xf32>
    %78 = tpu.reciprocal %77 {approx = true} : vector<1x256xf32> -> vector<1x256xf32>
    %79 = vector.extract_strided_slice %74 {offsets = [0, 0], sizes = [4, 256], strides = [1, 1]} : vector<5x256xf32> to vector<4x256xf32>
    %80 = vector.broadcast %78 : vector<1x256xf32> to vector<4x256xf32>
    %81 = arith.mulf %79, %80 : vector<4x256xf32>
    %cst_21 = arith.constant 0.000000e+00 : f32
    %82 = vector.broadcast %cst_21 : f32 to vector<4x256xf32>
    %83 = arith.subf %39, %81 : vector<4x256xf32>
    %84 = tpu.concatenate %83, %82 in 0 : vector<4x256xf32>, vector<4x256xf32> -> vector<8x256xf32>
    %c8 = arith.constant 8 : index
    %c0_22 = arith.constant 0 : index
    %85 = vector.load %arg9[%c8, %c0_22] : memref<72x256xf32, #tpu.memory_space<vmem>>, vector<8x256xf32>
    tpu.vector_store %arg9[%c8, %c0_22], %84 {strides = array<i32>} : memref<72x256xf32, #tpu.memory_space<vmem>>, vector<8x256xf32>,
    %cst_23 = arith.constant 1.450000e-01 : f32
    %86 = vector.broadcast %cst_23 : f32 to vector<10x256xf32>
    %87 = arith.cmpf oge, %2, %86 : vector<10x256xf32>
    %cst_24 = arith.constant 1.550000e-01 : f32
    %88 = vector.broadcast %cst_24 : f32 to vector<10x256xf32>
    %89 = arith.cmpf olt, %2, %88 : vector<10x256xf32>
    %90 = arith.andi %87, %89 : vector<10x256xi1>
    %91 = arith.extui %90 : vector<10x256xi1> to vector<10x256xi32>
    %92 = arith.sitofp %91 : vector<10x256xi32> to vector<10x256xf32>
    %93 = vector.shape_cast %92 : vector<10x256xf32> to vector<1x10x256xf32>
    %94 = vector.broadcast %93 : vector<1x10x256xf32> to vector<5x10x256xf32>
    %95 = arith.mulf %23, %94 : vector<5x10x256xf32>
    %cst_25 = arith.constant dense<0.000000e+00> : vector<5x256xf32>
    %96 = vector.multi_reduction <add>, %95, %cst_25 [1] : vector<5x10x256xf32> to vector<5x256xf32>
    %97 = vector.extract_strided_slice %96 {offsets = [4, 0], sizes = [1, 256], strides = [1, 1]} : vector<5x256xf32> to vector<1x256xf32>
    %cst_26 = arith.constant 1.000000e+00 : f32
    %98 = vector.broadcast %cst_26 : f32 to vector<1x256xf32>
    %99 = arith.maximumf %97, %98 : vector<1x256xf32>
    %100 = tpu.reciprocal %99 {approx = true} : vector<1x256xf32> -> vector<1x256xf32>
    %101 = vector.extract_strided_slice %96 {offsets = [0, 0], sizes = [4, 256], strides = [1, 1]} : vector<5x256xf32> to vector<4x256xf32>
    %102 = vector.broadcast %100 : vector<1x256xf32> to vector<4x256xf32>
    %103 = arith.mulf %101, %102 : vector<4x256xf32>
    %cst_27 = arith.constant 0.000000e+00 : f32
    %104 = vector.broadcast %cst_27 : f32 to vector<4x256xf32>
    %105 = arith.subf %39, %103 : vector<4x256xf32>
    %106 = tpu.concatenate %105, %104 in 0 : vector<4x256xf32>, vector<4x256xf32> -> vector<8x256xf32>
    %c16 = arith.constant 16 : index
    %c0_28 = arith.constant 0 : index
    %107 = vector.load %arg9[%c16, %c0_28] : memref<72x256xf32, #tpu.memory_space<vmem>>, vector<8x256xf32>
    tpu.vector_store %arg9[%c16, %c0_28], %106 {strides = array<i32>} : memref<72x256xf32, #tpu.memory_space<vmem>>, vector<8x256xf32>,
    %cst_29 = arith.constant 1.950000e-01 : f32
    %108 = vector.broadcast %cst_29 : f32 to vector<10x256xf32>
    %109 = arith.cmpf oge, %2, %108 : vector<10x256xf32>
    %cst_30 = arith.constant 2.050000e-01 : f32
    %110 = vector.broadcast %cst_30 : f32 to vector<10x256xf32>
    %111 = arith.cmpf olt, %2, %110 : vector<10x256xf32>
    %112 = arith.andi %109, %111 : vector<10x256xi1>
    %113 = arith.extui %112 : vector<10x256xi1> to vector<10x256xi32>
    %114 = arith.sitofp %113 : vector<10x256xi32> to vector<10x256xf32>
    %115 = vector.shape_cast %114 : vector<10x256xf32> to vector<1x10x256xf32>
    %116 = vector.broadcast %115 : vector<1x10x256xf32> to vector<5x10x256xf32>
    %117 = arith.mulf %23, %116 : vector<5x10x256xf32>
    %cst_31 = arith.constant dense<0.000000e+00> : vector<5x256xf32>
    %118 = vector.multi_reduction <add>, %117, %cst_31 [1] : vector<5x10x256xf32> to vector<5x256xf32>
    %119 = vector.extract_strided_slice %118 {offsets = [4, 0], sizes = [1, 256], strides = [1, 1]} : vector<5x256xf32> to vector<1x256xf32>
    %cst_32 = arith.constant 1.000000e+00 : f32
    %120 = vector.broadcast %cst_32 : f32 to vector<1x256xf32>
    %121 = arith.maximumf %119, %120 : vector<1x256xf32>
    %122 = tpu.reciprocal %121 {approx = true} : vector<1x256xf32> -> vector<1x256xf32>
    %123 = vector.extract_strided_slice %118 {offsets = [0, 0], sizes = [4, 256], strides = [1, 1]} : vector<5x256xf32> to vector<4x256xf32>
    %124 = vector.broadcast %122 : vector<1x256xf32> to vector<4x256xf32>
    %125 = arith.mulf %123, %124 : vector<4x256xf32>
    %cst_33 = arith.constant 0.000000e+00 : f32
    %126 = vector.broadcast %cst_33 : f32 to vector<4x256xf32>
    %127 = arith.subf %39, %125 : vector<4x256xf32>
    %128 = tpu.concatenate %127, %126 in 0 : vector<4x256xf32>, vector<4x256xf32> -> vector<8x256xf32>
    %c24 = arith.constant 24 : index
    %c0_34 = arith.constant 0 : index
    %129 = vector.load %arg9[%c24, %c0_34] : memref<72x256xf32, #tpu.memory_space<vmem>>, vector<8x256xf32>
    tpu.vector_store %arg9[%c24, %c0_34], %128 {strides = array<i32>} : memref<72x256xf32, #tpu.memory_space<vmem>>, vector<8x256xf32>,
    %cst_35 = arith.constant 2.450000e-01 : f32
    %130 = vector.broadcast %cst_35 : f32 to vector<10x256xf32>
    %131 = arith.cmpf oge, %2, %130 : vector<10x256xf32>
    %cst_36 = arith.constant 2.550000e-01 : f32
    %132 = vector.broadcast %cst_36 : f32 to vector<10x256xf32>
    %133 = arith.cmpf olt, %2, %132 : vector<10x256xf32>
    %134 = arith.andi %131, %133 : vector<10x256xi1>
    %135 = arith.extui %134 : vector<10x256xi1> to vector<10x256xi32>
    %136 = arith.sitofp %135 : vector<10x256xi32> to vector<10x256xf32>
    %137 = vector.shape_cast %136 : vector<10x256xf32> to vector<1x10x256xf32>
    %138 = vector.broadcast %137 : vector<1x10x256xf32> to vector<5x10x256xf32>
    %139 = arith.mulf %23, %138 : vector<5x10x256xf32>
    %cst_37 = arith.constant dense<0.000000e+00> : vector<5x256xf32>
    %140 = vector.multi_reduction <add>, %139, %cst_37 [1] : vector<5x10x256xf32> to vector<5x256xf32>
    %141 = vector.extract_strided_slice %140 {offsets = [4, 0], sizes = [1, 256], strides = [1, 1]} : vector<5x256xf32> to vector<1x256xf32>
    %cst_38 = arith.constant 1.000000e+00 : f32
    %142 = vector.broadcast %cst_38 : f32 to vector<1x256xf32>
    %143 = arith.maximumf %141, %142 : vector<1x256xf32>
    %144 = tpu.reciprocal %143 {approx = true} : vector<1x256xf32> -> vector<1x256xf32>
    %145 = vector.extract_strided_slice %140 {offsets = [0, 0], sizes = [4, 256], strides = [1, 1]} : vector<5x256xf32> to vector<4x256xf32>
    %146 = vector.broadcast %144 : vector<1x256xf32> to vector<4x256xf32>
    %147 = arith.mulf %145, %146 : vector<4x256xf32>
    %cst_39 = arith.constant 0.000000e+00 : f32
    %148 = vector.broadcast %cst_39 : f32 to vector<4x256xf32>
    %149 = arith.subf %39, %147 : vector<4x256xf32>
    %150 = tpu.concatenate %149, %148 in 0 : vector<4x256xf32>, vector<4x256xf32> -> vector<8x256xf32>
    %c32 = arith.constant 32 : index
    %c0_40 = arith.constant 0 : index
    %151 = vector.load %arg9[%c32, %c0_40] : memref<72x256xf32, #tpu.memory_space<vmem>>, vector<8x256xf32>
    tpu.vector_store %arg9[%c32, %c0_40], %150 {strides = array<i32>} : memref<72x256xf32, #tpu.memory_space<vmem>>, vector<8x256xf32>,
    %cst_41 = arith.constant 2.950000e-01 : f32
    %152 = vector.broadcast %cst_41 : f32 to vector<10x256xf32>
    %153 = arith.cmpf oge, %2, %152 : vector<10x256xf32>
    %cst_42 = arith.constant 3.050000e-01 : f32
    %154 = vector.broadcast %cst_42 : f32 to vector<10x256xf32>
    %155 = arith.cmpf olt, %2, %154 : vector<10x256xf32>
    %156 = arith.andi %153, %155 : vector<10x256xi1>
    %157 = arith.extui %156 : vector<10x256xi1> to vector<10x256xi32>
    %158 = arith.sitofp %157 : vector<10x256xi32> to vector<10x256xf32>
    %159 = vector.shape_cast %158 : vector<10x256xf32> to vector<1x10x256xf32>
    %160 = vector.broadcast %159 : vector<1x10x256xf32> to vector<5x10x256xf32>
    %161 = arith.mulf %23, %160 : vector<5x10x256xf32>
    %cst_43 = arith.constant dense<0.000000e+00> : vector<5x256xf32>
    %162 = vector.multi_reduction <add>, %161, %cst_43 [1] : vector<5x10x256xf32> to vector<5x256xf32>
    %163 = vector.extract_strided_slice %162 {offsets = [4, 0], sizes = [1, 256], strides = [1, 1]} : vector<5x256xf32> to vector<1x256xf32>
    %cst_44 = arith.constant 1.000000e+00 : f32
    %164 = vector.broadcast %cst_44 : f32 to vector<1x256xf32>
    %165 = arith.maximumf %163, %164 : vector<1x256xf32>
    %166 = tpu.reciprocal %165 {approx = true} : vector<1x256xf32> -> vector<1x256xf32>
    %167 = vector.extract_strided_slice %162 {offsets = [0, 0], sizes = [4, 256], strides = [1, 1]} : vector<5x256xf32> to vector<4x256xf32>
    %168 = vector.broadcast %166 : vector<1x256xf32> to vector<4x256xf32>
    %169 = arith.mulf %167, %168 : vector<4x256xf32>
    %cst_45 = arith.constant 0.000000e+00 : f32
    %170 = vector.broadcast %cst_45 : f32 to vector<4x256xf32>
    %171 = arith.subf %39, %169 : vector<4x256xf32>
    %172 = tpu.concatenate %171, %170 in 0 : vector<4x256xf32>, vector<4x256xf32> -> vector<8x256xf32>
    %c40 = arith.constant 40 : index
    %c0_46 = arith.constant 0 : index
    %173 = vector.load %arg9[%c40, %c0_46] : memref<72x256xf32, #tpu.memory_space<vmem>>, vector<8x256xf32>
    tpu.vector_store %arg9[%c40, %c0_46], %172 {strides = array<i32>} : memref<72x256xf32, #tpu.memory_space<vmem>>, vector<8x256xf32>,
    %cst_47 = arith.constant 3.450000e-01 : f32
    %174 = vector.broadcast %cst_47 : f32 to vector<10x256xf32>
    %175 = arith.cmpf oge, %2, %174 : vector<10x256xf32>
    %cst_48 = arith.constant 3.550000e-01 : f32
    %176 = vector.broadcast %cst_48 : f32 to vector<10x256xf32>
    %177 = arith.cmpf olt, %2, %176 : vector<10x256xf32>
    %178 = arith.andi %175, %177 : vector<10x256xi1>
    %179 = arith.extui %178 : vector<10x256xi1> to vector<10x256xi32>
    %180 = arith.sitofp %179 : vector<10x256xi32> to vector<10x256xf32>
    %181 = vector.shape_cast %180 : vector<10x256xf32> to vector<1x10x256xf32>
    %182 = vector.broadcast %181 : vector<1x10x256xf32> to vector<5x10x256xf32>
    %183 = arith.mulf %23, %182 : vector<5x10x256xf32>
    %cst_49 = arith.constant dense<0.000000e+00> : vector<5x256xf32>
    %184 = vector.multi_reduction <add>, %183, %cst_49 [1] : vector<5x10x256xf32> to vector<5x256xf32>
    %185 = vector.extract_strided_slice %184 {offsets = [4, 0], sizes = [1, 256], strides = [1, 1]} : vector<5x256xf32> to vector<1x256xf32>
    %cst_50 = arith.constant 1.000000e+00 : f32
    %186 = vector.broadcast %cst_50 : f32 to vector<1x256xf32>
    %187 = arith.maximumf %185, %186 : vector<1x256xf32>
    %188 = tpu.reciprocal %187 {approx = true} : vector<1x256xf32> -> vector<1x256xf32>
    %189 = vector.extract_strided_slice %184 {offsets = [0, 0], sizes = [4, 256], strides = [1, 1]} : vector<5x256xf32> to vector<4x256xf32>
    %190 = vector.broadcast %188 : vector<1x256xf32> to vector<4x256xf32>
    %191 = arith.mulf %189, %190 : vector<4x256xf32>
    %cst_51 = arith.constant 0.000000e+00 : f32
    %192 = vector.broadcast %cst_51 : f32 to vector<4x256xf32>
    %193 = arith.subf %39, %191 : vector<4x256xf32>
    %194 = tpu.concatenate %193, %192 in 0 : vector<4x256xf32>, vector<4x256xf32> -> vector<8x256xf32>
    %c48 = arith.constant 48 : index
    %c0_52 = arith.constant 0 : index
    %195 = vector.load %arg9[%c48, %c0_52] : memref<72x256xf32, #tpu.memory_space<vmem>>, vector<8x256xf32>
    tpu.vector_store %arg9[%c48, %c0_52], %194 {strides = array<i32>} : memref<72x256xf32, #tpu.memory_space<vmem>>, vector<8x256xf32>,
    %cst_53 = arith.constant 3.950000e-01 : f32
    %196 = vector.broadcast %cst_53 : f32 to vector<10x256xf32>
    %197 = arith.cmpf oge, %2, %196 : vector<10x256xf32>
    %cst_54 = arith.constant 4.050000e-01 : f32
    %198 = vector.broadcast %cst_54 : f32 to vector<10x256xf32>
    %199 = arith.cmpf olt, %2, %198 : vector<10x256xf32>
    %200 = arith.andi %197, %199 : vector<10x256xi1>
    %201 = arith.extui %200 : vector<10x256xi1> to vector<10x256xi32>
    %202 = arith.sitofp %201 : vector<10x256xi32> to vector<10x256xf32>
    %203 = vector.shape_cast %202 : vector<10x256xf32> to vector<1x10x256xf32>
    %204 = vector.broadcast %203 : vector<1x10x256xf32> to vector<5x10x256xf32>
    %205 = arith.mulf %23, %204 : vector<5x10x256xf32>
    %cst_55 = arith.constant dense<0.000000e+00> : vector<5x256xf32>
    %206 = vector.multi_reduction <add>, %205, %cst_55 [1] : vector<5x10x256xf32> to vector<5x256xf32>
    %207 = vector.extract_strided_slice %206 {offsets = [4, 0], sizes = [1, 256], strides = [1, 1]} : vector<5x256xf32> to vector<1x256xf32>
    %cst_56 = arith.constant 1.000000e+00 : f32
    %208 = vector.broadcast %cst_56 : f32 to vector<1x256xf32>
    %209 = arith.maximumf %207, %208 : vector<1x256xf32>
    %210 = tpu.reciprocal %209 {approx = true} : vector<1x256xf32> -> vector<1x256xf32>
    %211 = vector.extract_strided_slice %206 {offsets = [0, 0], sizes = [4, 256], strides = [1, 1]} : vector<5x256xf32> to vector<4x256xf32>
    %212 = vector.broadcast %210 : vector<1x256xf32> to vector<4x256xf32>
    %213 = arith.mulf %211, %212 : vector<4x256xf32>
    %cst_57 = arith.constant 0.000000e+00 : f32
    %214 = vector.broadcast %cst_57 : f32 to vector<4x256xf32>
    %215 = arith.subf %39, %213 : vector<4x256xf32>
    %216 = tpu.concatenate %215, %214 in 0 : vector<4x256xf32>, vector<4x256xf32> -> vector<8x256xf32>
    %c56 = arith.constant 56 : index
    %c0_58 = arith.constant 0 : index
    %217 = vector.load %arg9[%c56, %c0_58] : memref<72x256xf32, #tpu.memory_space<vmem>>, vector<8x256xf32>
    tpu.vector_store %arg9[%c56, %c0_58], %216 {strides = array<i32>} : memref<72x256xf32, #tpu.memory_space<vmem>>, vector<8x256xf32>,
    %cst_59 = arith.constant 4.450000e-01 : f32
    %218 = vector.broadcast %cst_59 : f32 to vector<10x256xf32>
    %219 = arith.cmpf ogt, %2, %218 : vector<10x256xf32>
    %220 = arith.extui %219 : vector<10x256xi1> to vector<10x256xi32>
    %221 = arith.sitofp %220 : vector<10x256xi32> to vector<10x256xf32>
    %222 = vector.shape_cast %221 : vector<10x256xf32> to vector<1x10x256xf32>
    %223 = vector.broadcast %222 : vector<1x10x256xf32> to vector<5x10x256xf32>
    %224 = arith.mulf %23, %223 : vector<5x10x256xf32>
    %cst_60 = arith.constant dense<0.000000e+00> : vector<5x256xf32>
    %225 = vector.multi_reduction <add>, %224, %cst_60 [1] : vector<5x10x256xf32> to vector<5x256xf32>
    %226 = vector.extract_strided_slice %225 {offsets = [4, 0], sizes = [1, 256], strides = [1, 1]} : vector<5x256xf32> to vector<1x256xf32>
    %cst_61 = arith.constant 1.000000e+00 : f32
    %227 = vector.broadcast %cst_61 : f32 to vector<1x256xf32>
    %228 = arith.maximumf %226, %227 : vector<1x256xf32>
    %229 = tpu.reciprocal %228 {approx = true} : vector<1x256xf32> -> vector<1x256xf32>
    %230 = vector.extract_strided_slice %225 {offsets = [0, 0], sizes = [4, 256], strides = [1, 1]} : vector<5x256xf32> to vector<4x256xf32>
    %231 = vector.broadcast %229 : vector<1x256xf32> to vector<4x256xf32>
    %232 = arith.mulf %230, %231 : vector<4x256xf32>
    %cst_62 = arith.constant 0.000000e+00 : f32
    %233 = vector.broadcast %cst_62 : f32 to vector<4x256xf32>
    %234 = arith.subf %39, %232 : vector<4x256xf32>
    %235 = tpu.concatenate %234, %233 in 0 : vector<4x256xf32>, vector<4x256xf32> -> vector<8x256xf32>
    %c64 = arith.constant 64 : index
    %c0_63 = arith.constant 0 : index
    %236 = vector.load %arg9[%c64, %c0_63] : memref<72x256xf32, #tpu.memory_space<vmem>>, vector<8x256xf32>
    tpu.vector_store %arg9[%c64, %c0_63], %235 {strides = array<i32>} : memref<72x256xf32, #tpu.memory_space<vmem>>, vector<8x256xf32>,
    %c0_64 = arith.constant 0 : index
    %c0_65 = arith.constant 0 : index
    %237 = vector.load %arg9[%c0_64, %c0_65] : memref<72x256xf32, #tpu.memory_space<vmem>>, vector<72x256xf32>
    %238 = arith.truncf %237 : vector<72x256xf32> to vector<72x256xbf16>
    %c0_66 = arith.constant 0 : index
    %c0_67 = arith.constant 0 : index
    %239 = vector.load %arg3[%c0_66, %c0_67] : memref<144x72xbf16, #tpu.memory_space<vmem>>, vector<144x72xbf16>
    %cst_68 = arith.constant dense<0.000000e+00> : vector<144x256xf32>
    %240 = tpu.matmul %239, %238, %cst_68 {dimension_numbers = #tpu.dot_dimension_numbers<[1], [0], [0], [1], [0, 0, 1, 1], [], []>} : vector<144x72xbf16>, vector<72x256xbf16>, vector<144x256xf32> -> vector<144x256xf32>
    %cst_69 = arith.constant 0.000000e+00 : f32
    %241 = vector.broadcast %cst_69 : f32 to vector<144x256xf32>
    %242 = arith.maximumf %240, %241 : vector<144x256xf32>
    %c0_70 = arith.constant 0 : index
    %c0_71 = arith.constant 0 : index
    %243 = vector.load %arg4[%c0_70, %c0_71] : memref<144x144xbf16, #tpu.memory_space<vmem>>, vector<144x144xbf16>
    %244 = arith.truncf %242 : vector<144x256xf32> to vector<144x256xbf16>
    %cst_72 = arith.constant dense<0.000000e+00> : vector<144x256xf32>
    %245 = tpu.matmul %243, %244, %cst_72 {dimension_numbers = #tpu.dot_dimension_numbers<[1], [0], [0], [1], [0, 0, 1, 1], [], []>} : vector<144x144xbf16>, vector<144x256xbf16>, vector<144x256xf32> -> vector<144x256xf32>
    %c0_73 = arith.constant 0 : index
    %c0_74 = arith.constant 0 : index
    %246 = vector.load %arg6[%c0_73, %c0_74] : memref<144x1xf32, #tpu.memory_space<vmem>>, vector<144x1xf32>
    %247 = vector.broadcast %246 : vector<144x1xf32> to vector<144x256xf32>
    %248 = arith.addf %245, %247 : vector<144x256xf32>
    %cst_75 = arith.constant 5.000000e-01 : f32
    %249 = vector.broadcast %cst_75 : f32 to vector<144x256xf32>
    %250 = arith.mulf %249, %248 : vector<144x256xf32>
    %251 = math.tanh %250 : vector<144x256xf32>
    %cst_76 = arith.constant 5.000000e-01 : f32
    %252 = vector.broadcast %cst_76 : f32 to vector<144x256xf32>
    %253 = arith.mulf %252, %251 : vector<144x256xf32>
    %cst_77 = arith.constant 5.000000e-01 : f32
    %254 = vector.broadcast %cst_77 : f32 to vector<144x256xf32>
    %255 = arith.addf %253, %254 : vector<144x256xf32>
    %256 = arith.mulf %255, %242 : vector<144x256xf32>
    %c0_78 = arith.constant 0 : index
    %c0_79 = arith.constant 0 : index
    %257 = vector.load %arg5[%c0_78, %c0_79] : memref<16x144xbf16, #tpu.memory_space<vmem>>, vector<16x144xbf16>
    %258 = arith.truncf %256 : vector<144x256xf32> to vector<144x256xbf16>
    %cst_80 = arith.constant dense<0.000000e+00> : vector<16x256xf32>
    %259 = tpu.matmul %257, %258, %cst_80 {dimension_numbers = #tpu.dot_dimension_numbers<[1], [0], [0], [1], [0, 0, 1, 1], [], []>} : vector<16x144xbf16>, vector<144x256xbf16>, vector<16x256xf32> -> vector<16x256xf32>
    %c0_81 = arith.constant 0 : index
    %c0_82 = arith.constant 0 : index
    %260 = vector.load %arg7[%c0_81, %c0_82] : memref<16x1xf32, #tpu.memory_space<vmem>>, vector<16x1xf32>
    %261 = vector.broadcast %260 : vector<16x1xf32> to vector<16x256xf32>
    %262 = arith.addf %259, %261 : vector<16x256xf32>
    %cst_83 = arith.constant 0.000000e+00 : f32
    %263 = vector.broadcast %cst_83 : f32 to vector<16x256xf32>
    %264 = arith.maximumf %262, %263 : vector<16x256xf32>
    %c0_84 = arith.constant 0 : index
    %c0_85 = arith.constant 0 : index
    %265 = vector.load %arg2[%c0_84, %c0_85] : memref<1x256xf32, #tpu.memory_space<vmem>>, vector<1x256xf32>
    %cst_86 = arith.constant dense<0.000000e+00> : vector<4x256xf32>
    %266 = vector.multi_reduction <add>, %0, %cst_86 [1] : vector<4x10x256xf32> to vector<4x256xf32>
    %267 = tpu.reciprocal %265 {approx = true} : vector<1x256xf32> -> vector<1x256xf32>
    %268 = vector.broadcast %267 : vector<1x256xf32> to vector<4x256xf32>
    %269 = arith.mulf %266, %268 : vector<4x256xf32>
    %c0_87 = arith.constant 0 : index
    %c0_88 = arith.constant 0 : index
    %270 = vector.load %arg8[%c0_87, %c0_88] : memref<20x256xf32, #tpu.memory_space<vmem>>, vector<16x256xf32>
    tpu.vector_store %arg8[%c0_87, %c0_88], %264 {strides = array<i32>} : memref<20x256xf32, #tpu.memory_space<vmem>>, vector<16x256xf32>,
    %c16_89 = arith.constant 16 : index
    %c0_90 = arith.constant 0 : index
    %271 = vector.load %arg8[%c16_89, %c0_90] : memref<20x256xf32, #tpu.memory_space<vmem>>, vector<4x256xf32>
    tpu.vector_store %arg8[%c16_89, %c0_90], %269 {strides = array<i32>} : memref<20x256xf32, #tpu.memory_space<vmem>>, vector<4x256xf32>,
    return
  }
  func.func @transform_0(%arg0: i32) -> (i32, i32, i32) {
    %c0_i32 = arith.constant 0 : i32
    %c0_i32_0 = arith.constant 0 : i32
    %c0_i32_1 = arith.constant 0 : i32
    return %c0_i32, %c0_i32_0, %arg0 : i32, i32, i32
  }
  func.func @transform_1(%arg0: i32) -> (i32, i32) {
    %c0_i32 = arith.constant 0 : i32
    %c0_i32_0 = arith.constant 0 : i32
    return %c0_i32, %arg0 : i32, i32
  }
  func.func @transform_2(%arg0: i32) -> (i32, i32) {
    %c0_i32 = arith.constant 0 : i32
    %c0_i32_0 = arith.constant 0 : i32
    %c0_i32_1 = arith.constant 0 : i32
    return %c0_i32, %c0_i32_0 : i32, i32
  }
  func.func @transform_3(%arg0: i32) -> (i32, i32) {
    %c0_i32 = arith.constant 0 : i32
    %c0_i32_0 = arith.constant 0 : i32
    %c0_i32_1 = arith.constant 0 : i32
    return %c0_i32, %c0_i32_0 : i32, i32
  }
  func.func @transform_4(%arg0: i32) -> (i32, i32) {
    %c0_i32 = arith.constant 0 : i32
    %c0_i32_0 = arith.constant 0 : i32
    %c0_i32_1 = arith.constant 0 : i32
    return %c0_i32, %c0_i32_0 : i32, i32
  }
  func.func @transform_5(%arg0: i32) -> (i32, i32) {
    %c0_i32 = arith.constant 0 : i32
    %c0_i32_0 = arith.constant 0 : i32
    %c0_i32_1 = arith.constant 0 : i32
    return %c0_i32, %c0_i32_0 : i32, i32
  }
  func.func @transform_6(%arg0: i32) -> (i32, i32) {
    %c0_i32 = arith.constant 0 : i32
    %c0_i32_0 = arith.constant 0 : i32
    %c0_i32_1 = arith.constant 0 : i32
    return %c0_i32, %c0_i32_0 : i32, i32
  }
  func.func @transform_7(%arg0: i32) -> (i32, i32) {
    %c0_i32 = arith.constant 0 : i32
    %c0_i32_0 = arith.constant 0 : i32
    return %c0_i32, %arg0 : i32, i32
  }
}

</mosaic_0001>

<llo_original>
// kernel: tpu_custom_call.1
$region0: #{tpu_custom_call.1}
  #allocation0 [shape = 'u32[]', space=smem, size = 0x4, offset = 0x4, fixed_abs, tag = 'smem constant byte address 0x4 - core index']
  #allocation1 [shape = 'u32[144,128]{1,0:T(1,128)}', space=vmem, size = 0x12000, scoped, tag = 'internal scratch']
  #allocation2 [shape = 'f32[72,256]{1,0:T(8,128)}', space=vmem, size = 0x12000, scoped, tag = 'scratch operand']
  %s0 = inlined_call_operand.vmem [shape: f32[4,10,1000], index: 0, kind: input, shape index: {}]
  %s1 = inlined_call_operand.vmem [shape: f32[1,1000], index: 1, kind: input, shape index: {}]
  %s2 = inlined_call_operand.vmem [shape: bf16[144,72], index: 2, kind: input, shape index: {}]
  %s3 = inlined_call_operand.vmem [shape: bf16[144,144], index: 3, kind: input, shape index: {}]
  %s4 = inlined_call_operand.vmem [shape: bf16[16,144], index: 4, kind: input, shape index: {}]
  %s5 = inlined_call_operand.vmem [shape: f32[144,1], index: 5, kind: input, shape index: {}]
  %s6 = inlined_call_operand.vmem [shape: f32[16,1], index: 6, kind: input, shape index: {}]
  %s7 = inlined_call_operand.hbm [shape: f32[20,1000], index: 7, kind: output, shape index: {}]
  %s8 = sld [smem:[#allocation0]]
  $region84: #{tpu_custom_call.1} parent=0
    _
  %s10 = ssub.s32 1, %s8
  %s11 = scalar_select 0, %s10, %s8
  $region1: #{tpu_custom_call.1} parent=0
    #allocation3 [shape = 'u8[131072]{0}', space=vmem, size = 0x20000, scoped, tag = 'input window, operand 0']
    #allocation4 [shape = 'u8[49152]{0}', space=vmem, size = 0xc000, scoped, tag = 'output window, operand 0']
    #allocation5 [shape = 's32[2]{0}', space=sflag, size = 0x8, scoped, tag = 'scoped memory for tpu_custom_call.1']
    %12 = vsyncpa [#allocation5], 0
    %s13 = scalar_lea.sflag [#allocation5], 1
    %14 = vsyncpa %s13, 0
    loop: start=0, step=1, limit=6
    $region2: #{tpu_custom_call.1} parent=1 // loop_pre_header
      _
    $region3: #{tpu_custom_call.1} parent=1 // loop_header
      %s16 = sphi 0, %s20
      %p17 = scmp.ge.s32.totalorder %s16, 6
      %s26 = sphi 0, %s28
      %s29 = sphi 0, %s26
      %s30 = sphi 0, %s29
      %s46 = sphi 0, %s30
      %s52 = sphi 0, %s54
      %s55 = sphi 0, %s52
      %s56 = sphi 0, %s55
      %s72 = sphi 0, %s56
      %s76 = sphi 0, %s76
      %s78 = sphi 0, %s76
      %s79 = sphi 0, %s78
      %s93 = sphi 0, %s79
      %s97 = sphi 0, %s97
      %s99 = sphi 0, %s97
      %s100 = sphi 0, %s99
      %s114 = sphi 0, %s100
      %s118 = sphi 0, %s118
      %s120 = sphi 0, %s118
      %s121 = sphi 0, %s120
      %s135 = sphi 0, %s121
      %s139 = sphi 0, %s139
      %s141 = sphi 0, %s139
      %s142 = sphi 0, %s141
      %s156 = sphi 0, %s142
      %s160 = sphi 0, %s160
      %s162 = sphi 0, %s160
      %s163 = sphi 0, %s162
      %s177 = sphi 0, %s163
      %s183 = sphi 0, %s185
      %s186 = sphi 0, %s183
      %s187 = sphi 0, %s186
      %s203 = sphi 0, %s187
    $region4: #{tpu_custom_call.1} parent=1 // loop_header_branch
      %19 = sbr.rel (%p17) target = $region8
    $region5: #{tpu_custom_call.1} parent=1 // loop_body
      %s21 = ssub.s32 %s16, 1
      %s22 = ssub.s32 %s16, 2
      %s23 = sadd.s32 %s16, 1
      %s24 = ssub.s32 %s16, %s23
      %p25 = scmp.eq.s32.totalorder %s24, 0
      %s27 = sadd.s32 %s26, 1
      %s28 = scalar_select %p25, %s26, %s27
      %p31 = pneg %p25
      %p32 = scmp.eq.s32.totalorder %s16, 3
      %p33 = por %p31, %p32
      %p34 = scmp.ne.s32.totalorder %s26, %s29
      %p35 = scmp.eq.s32.totalorder %s16, 0
      %p36 = por %p34, %p35
      %p37 = scmp.ne.s32.totalorder %s26, %s29
      %p38 = scmp.eq.s32.totalorder %s21, 3
      %p39 = por %p37, %p38
      %p40 = scmp.ne.s32.totalorder %s29, %s30
      %p41 = scmp.eq.s32.totalorder %s21, 0
      %p42 = por %p40, %p41
      %p43 = scmp.ne.s32.totalorder %s29, %s30
      %p44 = scmp.eq.s32.totalorder %s22, 3
      %p45 = por %p43, %p44
      %p47 = scmp.ne.s32.totalorder %s30, %s46
      %p48 = scmp.eq.s32.totalorder %s22, 0
      %p49 = por %p47, %p48
      %s50 = ssub.s32 %s16, %s23
      %p51 = scmp.eq.s32.totalorder %s50, 0
      %s53 = sadd.s32 %s52, 1
      %s54 = scalar_select %p51, %s52, %s53
      %p57 = pneg %p51
      %p58 = scmp.eq.s32.totalorder %s16, 3
      %p59 = por %p57, %p58
      %p60 = scmp.ne.s32.totalorder %s52, %s55
      %p61 = scmp.eq.s32.totalorder %s16, 0
      %p62 = por %p60, %p61
      %p63 = scmp.ne.s32.totalorder %s52, %s55
      %p64 = scmp.eq.s32.totalorder %s21, 3
      %p65 = por %p63, %p64
      %p66 = scmp.ne.s32.totalorder %s55, %s56
      %p67 = scmp.eq.s32.totalorder %s21, 0
      %p68 = por %p66, %p67
      %p69 = scmp.ne.s32.totalorder %s55, %s56
      %p70 = scmp.eq.s32.totalorder %s22, 3
      %p71 = por %p69, %p70
      %p73 = scmp.ne.s32.totalorder %s56, %s72
      %p74 = scmp.eq.s32.totalorder %s22, 0
      %p75 = por %p73, %p74
      %s77 = sadd.s32 %s76, 1
      %p80 = scmp.eq.s32.totalorder %s16, 3
      %p81 = scmp.ne.s32.totalorder %s76, %s78
      %p82 = scmp.eq.s32.totalorder %s16, 0
      %p83 = por %p81, %p82
      %p84 = scmp.ne.s32.totalorder %s76, %s78
      %p85 = scmp.eq.s32.totalorder %s21, 3
      %p86 = por %p84, %p85
      %p87 = scmp.ne.s32.totalorder %s78, %s79
      %p88 = scmp.eq.s32.totalorder %s21, 0
      %p89 = por %p87, %p88
      %p90 = scmp.ne.s32.totalorder %s78, %s79
      %p91 = scmp.eq.s32.totalorder %s22, 3
      %p92 = por %p90, %p91
      %p94 = scmp.ne.s32.totalorder %s79, %s93
      %p95 = scmp.eq.s32.totalorder %s22, 0
      %p96 = por %p94, %p95
      %s98 = sadd.s32 %s97, 1
      %p101 = scmp.eq.s32.totalorder %s16, 3
      %p102 = scmp.ne.s32.totalorder %s97, %s99
      %p103 = scmp.eq.s32.totalorder %s16, 0
      %p104 = por %p102, %p103
      %p105 = scmp.ne.s32.totalorder %s97, %s99
      %p106 = scmp.eq.s32.totalorder %s21, 3
      %p107 = por %p105, %p106
      %p108 = scmp.ne.s32.totalorder %s99, %s100
      %p109 = scmp.eq.s32.totalorder %s21, 0
      %p110 = por %p108, %p109
      %p111 = scmp.ne.s32.totalorder %s99, %s100
      %p112 = scmp.eq.s32.totalorder %s22, 3
      %p113 = por %p111, %p112
      %p115 = scmp.ne.s32.totalorder %s100, %s114
      %p116 = scmp.eq.s32.totalorder %s22, 0
      %p117 = por %p115, %p116
      %s119 = sadd.s32 %s118, 1
      %p122 = scmp.eq.s32.totalorder %s16, 3
      %p123 = scmp.ne.s32.totalorder %s118, %s120
      %p124 = scmp.eq.s32.totalorder %s16, 0
      %p125 = por %p123, %p124
      %p126 = scmp.ne.s32.totalorder %s118, %s120
      %p127 = scmp.eq.s32.totalorder %s21, 3
      %p128 = por %p126, %p127
      %p129 = scmp.ne.s32.totalorder %s120, %s121
      %p130 = scmp.eq.s32.totalorder %s21, 0
      %p131 = por %p129, %p130
      %p132 = scmp.ne.s32.totalorder %s120, %s121
      %p133 = scmp.eq.s32.totalorder %s22, 3
      %p134 = por %p132, %p133
      %p136 = scmp.ne.s32.totalorder %s121, %s135
      %p137 = scmp.eq.s32.totalorder %s22, 0
      %p138 = por %p136, %p137
      %s140 = sadd.s32 %s139, 1
      %p143 = scmp.eq.s32.totalorder %s16, 3
      %p144 = scmp.ne.s32.totalorder %s139, %s141
      %p145 = scmp.eq.s32.totalorder %s16, 0
      %p146 = por %p144, %p145
      %p147 = scmp.ne.s32.totalorder %s139, %s141
      %p148 = scmp.eq.s32.totalorder %s21, 3
      %p149 = por %p147, %p148
      %p150 = scmp.ne.s32.totalorder %s141, %s142
      %p151 = scmp.eq.s32.totalorder %s21, 0
      %p152 = por %p150, %p151
      %p153 = scmp.ne.s32.totalorder %s141, %s142
      %p154 = scmp.eq.s32.totalorder %s22, 3
      %p155 = por %p153, %p154
      %p157 = scmp.ne.s32.totalorder %s142, %s156
      %p158 = scmp.eq.s32.totalorder %s22, 0
      %p159 = por %p157, %p158
      %s161 = sadd.s32 %s160, 1
      %p164 = scmp.eq.s32.totalorder %s16, 3
      %p165 = scmp.ne.s32.totalorder %s160, %s162
      %p166 = scmp.eq.s32.totalorder %s16, 0
      %p167 = por %p165, %p166
      %p168 = scmp.ne.s32.totalorder %s160, %s162
      %p169 = scmp.eq.s32.totalorder %s21, 3
      %p170 = por %p168, %p169
      %p171 = scmp.ne.s32.totalorder %s162, %s163
      %p172 = scmp.eq.s32.totalorder %s21, 0
      %p173 = por %p171, %p172
      %p174 = scmp.ne.s32.totalorder %s162, %s163
      %p175 = scmp.eq.s32.totalorder %s22, 3
      %p176 = por %p174, %p175
      %p178 = scmp.ne.s32.totalorder %s163, %s177
      %p179 = scmp.eq.s32.totalorder %s22, 0
      %p180 = por %p178, %p179
      %s181 = ssub.s32 %s16, %s23
      %p182 = scmp.eq.s32.totalorder %s181, 0
      %s184 = sadd.s32 %s183, 1
      %s185 = scalar_select %p182, %s183, %s184
      %p188 = pneg %p182
      %p189 = scmp.eq.s32.totalorder %s16, 3
      %p190 = por %p188, %p189
      %p191 = scmp.ne.s32.totalorder %s183, %s186
      %p192 = scmp.eq.s32.totalorder %s16, 0
      %p193 = por %p191, %p192
      %p194 = scmp.ne.s32.totalorder %s183, %s186
      %p195 = scmp.eq.s32.totalorder %s21, 3
      %p196 = por %p194, %p195
      %p197 = scmp.ne.s32.totalorder %s186, %s187
      %p198 = scmp.eq.s32.totalorder %s21, 0
      %p199 = por %p197, %p198
      %p200 = scmp.ne.s32.totalorder %s186, %s187
      %p201 = scmp.eq.s32.totalorder %s22, 3
      %p202 = por %p200, %p201
      %p204 = scmp.ne.s32.totalorder %s187, %s203
      %p205 = scmp.eq.s32.totalorder %s22, 0
      %p206 = por %p204, %p205
      %p207 = scmp.le.s32.totalorder 1, %s16
      %p208 = scmp.lt.s32.totalorder %s16, 5
      %p209 = pnand %p207, %p208
      %p210 = pneg %p209
      // Predicated region
      $region9: #{tpu_custom_call.1} parent=5 // pred_check
        _
      $region10: #{tpu_custom_call.1} parent=5 // pred_check_branch
        %212 = sbr.rel (%p209) target = $region12
      $region11: #{tpu_custom_call.1} parent=5 // pred_region
        %s213 = ssub.s32 %s16, 1
        // Predicated region
        $region13: #{tpu_custom_call.1} parent=11 // pred_check
          %p214 = pneg %p89
        $region14: #{tpu_custom_call.1} parent=11 // pred_check_branch
          %216 = sbr.rel (%p214) target = $region16
        $region15: #{tpu_custom_call.1} parent=11 // pred_region
          _
        $region16: #{tpu_custom_call.1} parent=11 // pred_fallthru
          _
        // Predicated region
        $region17: #{tpu_custom_call.1} parent=11 // pred_check
          %p217 = pneg %p110
        $region18: #{tpu_custom_call.1} parent=11 // pred_check_branch
          %219 = sbr.rel (%p217) target = $region20
        $region19: #{tpu_custom_call.1} parent=11 // pred_region
          _
        $region20: #{tpu_custom_call.1} parent=11 // pred_fallthru
          _
        // Predicated region
        $region21: #{tpu_custom_call.1} parent=11 // pred_check
          %p220 = pneg %p131
        $region22: #{tpu_custom_call.1} parent=11 // pred_check_branch
          %222 = sbr.rel (%p220) target = $region24
        $region23: #{tpu_custom_call.1} parent=11 // pred_region
          _
        $region24: #{tpu_custom_call.1} parent=11 // pred_fallthru
          _
        // Predicated region
        $region25: #{tpu_custom_call.1} parent=11 // pred_check
          %p223 = pneg %p152
        $region26: #{tpu_custom_call.1} parent=11 // pred_check_branch
          %225 = sbr.rel (%p223) target = $region28
        $region27: #{tpu_custom_call.1} parent=11 // pred_region
          _
        $region28: #{tpu_custom_call.1} parent=11 // pred_fallthru
          _
        // Predicated region
        $region29: #{tpu_custom_call.1} parent=11 // pred_check
          %p226 = pneg %p173
        $region30: #{tpu_custom_call.1} parent=11 // pred_check_branch
          %228 = sbr.rel (%p226) target = $region32
        $region31: #{tpu_custom_call.1} parent=11 // pred_region
          _
        $region32: #{tpu_custom_call.1} parent=11 // pred_fallthru
          _
      $region12: #{tpu_custom_call.1} parent=5 // pred_fallthru
        _
      %p229 = scmp.lt.s32.totalorder %s16, 4
      // Predicated region
      $region33: #{tpu_custom_call.1} parent=5 // pred_check
        %p230 = pneg %p229
      $region34: #{tpu_custom_call.1} parent=5 // pred_check_branch
        %232 = sbr.rel (%p230) target = $region36
      $region35: #{tpu_custom_call.1} parent=5 // pred_region
        // Predicated region
        $region37: #{tpu_custom_call.1} parent=35 // pred_check
          %p233 = pneg %p36
        $region38: #{tpu_custom_call.1} parent=35 // pred_check_branch
          %235 = sbr.rel (%p233) target = $region40
        $region39: #{tpu_custom_call.1} parent=35 // pred_region
          %s236 = sand.u32 %s26, 1
          %s237 = sand.u32 %s26, 1
          %s238 = smul.addr %s237, 128
          %s239 = scalar_lea.vmem [#allocation3], %s238
          %s240 = smul.u32 2, %s16
          %s241 = smul.addr %s240, 8
          %s242 = scalar_lea.vmem %s0, %s241
          // Predicated region
          $region41: #{tpu_custom_call.1} parent=39 // pred_check
            _
          $region42: #{tpu_custom_call.1} parent=39 // pred_check_branch
            %244 = sbr.rel (0) target = $region44
          $region43: #{tpu_custom_call.1} parent=39 // pred_region
            // Predicated region
            $region45: #{tpu_custom_call.1} parent=43 // pred_check
              _
            $region46: #{tpu_custom_call.1} parent=43 // pred_check_branch
              %246 = sbr.rel (0) target = $region48
            $region47: #{tpu_custom_call.1} parent=43 // pred_region
              loop: start=0, step=1, limit=1
              $region49: #{tpu_custom_call.1} parent=47 // loop_pre_header
                _
              $region50: #{tpu_custom_call.1} parent=47 // loop_header
                %s248 = sphi 0, %s252
                %p249 = scmp.ge.s32.totalorder %s248, 1
                %s253 = sphi %s242, %s242
                %s254 = sphi %s239, %s239
              $region51: #{tpu_custom_call.1} parent=47 // loop_header_branch
                %251 = sbr.rel (%p249) target = $region55
              $region52: #{tpu_custom_call.1} parent=47 // loop_body
                %v255 = vld [vmem:[%s253] sm:$0xff]
                %256 = vst [vmem:[%s254] sm:$0xff] %v255
                %v257 = vld [vmem:[%s253 + $0x8] sm:$0xff]
                %258 = vst [vmem:[%s254 + $0x8] sm:$0xff] %v257
                %v259 = vld [vmem:[%s253 + $0x40] sm:$0xff]
                %260 = vst [vmem:[%s254 + $0x10] sm:$0xff] %v259
                %v261 = vld [vmem:[%s253 + $0x48] sm:$0xff]
                %262 = vst [vmem:[%s254 + $0x18] sm:$0xff] %v261
                %v263 = vld [vmem:[%s253 + $0x80] sm:$0xff]
                %264 = vst [vmem:[%s254 + $0x20] sm:$0xff] %v263
                %v265 = vld [vmem:[%s253 + $0x88] sm:$0xff]
                %266 = vst [vmem:[%s254 + $0x28] sm:$0xff] %v265
                %v267 = vld [vmem:[%s253 + $0xc0] sm:$0xff]
                %268 = vst [vmem:[%s254 + $0x30] sm:$0xff] %v267
                %v269 = vld [vmem:[%s253 + $0xc8] sm:$0xff]
                %270 = vst [vmem:[%s254 + $0x38] sm:$0xff] %v269
                %v271 = vld [vmem:[%s253 + $0x100] sm:$0xff]
                %272 = vst [vmem:[%s254 + $0x40] sm:$0xff] %v271
                %v273 = vld [vmem:[%s253 + $0x108] sm:$0xff]
                %274 = vst [vmem:[%s254 + $0x48] sm:$0xff] %v273
                %v275 = vld [vmem:[%s253 + $0x140] sm:$0xff]
                %276 = vst [vmem:[%s254 + $0x50] sm:$0xff] %v275
                %v277 = vld [vmem:[%s253 + $0x148] sm:$0xff]
                %278 = vst [vmem:[%s254 + $0x58] sm:$0xff] %v277
                %v279 = vld [vmem:[%s253 + $0x180] sm:$0xff]
                %280 = vst [vmem:[%s254 + $0x60] sm:$0xff] %v279
                %v281 = vld [vmem:[%s253 + $0x188] sm:$0xff]
                %282 = vst [vmem:[%s254 + $0x68] sm:$0xff] %v281
                %v283 = vld [vmem:[%s253 + $0x1c0] sm:$0xff]
                %284 = vst [vmem:[%s254 + $0x70] sm:$0xff] %v283
                %v285 = vld [vmem:[%s253 + $0x1c8] sm:$0xff]
                %286 = vst [vmem:[%s254 + $0x78] sm:$0xff] %v285
              $region53: #{tpu_custom_call.1} parent=47 // loop_footer
                %s252 = sadd.s32 1, %s248
              $region54: #{tpu_custom_call.1} parent=47 // loop_footer_branch
                %247 = sbr.rel target = $region50
              $region55: #{tpu_custom_call.1} parent=47 // loop_exit
                _
            $region48: #{tpu_custom_call.1} parent=43 // pred_fallthru
              _
            // Predicated region
            $region56: #{tpu_custom_call.1} parent=43 // pred_check
              _
            $region57: #{tpu_custom_call.1} parent=43 // pred_check_branch
              %288 = sbr.rel target = $region59
            $region58: #{tpu_custom_call.1} parent=43 // pred_region
              _
            $region59: #{tpu_custom_call.1} parent=43 // pred_fallthru
              _
          $region44: #{tpu_custom_call.1} parent=39 // pred_fallthru
            _
          %289 = vnop
        $region40: #{tpu_custom_call.1} parent=35 // pred_fallthru
          _
        // Predicated region
        $region60: #{tpu_custom_call.1} parent=35 // pred_check
          %p290 = pneg %p62
        $region61: #{tpu_custom_call.1} parent=35 // pred_check_branch
          %292 = sbr.rel (%p290) target = $region63
        $region62: #{tpu_custom_call.1} parent=35 // pred_region
          %s293 = smul.u32 2, %s16
          %p294 = scmp.lt.s32.totalorder %s293, 7
          %s295 = scalar_select %p294, %s293, 7
          %s296 = scalar_lea.vmem %s1, %s295
          %s297 = smul.u32 2, %s16
        $region63: #{tpu_custom_call.1} parent=35 // pred_fallthru
          _
      $region36: #{tpu_custom_call.1} parent=5 // pred_fallthru
        _
      %p298 = scmp.le.s32.totalorder 1, %s16
      %p299 = scmp.lt.s32.totalorder %s16, 5
      %p300 = pnand %p298, %p299
      %p301 = pneg %p300
      // Predicated region
      $region64: #{tpu_custom_call.1} parent=5 // pred_check
        _
      $region65: #{tpu_custom_call.1} parent=5 // pred_check_branch
        %303 = sbr.rel (%p300) target = $region67
      $region66: #{tpu_custom_call.1} parent=5 // pred_region
        %s304 = ssub.s32 %s16, 1
        %s305 = sand.u32 %s29, 1
        %s306 = sand.u32 %s29, 1
        %s307 = smul.addr %s306, 128
        %s308 = scalar_lea.vmem [#allocation3], %s307
        // Predicated region
        $region68: #{tpu_custom_call.1} parent=66 // pred_check
          %p309 = pneg %p42
        $region69: #{tpu_custom_call.1} parent=66 // pred_check_branch
          %311 = sbr.rel (%p309) target = $region71
        $region70: #{tpu_custom_call.1} parent=66 // pred_region
          _
        $region71: #{tpu_custom_call.1} parent=66 // pred_fallthru
          _
        %s312 = sand.u32 %s29, 1
        %s313 = sand.u32 %s29, 1
        %s314 = smul.addr %s313, 128
        %s315 = scalar_lea.vmem [#allocation3], %s314
        %p316 = pneg %p42
        %p317 = pneg %p39
        %s318 = smul.u32 2, %s21
        %p319 = scmp.lt.s32.totalorder %s318, 7
        %s320 = scalar_select %p319, %s318, 7
        %s321 = scalar_lea.vmem %s1, %s320
        %p322 = pneg %p68
        %p323 = pneg %p65
        %p324 = pneg %p89
        %p325 = pneg %p86
        %p326 = pneg %p110
        %p327 = pneg %p107
        %p328 = pneg %p131
        %p329 = pneg %p128
        %p330 = pneg %p152
        %p331 = pneg %p149
        %p332 = pneg %p173
        %p333 = pneg %p170
        %p334 = pneg %p199
        %p335 = pneg %p196
        %s336 = sand.u32 %s186, 1
        %s337 = scalar_lea.sflag [#allocation5], %s336
        %s338 = sand.u32 %s186, 1
        %s339 = smul.addr %s338, 48
        %s340 = scalar_lea.vmem [#allocation4], %s339
        %s341 = smul.u32 2, %s21
        %s342 = smul.u32 2, %s21
        %p343 = scmp.lt.s32.totalorder %s342, 7
        %s344 = scalar_select %p343, %s342, 7
        %s345 = scalar_lea.vmem %s1, %s344
        %s346 = smul.u32 2, %s21
        %s347 = smul.u32 2, %s21
        %v349 = vld [vmem:[%s308] sm:$0xff]
        %v350 = vld [vmem:[%s308 + $0x8] sm:$0xff]
        %v351 = vld [vmem:[%s308 + $0x10] sm:$0x3]
        %v352 = vld [vmem:[%s308 + $0x18] sm:$0x3]
        %v353 = vld [vmem:[%s308 + $0x20] sm:$0xff]
        %v354 = vld [vmem:[%s308 + $0x28] sm:$0xff]
        %v355 = vld [vmem:[%s308 + $0x30] sm:$0x3]
        %v356 = vld [vmem:[%s308 + $0x38] sm:$0x3]
        %v357 = vld [vmem:[%s308 + $0x40] sm:$0xff]
        %v358 = vld [vmem:[%s308 + $0x48] sm:$0xff]
        %v359 = vld [vmem:[%s308 + $0x50] sm:$0x3]
        %v360 = vld [vmem:[%s308 + $0x58] sm:$0x3]
        %v361 = vld [vmem:[%s308 + $0x60] sm:$0xff]
        %v362 = vld [vmem:[%s308 + $0x68] sm:$0xff]
        %v363 = vld [vmem:[%s308 + $0x70] sm:$0x3]
        %v364 = vld [vmem:[%s308 + $0x78] sm:$0x3]
        %vm365 = vcmp.ne.f32.partialorder %v349, 0.0
        %vm366 = vcmp.ne.f32.partialorder %v350, 0.0
        %vm367 = vcmp.ne.f32.partialorder %v351, 0.0
        %vm368 = vcmp.ne.f32.partialorder %v352, 0.0
        %vm369 = vcmp.ne.f32.partialorder %v353, 0.0
        %vm370 = vcmp.ne.f32.partialorder %v354, 0.0
        %vm371 = vcmp.ne.f32.partialorder %v355, 0.0
        %vm372 = vcmp.ne.f32.partialorder %v356, 0.0
        %vm373 = vmor %vm365, %vm369
        %vm374 = vmor %vm366, %vm370
        %vm375 = vmor %vm367, %vm371
        %vm376 = vmor %vm368, %vm372
        %vm377 = vcmp.ne.f32.partialorder %v357, 0.0
        %vm378 = vcmp.ne.f32.partialorder %v358, 0.0
        %vm379 = vcmp.ne.f32.partialorder %v359, 0.0
        %vm380 = vcmp.ne.f32.partialorder %v360, 0.0
        %vm381 = vmor %vm373, %vm377
        %vm382 = vmor %vm374, %vm378
        %vm383 = vmor %vm375, %vm379
        %vm384 = vmor %vm376, %vm380
        %vm385 = vcmp.ne.f32.partialorder %v361, 0.0
        %vm386 = vcmp.ne.f32.partialorder %v362, 0.0
        %vm387 = vcmp.ne.f32.partialorder %v363, 0.0
        %vm388 = vcmp.ne.f32.partialorder %v364, 0.0
        %vm389 = vmor %vm381, %vm385
        %vm390 = vmor %vm382, %vm386
        %vm391 = vmor %vm383, %vm387
        %vm392 = vmor %vm384, %vm388
        %vm393 = vcmp.eq.f32.partialorder %v361, 0.0
        %vm394 = vcmp.eq.f32.partialorder %v362, 0.0
        %vm395 = vcmp.eq.f32.partialorder %v363, 0.0
        %vm396 = vcmp.eq.f32.partialorder %v364, 0.0
        %vm397 = vmand %vm393, %vm389
        %vm398 = vmand %vm394, %vm390
        %vm399 = vmand %vm395, %vm391
        %vm400 = vmand %vm396, %vm392
        %v401 = vsel %vm397, 1, 0
        %v402 = vsel %vm398, 1, 0
        %v403 = vsel %vm399, 1, 0
        %v404 = vsel %vm400, 1, 0
        %v405 = vcvt.s32.f32 %v401
        %v406 = vcvt.s32.f32 %v402
        %v407 = vcvt.s32.f32 %v403
        %v408 = vcvt.s32.f32 %v404
        %v409 = vmul.f32 %v349, %v405
        %v410 = vmul.f32 %v350, %v406
        %v411 = vmul.f32 %v351, %v407
        %v412 = vmul.f32 %v352, %v408
        %v413 = vmul.f32 %v353, %v405
        %v414 = vmul.f32 %v354, %v406
        %v415 = vmul.f32 %v355, %v407
        %v416 = vmul.f32 %v356, %v408
        %v417 = vmul.f32 %v357, %v405
        %v418 = vmul.f32 %v358, %v406
        %v419 = vmul.f32 %v359, %v407
        %v420 = vmul.f32 %v360, %v408
        %v421 = vmul.f32 %v361, %v405
        %v422 = vmul.f32 %v362, %v406
        %v423 = vmul.f32 %v363, %v407
        %v424 = vmul.f32 %v364, %v408
        %vm425 = vcmask 1041408
        %v426 = vsel %vm425, %v411, 0.0
        %v427 = vadd.f32 %v409, %v426
        %v428 = vrot.slane %v427, 4
        %v429 = vadd.f32 %v427, %v428
        %v430 = vrot.slane %v429, 2
        %v431 = vadd.f32 %v429, %v430
        %v432 = vrot.slane %v431, 1
        %v433 = vadd.f32 %v431, %v432
        %v434 = vsel %vm425, %v412, 0.0
        %v435 = vadd.f32 %v410, %v434
        %v436 = vrot.slane %v435, 4
        %v437 = vadd.f32 %v435, %v436
        %v438 = vrot.slane %v437, 2
        %v439 = vadd.f32 %v437, %v438
        %v440 = vrot.slane %v439, 1
        %v441 = vadd.f32 %v439, %v440
        %v442 = vsel %vm425, %v415, 0.0
        %v443 = vadd.f32 %v413, %v442
        %v444 = vrot.slane %v443, 4
        %v445 = vadd.f32 %v443, %v444
        %v446 = vrot.slane %v445, 2
        %v447 = vadd.f32 %v445, %v446
        %v448 = vrot.slane %v447, 1
        %v449 = vadd.f32 %v447, %v448
        %v450 = vsel %vm425, %v416, 0.0
        %v451 = vadd.f32 %v414, %v450
        %v452 = vrot.slane %v451, 4
        %v453 = vadd.f32 %v451, %v452
        %v454 = vrot.slane %v453, 2
        %v455 = vadd.f32 %v453, %v454
        %v456 = vrot.slane %v455, 1
        %v457 = vadd.f32 %v455, %v456
        %v458 = vsel %vm425, %v419, 0.0
        %v459 = vadd.f32 %v417, %v458
        %v460 = vrot.slane %v459, 4
        %v461 = vadd.f32 %v459, %v460
        %v462 = vrot.slane %v461, 2
        %v463 = vadd.f32 %v461, %v462
        %v464 = vrot.slane %v463, 1
        %v465 = vadd.f32 %v463, %v464
        %v466 = vsel %vm425, %v420, 0.0
        %v467 = vadd.f32 %v418, %v466
        %v468 = vrot.slane %v467, 4
        %v469 = vadd.f32 %v467, %v468
        %v470 = vrot.slane %v469, 2
        %v471 = vadd.f32 %v469, %v470
        %v472 = vrot.slane %v471, 1
        %v473 = vadd.f32 %v471, %v472
        %v474 = vsel %vm425, %v423, 0.0
        %v475 = vadd.f32 %v421, %v474
        %v476 = vrot.slane %v475, 4
        %v477 = vadd.f32 %v475, %v476
        %v478 = vrot.slane %v477, 2
        %v479 = vadd.f32 %v477, %v478
        %v480 = vrot.slane %v479, 1
        %v481 = vadd.f32 %v479, %v480
        %v482 = vsel %vm425, %v424, 0.0
        %v483 = vadd.f32 %v422, %v482
        %v484 = vrot.slane %v483, 4
        %v485 = vadd.f32 %v483, %v484
        %v486 = vrot.slane %v485, 2
        %v487 = vadd.f32 %v485, %v486
        %v488 = vrot.slane %v487, 1
        %v489 = vadd.f32 %v487, %v488
        %v490 = vsel %vm425, %v407, 0.0
        %v491 = vadd.f32 %v405, %v490
        %v492 = vrot.slane %v491, 4
        %v493 = vadd.f32 %v491, %v492
        %v494 = vrot.slane %v493, 2
        %v495 = vadd.f32 %v493, %v494
        %v496 = vrot.slane %v495, 1
        %v497 = vadd.f32 %v495, %v496
        %v498 = vsel %vm425, %v408, 0.0
        %v499 = vadd.f32 %v406, %v498
        %v500 = vrot.slane %v499, 4
        %v501 = vadd.f32 %v499, %v500
        %v502 = vrot.slane %v501, 2
        %v503 = vadd.f32 %v501, %v502
        %v504 = vrot.slane %v503, 1
        %v505 = vadd.f32 %v503, %v504
        %v506 = vmax.f32 %v497, 1.0
        %v507 = vmax.f32 %v505, 1.0
        %v508 = vrcp.pop %v506
        %v509 = vrcp.pop %v507
        %v510 = vmul.f32 %v433, %v508
        %v511 = vmul.f32 %v441, %v509
        %v512 = vmul.f32 %v449, %v508
        %v513 = vmul.f32 %v457, %v509
        %v514 = vmul.f32 %v465, %v508
        %v515 = vmul.f32 %v473, %v509
        %v516 = vmul.f32 %v481, %v508
        %v517 = vmul.f32 %v489, %v509
        %vm518 = vcmp.ge.f32.partialorder %v361, 0.045
        %vm519 = vcmp.ge.f32.partialorder %v362, 0.045
        %vm520 = vcmp.ge.f32.partialorder %v363, 0.045
        %vm521 = vcmp.ge.f32.partialorder %v364, 0.045
        %vm522 = vcmp.lt.f32.partialorder %v361, 0.055
        %vm523 = vcmp.lt.f32.partialorder %v362, 0.055
        %vm524 = vcmp.lt.f32.partialorder %v363, 0.055
        %vm525 = vcmp.lt.f32.partialorder %v364, 0.055
        %vm526 = vmand %vm518, %vm522
        %vm527 = vmand %vm519, %vm523
        %vm528 = vmand %vm520, %vm524
        %vm529 = vmand %vm521, %vm525
        %v530 = vsel %vm526, 1, 0
        %v531 = vsel %vm527, 1, 0
        %v532 = vsel %vm528, 1, 0
        %v533 = vsel %vm529, 1, 0
        %v534 = vcvt.s32.f32 %v530
        %v535 = vcvt.s32.f32 %v531
        %v536 = vcvt.s32.f32 %v532
        %v537 = vcvt.s32.f32 %v533
        %v538 = vmul.f32 %v349, %v534
        %v539 = vmul.f32 %v350, %v535
        %v540 = vmul.f32 %v351, %v536
        %v541 = vmul.f32 %v352, %v537
        %v542 = vmul.f32 %v353, %v534
        %v543 = vmul.f32 %v354, %v535
        %v544 = vmul.f32 %v355, %v536
        %v545 = vmul.f32 %v356, %v537
        %v546 = vmul.f32 %v357, %v534
        %v547 = vmul.f32 %v358, %v535
        %v548 = vmul.f32 %v359, %v536
        %v549 = vmul.f32 %v360, %v537
        %v550 = vmul.f32 %v361, %v534
        %v551 = vmul.f32 %v362, %v535
        %v552 = vmul.f32 %v363, %v536
        %v553 = vmul.f32 %v364, %v537
        %v554 = vsel %vm425, %v540, 0.0
        %v555 = vadd.f32 %v538, %v554
        %v556 = vrot.slane %v555, 4
        %v557 = vadd.f32 %v555, %v556
        %v558 = vrot.slane %v557, 2
        %v559 = vadd.f32 %v557, %v558
        %v560 = vrot.slane %v559, 1
        %v561 = vadd.f32 %v559, %v560
        %v562 = vsel %vm425, %v541, 0.0
        %v563 = vadd.f32 %v539, %v562
        %v564 = vrot.slane %v563, 4
        %v565 = vadd.f32 %v563, %v564
        %v566 = vrot.slane %v565, 2
        %v567 = vadd.f32 %v565, %v566
        %v568 = vrot.slane %v567, 1
        %v569 = vadd.f32 %v567, %v568
        %v570 = vsel %vm425, %v544, 0.0
        %v571 = vadd.f32 %v542, %v570
        %v572 = vrot.slane %v571, 4
        %v573 = vadd.f32 %v571, %v572
        %v574 = vrot.slane %v573, 2
        %v575 = vadd.f32 %v573, %v574
        %v576 = vrot.slane %v575, 1
        %v577 = vadd.f32 %v575, %v576
        %v578 = vsel %vm425, %v545, 0.0
        %v579 = vadd.f32 %v543, %v578
        %v580 = vrot.slane %v579, 4
        %v581 = vadd.f32 %v579, %v580
        %v582 = vrot.slane %v581, 2
        %v583 = vadd.f32 %v581, %v582
        %v584 = vrot.slane %v583, 1
        %v585 = vadd.f32 %v583, %v584
        %v586 = vsel %vm425, %v548, 0.0
        %v587 = vadd.f32 %v546, %v586
        %v588 = vrot.slane %v587, 4
        %v589 = vadd.f32 %v587, %v588
        %v590 = vrot.slane %v589, 2
        %v591 = vadd.f32 %v589, %v590
        %v592 = vrot.slane %v591, 1
        %v593 = vadd.f32 %v591, %v592
        %v594 = vsel %vm425, %v549, 0.0
        %v595 = vadd.f32 %v547, %v594
        %v596 = vrot.slane %v595, 4
        %v597 = vadd.f32 %v595, %v596
        %v598 = vrot.slane %v597, 2
        %v599 = vadd.f32 %v597, %v598
        %v600 = vrot.slane %v599, 1
        %v601 = vadd.f32 %v599, %v600
        %v602 = vsel %vm425, %v552, 0.0
        %v603 = vadd.f32 %v550, %v602
        %v604 = vrot.slane %v603, 4
        %v605 = vadd.f32 %v603, %v604
        %v606 = vrot.slane %v605, 2
        %v607 = vadd.f32 %v605, %v606
        %v608 = vrot.slane %v607, 1
        %v609 = vadd.f32 %v607, %v608
        %v610 = vsel %vm425, %v553, 0.0
        %v611 = vadd.f32 %v551, %v610
        %v612 = vrot.slane %v611, 4
        %v613 = vadd.f32 %v611, %v612
        %v614 = vrot.slane %v613, 2
        %v615 = vadd.f32 %v613, %v614
        %v616 = vrot.slane %v615, 1
        %v617 = vadd.f32 %v615, %v616
        %v618 = vsel %vm425, %v536, 0.0
        %v619 = vadd.f32 %v534, %v618
        %v620 = vrot.slane %v619, 4
        %v621 = vadd.f32 %v619, %v620
        %v622 = vrot.slane %v621, 2
        %v623 = vadd.f32 %v621, %v622
        %v624 = vrot.slane %v623, 1
        %v625 = vadd.f32 %v623, %v624
        %v626 = vsel %vm425, %v537, 0.0
        %v627 = vadd.f32 %v535, %v626
        %v628 = vrot.slane %v627, 4
        %v629 = vadd.f32 %v627, %v628
        %v630 = vrot.slane %v629, 2
        %v631 = vadd.f32 %v629, %v630
        %v632 = vrot.slane %v631, 1
        %v633 = vadd.f32 %v631, %v632
        %v634 = vmax.f32 %v625, 1.0
        %v635 = vmax.f32 %v633, 1.0
        %v636 = vrcp.pop %v634
        %v637 = vrcp.pop %v635
        %v638 = vmul.f32 %v561, %v636
        %v639 = vmul.f32 %v569, %v637
        %v640 = vmul.f32 %v577, %v636
        %v641 = vmul.f32 %v585, %v637
        %v642 = vmul.f32 %v593, %v636
        %v643 = vmul.f32 %v601, %v637
        %v644 = vmul.f32 %v609, %v636
        %v645 = vmul.f32 %v617, %v637
        %vm646 = vcmask 1040384
        %v647 = vsel %vm646, 1.0, 0.0
        %v648 = vsub.f32 %v510, %v638
        %v649 = vsub.f32 %v511, %v639
        %v650 = vsub.f32 %v512, %v640
        %v651 = vsub.f32 %v513, %v641
        %v652 = vsub.f32 %v514, %v642
        %v653 = vsub.f32 %v515, %v643
        %v654 = vsub.f32 %v516, %v644
        %v655 = vsub.f32 %v517, %v645
        %v664 = vrot.slane %v650, 7
        %vm665 = vcmask 1041409
        %v666 = vsel %vm665, %v664, %v648
        %v667 = vrot.slane %v652, 6
        %vm668 = vcmask 1042434
        %v669 = vsel %vm668, %v667, %v666
        %v670 = vrot.slane %v654, 5
        %vm671 = vcmask 1043459
        %v672 = vsel %vm671, %v670, %v669
        %v673 = vrot.slane %v651, 7
        %v674 = vsel %vm665, %v673, %v649
        %v675 = vrot.slane %v653, 6
        %v676 = vsel %vm668, %v675, %v674
        %v677 = vrot.slane %v655, 5
        %v678 = vsel %vm671, %v677, %v676
        %v682 = vrot.slane %v647, 4
        %vm684 = vcmask 1043456
        %v685 = vsel %vm684, %v672, %v682
        %v686 = vsel %vm684, %v678, %v682
        %687 = vst [vmem:[#allocation2] sm:$0xff] %v685
        %688 = vst [vmem:[#allocation2 + $0x8] sm:$0xff] %v686
        %vm689 = vcmp.ge.f32.partialorder %v361, 0.095
        %vm690 = vcmp.ge.f32.partialorder %v362, 0.095
        %vm691 = vcmp.ge.f32.partialorder %v363, 0.095
        %vm692 = vcmp.ge.f32.partialorder %v364, 0.095
        %vm693 = vcmp.lt.f32.partialorder %v361, 0.105
        %vm694 = vcmp.lt.f32.partialorder %v362, 0.105
        %vm695 = vcmp.lt.f32.partialorder %v363, 0.105
        %vm696 = vcmp.lt.f32.partialorder %v364, 0.105
        %vm697 = vmand %vm689, %vm693
        %vm698 = vmand %vm690, %vm694
        %vm699 = vmand %vm691, %vm695
        %vm700 = vmand %vm692, %vm696
        %v701 = vsel %vm697, 1, 0
        %v702 = vsel %vm698, 1, 0
        %v703 = vsel %vm699, 1, 0
        %v704 = vsel %vm700, 1, 0
        %v705 = vcvt.s32.f32 %v701
        %v706 = vcvt.s32.f32 %v702
        %v707 = vcvt.s32.f32 %v703
        %v708 = vcvt.s32.f32 %v704
        %v709 = vmul.f32 %v349, %v705
        %v710 = vmul.f32 %v350, %v706
        %v711 = vmul.f32 %v351, %v707
        %v712 = vmul.f32 %v352, %v708
        %v713 = vmul.f32 %v353, %v705
        %v714 = vmul.f32 %v354, %v706
        %v715 = vmul.f32 %v355, %v707
        %v716 = vmul.f32 %v356, %v708
        %v717 = vmul.f32 %v357, %v705
        %v718 = vmul.f32 %v358, %v706
        %v719 = vmul.f32 %v359, %v707
        %v720 = vmul.f32 %v360, %v708
        %v721 = vmul.f32 %v361, %v705
        %v722 = vmul.f32 %v362, %v706
        %v723 = vmul.f32 %v363, %v707
        %v724 = vmul.f32 %v364, %v708
        %v725 = vsel %vm425, %v711, 0.0
        %v726 = vadd.f32 %v709, %v725
        %v727 = vrot.slane %v726, 4
        %v728 = vadd.f32 %v726, %v727
        %v729 = vrot.slane %v728, 2
        %v730 = vadd.f32 %v728, %v729
        %v731 = vrot.slane %v730, 1
        %v732 = vadd.f32 %v730, %v731
        %v733 = vsel %vm425, %v712, 0.0
        %v734 = vadd.f32 %v710, %v733
        %v735 = vrot.slane %v734, 4
        %v736 = vadd.f32 %v734, %v735
        %v737 = vrot.slane %v736, 2
        %v738 = vadd.f32 %v736, %v737
        %v739 = vrot.slane %v738, 1
        %v740 = vadd.f32 %v738, %v739
        %v741 = vsel %vm425, %v715, 0.0
        %v742 = vadd.f32 %v713, %v741
        %v743 = vrot.slane %v742, 4
        %v744 = vadd.f32 %v742, %v743
        %v745 = vrot.slane %v744, 2
        %v746 = vadd.f32 %v744, %v745
        %v747 = vrot.slane %v746, 1
        %v748 = vadd.f32 %v746, %v747
        %v749 = vsel %vm425, %v716, 0.0
        %v750 = vadd.f32 %v714, %v749
        %v751 = vrot.slane %v750, 4
        %v752 = vadd.f32 %v750, %v751
        %v753 = vrot.slane %v752, 2
        %v754 = vadd.f32 %v752, %v753
        %v755 = vrot.slane %v754, 1
        %v756 = vadd.f32 %v754, %v755
        %v757 = vsel %vm425, %v719, 0.0
        %v758 = vadd.f32 %v717, %v757
        %v759 = vrot.slane %v758, 4
        %v760 = vadd.f32 %v758, %v759
        %v761 = vrot.slane %v760, 2
        %v762 = vadd.f32 %v760, %v761
        %v763 = vrot.slane %v762, 1
        %v764 = vadd.f32 %v762, %v763
        %v765 = vsel %vm425, %v720, 0.0
        %v766 = vadd.f32 %v718, %v765
        %v767 = vrot.slane %v766, 4
        %v768 = vadd.f32 %v766, %v767
        %v769 = vrot.slane %v768, 2
        %v770 = vadd.f32 %v768, %v769
        %v771 = vrot.slane %v770, 1
        %v772 = vadd.f32 %v770, %v771
        %v773 = vsel %vm425, %v723, 0.0
        %v774 = vadd.f32 %v721, %v773
        %v775 = vrot.slane %v774, 4
        %v776 = vadd.f32 %v774, %v775
        %v777 = vrot.slane %v776, 2
        %v778 = vadd.f32 %v776, %v777
        %v779 = vrot.slane %v778, 1
        %v780 = vadd.f32 %v778, %v779
        %v781 = vsel %vm425, %v724, 0.0
        %v782 = vadd.f32 %v722, %v781
        %v783 = vrot.slane %v782, 4
        %v784 = vadd.f32 %v782, %v783
        %v785 = vrot.slane %v784, 2
        %v786 = vadd.f32 %v784, %v785
        %v787 = vrot.slane %v786, 1
        %v788 = vadd.f32 %v786, %v787
        %v789 = vsel %vm425, %v707, 0.0
        %v790 = vadd.f32 %v705, %v789
        %v791 = vrot.slane %v790, 4
        %v792 = vadd.f32 %v790, %v791
        %v793 = vrot.slane %v792, 2
        %v794 = vadd.f32 %v792, %v793
        %v795 = vrot.slane %v794, 1
        %v796 = vadd.f32 %v794, %v795
        %v797 = vsel %vm425, %v708, 0.0
        %v798 = vadd.f32 %v706, %v797
        %v799 = vrot.slane %v798, 4
        %v800 = vadd.f32 %v798, %v799
        %v801 = vrot.slane %v800, 2
        %v802 = vadd.f32 %v800, %v801
        %v803 = vrot.slane %v802, 1
        %v804 = vadd.f32 %v802, %v803
        %v805 = vmax.f32 %v796, 1.0
        %v806 = vmax.f32 %v804, 1.0
        %v807 = vrcp.pop %v805
        %v808 = vrcp.pop %v806
        %v809 = vmul.f32 %v732, %v807
        %v810 = vmul.f32 %v740, %v808
        %v811 = vmul.f32 %v748, %v807
        %v812 = vmul.f32 %v756, %v808
        %v813 = vmul.f32 %v764, %v807
        %v814 = vmul.f32 %v772, %v808
        %v815 = vmul.f32 %v780, %v807
        %v816 = vmul.f32 %v788, %v808
        %v817 = vsub.f32 %v510, %v809
        %v818 = vsub.f32 %v511, %v810
        %v819 = vsub.f32 %v512, %v811
        %v820 = vsub.f32 %v513, %v812
        %v821 = vsub.f32 %v514, %v813
        %v822 = vsub.f32 %v515, %v814
        %v823 = vsub.f32 %v516, %v815
        %v824 = vsub.f32 %v517, %v816
        %v833 = vrot.slane %v819, 7
        %v834 = vsel %vm665, %v833, %v817
        %v835 = vrot.slane %v821, 6
        %v836 = vsel %vm668, %v835, %v834
        %v837 = vrot.slane %v823, 5
        %v838 = vsel %vm671, %v837, %v836
        %v839 = vrot.slane %v820, 7
        %v840 = vsel %vm665, %v839, %v818
        %v841 = vrot.slane %v822, 6
        %v842 = vsel %vm668, %v841, %v840
        %v843 = vrot.slane %v824, 5
        %v844 = vsel %vm671, %v843, %v842
        %v847 = vsel %vm684, %v838, 0.0
        %v848 = vsel %vm684, %v844, 0.0
        %849 = vst [vmem:[#allocation2 + $0x10] sm:$0xff] %v847
        %850 = vst [vmem:[#allocation2 + $0x18] sm:$0xff] %v848
        %vm851 = vcmp.ge.f32.partialorder %v361, 0.145
        %vm852 = vcmp.ge.f32.partialorder %v362, 0.145
        %vm853 = vcmp.ge.f32.partialorder %v363, 0.145
        %vm854 = vcmp.ge.f32.partialorder %v364, 0.145
        %vm855 = vcmp.lt.f32.partialorder %v361, 0.155
        %vm856 = vcmp.lt.f32.partialorder %v362, 0.155
        %vm857 = vcmp.lt.f32.partialorder %v363, 0.155
        %vm858 = vcmp.lt.f32.partialorder %v364, 0.155
        %vm859 = vmand %vm851, %vm855
        %vm860 = vmand %vm852, %vm856
        %vm861 = vmand %vm853, %vm857
        %vm862 = vmand %vm854, %vm858
        %v863 = vsel %vm859, 1, 0
        %v864 = vsel %vm860, 1, 0
        %v865 = vsel %vm861, 1, 0
        %v866 = vsel %vm862, 1, 0
        %v867 = vcvt.s32.f32 %v863
        %v868 = vcvt.s32.f32 %v864
        %v869 = vcvt.s32.f32 %v865
        %v870 = vcvt.s32.f32 %v866
        %v871 = vmul.f32 %v349, %v867
        %v872 = vmul.f32 %v350, %v868
        %v873 = vmul.f32 %v351, %v869
        %v874 = vmul.f32 %v352, %v870
        %v875 = vmul.f32 %v353, %v867
        %v876 = vmul.f32 %v354, %v868
        %v877 = vmul.f32 %v355, %v869
        %v878 = vmul.f32 %v356, %v870
        %v879 = vmul.f32 %v357, %v867
        %v880 = vmul.f32 %v358, %v868
        %v881 = vmul.f32 %v359, %v869
        %v882 = vmul.f32 %v360, %v870
        %v883 = vmul.f32 %v361, %v867
        %v884 = vmul.f32 %v362, %v868
        %v885 = vmul.f32 %v363, %v869
        %v886 = vmul.f32 %v364, %v870
        %v887 = vsel %vm425, %v873, 0.0
        %v888 = vadd.f32 %v871, %v887
        %v889 = vrot.slane %v888, 4
        %v890 = vadd.f32 %v888, %v889
        %v891 = vrot.slane %v890, 2
        %v892 = vadd.f32 %v890, %v891
        %v893 = vrot.slane %v892, 1
        %v894 = vadd.f32 %v892, %v893
        %v895 = vsel %vm425, %v874, 0.0
        %v896 = vadd.f32 %v872, %v895
        %v897 = vrot.slane %v896, 4
        %v898 = vadd.f32 %v896, %v897
        %v899 = vrot.slane %v898, 2
        %v900 = vadd.f32 %v898, %v899
        %v901 = vrot.slane %v900, 1
        %v902 = vadd.f32 %v900, %v901
        %v903 = vsel %vm425, %v877, 0.0
        %v904 = vadd.f32 %v875, %v903
        %v905 = vrot.slane %v904, 4
        %v906 = vadd.f32 %v904, %v905
        %v907 = vrot.slane %v906, 2
        %v908 = vadd.f32 %v906, %v907
        %v909 = vrot.slane %v908, 1
        %v910 = vadd.f32 %v908, %v909
        %v911 = vsel %vm425, %v878, 0.0
        %v912 = vadd.f32 %v876, %v911
        %v913 = vrot.slane %v912, 4
        %v914 = vadd.f32 %v912, %v913
        %v915 = vrot.slane %v914, 2
        %v916 = vadd.f32 %v914, %v915
        %v917 = vrot.slane %v916, 1
        %v918 = vadd.f32 %v916, %v917
        %v919 = vsel %vm425, %v881, 0.0
        %v920 = vadd.f32 %v879, %v919
        %v921 = vrot.slane %v920, 4
        %v922 = vadd.f32 %v920, %v921
        %v923 = vrot.slane %v922, 2
        %v924 = vadd.f32 %v922, %v923
        %v925 = vrot.slane %v924, 1
        %v926 = vadd.f32 %v924, %v925
        %v927 = vsel %vm425, %v882, 0.0
        %v928 = vadd.f32 %v880, %v927
        %v929 = vrot.slane %v928, 4
        %v930 = vadd.f32 %v928, %v929
        %v931 = vrot.slane %v930, 2
        %v932 = vadd.f32 %v930, %v931
        %v933 = vrot.slane %v932, 1
        %v934 = vadd.f32 %v932, %v933
        %v935 = vsel %vm425, %v885, 0.0
        %v936 = vadd.f32 %v883, %v935
        %v937 = vrot.slane %v936, 4
        %v938 = vadd.f32 %v936, %v937
        %v939 = vrot.slane %v938, 2
        %v940 = vadd.f32 %v938, %v939
        %v941 = vrot.slane %v940, 1
        %v942 = vadd.f32 %v940, %v941
        %v943 = vsel %vm425, %v886, 0.0
        %v944 = vadd.f32 %v884, %v943
        %v945 = vrot.slane %v944, 4
        %v946 = vadd.f32 %v944, %v945
        %v947 = vrot.slane %v946, 2
        %v948 = vadd.f32 %v946, %v947
        %v949 = vrot.slane %v948, 1
        %v950 = vadd.f32 %v948, %v949
        %v951 = vsel %vm425, %v869, 0.0
        %v952 = vadd.f32 %v867, %v951
        %v953 = vrot.slane %v952, 4
        %v954 = vadd.f32 %v952, %v953
        %v955 = vrot.slane %v954, 2
        %v956 = vadd.f32 %v954, %v955
        %v957 = vrot.slane %v956, 1
        %v958 = vadd.f32 %v956, %v957
        %v959 = vsel %vm425, %v870, 0.0
        %v960 = vadd.f32 %v868, %v959
        %v961 = vrot.slane %v960, 4
        %v962 = vadd.f32 %v960, %v961
        %v963 = vrot.slane %v962, 2
        %v964 = vadd.f32 %v962, %v963
        %v965 = vrot.slane %v964, 1
        %v966 = vadd.f32 %v964, %v965
        %v967 = vmax.f32 %v958, 1.0
        %v968 = vmax.f32 %v966, 1.0
        %v969 = vrcp.pop %v967
        %v970 = vrcp.pop %v968
        %v971 = vmul.f32 %v894, %v969
        %v972 = vmul.f32 %v902, %v970
        %v973 = vmul.f32 %v910, %v969
        %v974 = vmul.f32 %v918, %v970
        %v975 = vmul.f32 %v926, %v969
        %v976 = vmul.f32 %v934, %v970
        %v977 = vmul.f32 %v942, %v969
        %v978 = vmul.f32 %v950, %v970
        %v979 = vsub.f32 %v510, %v971
        %v980 = vsub.f32 %v511, %v972
        %v981 = vsub.f32 %v512, %v973
        %v982 = vsub.f32 %v513, %v974
        %v983 = vsub.f32 %v514, %v975
        %v984 = vsub.f32 %v515, %v976
        %v985 = vsub.f32 %v516, %v977
        %v986 = vsub.f32 %v517, %v978
        %v995 = vrot.slane %v981, 7
        %v996 = vsel %vm665, %v995, %v979
        %v997 = vrot.slane %v983, 6
        %v998 = vsel %vm668, %v997, %v996
        %v999 = vrot.slane %v985, 5
        %v1000 = vsel %vm671, %v999, %v998
        %v1001 = vrot.slane %v982, 7
        %v1002 = vsel %vm665, %v1001, %v980
        %v1003 = vrot.slane %v984, 6
        %v1004 = vsel %vm668, %v1003, %v1002
        %v1005 = vrot.slane %v986, 5
        %v1006 = vsel %vm671, %v1005, %v1004
        %v1009 = vsel %vm684, %v1000, 0.0
        %v1010 = vsel %vm684, %v1006, 0.0
        %1011 = vst [vmem:[#allocation2 + $0x20] sm:$0xff] %v1009
        %1012 = vst [vmem:[#allocation2 + $0x28] sm:$0xff] %v1010
        %vm1013 = vcmp.ge.f32.partialorder %v361, 0.195
        %vm1014 = vcmp.ge.f32.partialorder %v362, 0.195
        %vm1015 = vcmp.ge.f32.partialorder %v363, 0.195
        %vm1016 = vcmp.ge.f32.partialorder %v364, 0.195
        %vm1017 = vcmp.lt.f32.partialorder %v361, 0.205
        %vm1018 = vcmp.lt.f32.partialorder %v362, 0.205
        %vm1019 = vcmp.lt.f32.partialorder %v363, 0.205
        %vm1020 = vcmp.lt.f32.partialorder %v364, 0.205
        %vm1021 = vmand %vm1013, %vm1017
        %vm1022 = vmand %vm1014, %vm1018
        %vm1023 = vmand %vm1015, %vm1019
        %vm1024 = vmand %vm1016, %vm1020
        %v1025 = vsel %vm1021, 1, 0
        %v1026 = vsel %vm1022, 1, 0
        %v1027 = vsel %vm1023, 1, 0
        %v1028 = vsel %vm1024, 1, 0
        %v1029 = vcvt.s32.f32 %v1025
        %v1030 = vcvt.s32.f32 %v1026
        %v1031 = vcvt.s32.f32 %v1027
        %v1032 = vcvt.s32.f32 %v1028
        %v1033 = vmul.f32 %v349, %v1029
        %v1034 = vmul.f32 %v350, %v1030
        %v1035 = vmul.f32 %v351, %v1031
        %v1036 = vmul.f32 %v352, %v1032
        %v1037 = vmul.f32 %v353, %v1029
        %v1038 = vmul.f32 %v354, %v1030
        %v1039 = vmul.f32 %v355, %v1031
        %v1040 = vmul.f32 %v356, %v1032
        %v1041 = vmul.f32 %v357, %v1029
        %v1042 = vmul.f32 %v358, %v1030
        %v1043 = vmul.f32 %v359, %v1031
        %v1044 = vmul.f32 %v360, %v1032
        %v1045 = vmul.f32 %v361, %v1029
        %v1046 = vmul.f32 %v362, %v1030
        %v1047 = vmul.f32 %v363, %v1031
        %v1048 = vmul.f32 %v364, %v1032
        %v1049 = vsel %vm425, %v1035, 0.0
        %v1050 = vadd.f32 %v1033, %v1049
        %v1051 = vrot.slane %v1050, 4
        %v1052 = vadd.f32 %v1050, %v1051
        %v1053 = vrot.slane %v1052, 2
        %v1054 = vadd.f32 %v1052, %v1053
        %v1055 = vrot.slane %v1054, 1
        %v1056 = vadd.f32 %v1054, %v1055
        %v1057 = vsel %vm425, %v1036, 0.0
        %v1058 = vadd.f32 %v1034, %v1057
        %v1059 = vrot.slane %v1058, 4
        %v1060 = vadd.f32 %v1058, %v1059
        %v1061 = vrot.slane %v1060, 2
        %v1062 = vadd.f32 %v1060, %v1061
        %v1063 = vrot.slane %v1062, 1
        %v1064 = vadd.f32 %v1062, %v1063
        %v1065 = vsel %vm425, %v1039, 0.0
        %v1066 = vadd.f32 %v1037, %v1065
        %v1067 = vrot.slane %v1066, 4
        %v1068 = vadd.f32 %v1066, %v1067
        %v1069 = vrot.slane %v1068, 2
        %v1070 = vadd.f32 %v1068, %v1069
        %v1071 = vrot.slane %v1070, 1
        %v1072 = vadd.f32 %v1070, %v1071
        %v1073 = vsel %vm425, %v1040, 0.0
        %v1074 = vadd.f32 %v1038, %v1073
        %v1075 = vrot.slane %v1074, 4
        %v1076 = vadd.f32 %v1074, %v1075
        %v1077 = vrot.slane %v1076, 2
        %v1078 = vadd.f32 %v1076, %v1077
        %v1079 = vrot.slane %v1078, 1
        %v1080 = vadd.f32 %v1078, %v1079
        %v1081 = vsel %vm425, %v1043, 0.0
        %v1082 = vadd.f32 %v1041, %v1081
        %v1083 = vrot.slane %v1082, 4
        %v1084 = vadd.f32 %v1082, %v1083
        %v1085 = vrot.slane %v1084, 2
        %v1086 = vadd.f32 %v1084, %v1085
        %v1087 = vrot.slane %v1086, 1
        %v1088 = vadd.f32 %v1086, %v1087
        %v1089 = vsel %vm425, %v1044, 0.0
        %v1090 = vadd.f32 %v1042, %v1089
        %v1091 = vrot.slane %v1090, 4
        %v1092 = vadd.f32 %v1090, %v1091
        %v1093 = vrot.slane %v1092, 2
        %v1094 = vadd.f32 %v1092, %v1093
        %v1095 = vrot.slane %v1094, 1
        %v1096 = vadd.f32 %v1094, %v1095
        %v1097 = vsel %vm425, %v1047, 0.0
        %v1098 = vadd.f32 %v1045, %v1097
        %v1099 = vrot.slane %v1098, 4
        %v1100 = vadd.f32 %v1098, %v1099
        %v1101 = vrot.slane %v1100, 2
        %v1102 = vadd.f32 %v1100, %v1101
        %v1103 = vrot.slane %v1102, 1
        %v1104 = vadd.f32 %v1102, %v1103
        %v1105 = vsel %vm425, %v1048, 0.0
        %v1106 = vadd.f32 %v1046, %v1105
        %v1107 = vrot.slane %v1106, 4
        %v1108 = vadd.f32 %v1106, %v1107
        %v1109 = vrot.slane %v1108, 2
        %v1110 = vadd.f32 %v1108, %v1109
        %v1111 = vrot.slane %v1110, 1
        %v1112 = vadd.f32 %v1110, %v1111
        %v1113 = vsel %vm425, %v1031, 0.0
        %v1114 = vadd.f32 %v1029, %v1113
        %v1115 = vrot.slane %v1114, 4
        %v1116 = vadd.f32 %v1114, %v1115
        %v1117 = vrot.slane %v1116, 2
        %v1118 = vadd.f32 %v1116, %v1117
        %v1119 = vrot.slane %v1118, 1
        %v1120 = vadd.f32 %v1118, %v1119
        %v1121 = vsel %vm425, %v1032, 0.0
        %v1122 = vadd.f32 %v1030, %v1121
        %v1123 = vrot.slane %v1122, 4
        %v1124 = vadd.f32 %v1122, %v1123
        %v1125 = vrot.slane %v1124, 2
        %v1126 = vadd.f32 %v1124, %v1125
        %v1127 = vrot.slane %v1126, 1
        %v1128 = vadd.f32 %v1126, %v1127
        %v1129 = vmax.f32 %v1120, 1.0
        %v1130 = vmax.f32 %v1128, 1.0
        %v1131 = vrcp.pop %v1129
        %v1132 = vrcp.pop %v1130
        %v1133 = vmul.f32 %v1056, %v1131
        %v1134 = vmul.f32 %v1064, %v1132
        %v1135 = vmul.f32 %v1072, %v1131
        %v1136 = vmul.f32 %v1080, %v1132
        %v1137 = vmul.f32 %v1088, %v1131
        %v1138 = vmul.f32 %v1096, %v1132
        %v1139 = vmul.f32 %v1104, %v1131
        %v1140 = vmul.f32 %v1112, %v1132
        %v1141 = vsub.f32 %v510, %v1133
        %v1142 = vsub.f32 %v511, %v1134
        %v1143 = vsub.f32 %v512, %v1135
        %v1144 = vsub.f32 %v513, %v1136
        %v1145 = vsub.f32 %v514, %v1137
        %v1146 = vsub.f32 %v515, %v1138
        %v1147 = vsub.f32 %v516, %v1139
        %v1148 = vsub.f32 %v517, %v1140
        %v1157 = vrot.slane %v1143, 7
        %v1158 = vsel %vm665, %v1157, %v1141
        %v1159 = vrot.slane %v1145, 6
        %v1160 = vsel %vm668, %v1159, %v1158
        %v1161 = vrot.slane %v1147, 5
        %v1162 = vsel %vm671, %v1161, %v1160
        %v1163 = vrot.slane %v1144, 7
        %v1164 = vsel %vm665, %v1163, %v1142
        %v1165 = vrot.slane %v1146, 6
        %v1166 = vsel %vm668, %v1165, %v1164
        %v1167 = vrot.slane %v1148, 5
        %v1168 = vsel %vm671, %v1167, %v1166
        %v1171 = vsel %vm684, %v1162, 0.0
        %v1172 = vsel %vm684, %v1168, 0.0
        %1173 = vst [vmem:[#allocation2 + $0x30] sm:$0xff] %v1171
        %1174 = vst [vmem:[#allocation2 + $0x38] sm:$0xff] %v1172
        %vm1175 = vcmp.ge.f32.partialorder %v361, 0.245
        %vm1176 = vcmp.ge.f32.partialorder %v362, 0.245
        %vm1177 = vcmp.ge.f32.partialorder %v363, 0.245
        %vm1178 = vcmp.ge.f32.partialorder %v364, 0.245
        %vm1179 = vcmp.lt.f32.partialorder %v361, 0.255
        %vm1180 = vcmp.lt.f32.partialorder %v362, 0.255
        %vm1181 = vcmp.lt.f32.partialorder %v363, 0.255
        %vm1182 = vcmp.lt.f32.partialorder %v364, 0.255
        %vm1183 = vmand %vm1175, %vm1179
        %vm1184 = vmand %vm1176, %vm1180
        %vm1185 = vmand %vm1177, %vm1181
        %vm1186 = vmand %vm1178, %vm1182
        %v1187 = vsel %vm1183, 1, 0
        %v1188 = vsel %vm1184, 1, 0
        %v1189 = vsel %vm1185, 1, 0
        %v1190 = vsel %vm1186, 1, 0
        %v1191 = vcvt.s32.f32 %v1187
        %v1192 = vcvt.s32.f32 %v1188
        %v1193 = vcvt.s32.f32 %v1189
        %v1194 = vcvt.s32.f32 %v1190
        %v1195 = vmul.f32 %v349, %v1191
        %v1196 = vmul.f32 %v350, %v1192
        %v1197 = vmul.f32 %v351, %v1193
        %v1198 = vmul.f32 %v352, %v1194
        %v1199 = vmul.f32 %v353, %v1191
        %v1200 = vmul.f32 %v354, %v1192
        %v1201 = vmul.f32 %v355, %v1193
        %v1202 = vmul.f32 %v356, %v1194
        %v1203 = vmul.f32 %v357, %v1191
        %v1204 = vmul.f32 %v358, %v1192
        %v1205 = vmul.f32 %v359, %v1193
        %v1206 = vmul.f32 %v360, %v1194
        %v1207 = vmul.f32 %v361, %v1191
        %v1208 = vmul.f32 %v362, %v1192
        %v1209 = vmul.f32 %v363, %v1193
        %v1210 = vmul.f32 %v364, %v1194
        %v1211 = vsel %vm425, %v1197, 0.0
        %v1212 = vadd.f32 %v1195, %v1211
        %v1213 = vrot.slane %v1212, 4
        %v1214 = vadd.f32 %v1212, %v1213
        %v1215 = vrot.slane %v1214, 2
        %v1216 = vadd.f32 %v1214, %v1215
        %v1217 = vrot.slane %v1216, 1
        %v1218 = vadd.f32 %v1216, %v1217
        %v1219 = vsel %vm425, %v1198, 0.0
        %v1220 = vadd.f32 %v1196, %v1219
        %v1221 = vrot.slane %v1220, 4
        %v1222 = vadd.f32 %v1220, %v1221
        %v1223 = vrot.slane %v1222, 2
        %v1224 = vadd.f32 %v1222, %v1223
        %v1225 = vrot.slane %v1224, 1
        %v1226 = vadd.f32 %v1224, %v1225
        %v1227 = vsel %vm425, %v1201, 0.0
        %v1228 = vadd.f32 %v1199, %v1227
        %v1229 = vrot.slane %v1228, 4
        %v1230 = vadd.f32 %v1228, %v1229
        %v1231 = vrot.slane %v1230, 2
        %v1232 = vadd.f32 %v1230, %v1231
        %v1233 = vrot.slane %v1232, 1
        %v1234 = vadd.f32 %v1232, %v1233
        %v1235 = vsel %vm425, %v1202, 0.0
        %v1236 = vadd.f32 %v1200, %v1235
        %v1237 = vrot.slane %v1236, 4
        %v1238 = vadd.f32 %v1236, %v1237
        %v1239 = vrot.slane %v1238, 2
        %v1240 = vadd.f32 %v1238, %v1239
        %v1241 = vrot.slane %v1240, 1
        %v1242 = vadd.f32 %v1240, %v1241
        %v1243 = vsel %vm425, %v1205, 0.0
        %v1244 = vadd.f32 %v1203, %v1243
        %v1245 = vrot.slane %v1244, 4
        %v1246 = vadd.f32 %v1244, %v1245
        %v1247 = vrot.slane %v1246, 2
        %v1248 = vadd.f32 %v1246, %v1247
        %v1249 = vrot.slane %v1248, 1
        %v1250 = vadd.f32 %v1248, %v1249
        %v1251 = vsel %vm425, %v1206, 0.0
        %v1252 = vadd.f32 %v1204, %v1251
        %v1253 = vrot.slane %v1252, 4
        %v1254 = vadd.f32 %v1252, %v1253
        %v1255 = vrot.slane %v1254, 2
        %v1256 = vadd.f32 %v1254, %v1255
        %v1257 = vrot.slane %v1256, 1
        %v1258 = vadd.f32 %v1256, %v1257
        %v1259 = vsel %vm425, %v1209, 0.0
        %v1260 = vadd.f32 %v1207, %v1259
        %v1261 = vrot.slane %v1260, 4
        %v1262 = vadd.f32 %v1260, %v1261
        %v1263 = vrot.slane %v1262, 2
        %v1264 = vadd.f32 %v1262, %v1263
        %v1265 = vrot.slane %v1264, 1
        %v1266 = vadd.f32 %v1264, %v1265
        %v1267 = vsel %vm425, %v1210, 0.0
        %v1268 = vadd.f32 %v1208, %v1267
        %v1269 = vrot.slane %v1268, 4
        %v1270 = vadd.f32 %v1268, %v1269
        %v1271 = vrot.slane %v1270, 2
        %v1272 = vadd.f32 %v1270, %v1271
        %v1273 = vrot.slane %v1272, 1
        %v1274 = vadd.f32 %v1272, %v1273
        %v1275 = vsel %vm425, %v1193, 0.0
        %v1276 = vadd.f32 %v1191, %v1275
        %v1277 = vrot.slane %v1276, 4
        %v1278 = vadd.f32 %v1276, %v1277
        %v1279 = vrot.slane %v1278, 2
        %v1280 = vadd.f32 %v1278, %v1279
        %v1281 = vrot.slane %v1280, 1
        %v1282 = vadd.f32 %v1280, %v1281
        %v1283 = vsel %vm425, %v1194, 0.0
        %v1284 = vadd.f32 %v1192, %v1283
        %v1285 = vrot.slane %v1284, 4
        %v1286 = vadd.f32 %v1284, %v1285
        %v1287 = vrot.slane %v1286, 2
        %v1288 = vadd.f32 %v1286, %v1287
        %v1289 = vrot.slane %v1288, 1
        %v1290 = vadd.f32 %v1288, %v1289
        %v1291 = vmax.f32 %v1282, 1.0
        %v1292 = vmax.f32 %v1290, 1.0
        %v1293 = vrcp.pop %v1291
        %v1294 = vrcp.pop %v1292
        %v1295 = vmul.f32 %v1218, %v1293
        %v1296 = vmul.f32 %v1226, %v1294
        %v1297 = vmul.f32 %v1234, %v1293
        %v1298 = vmul.f32 %v1242, %v1294
        %v1299 = vmul.f32 %v1250, %v1293
        %v1300 = vmul.f32 %v1258, %v1294
        %v1301 = vmul.f32 %v1266, %v1293
        %v1302 = vmul.f32 %v1274, %v1294
        %v1303 = vsub.f32 %v510, %v1295
        %v1304 = vsub.f32 %v511, %v1296
        %v1305 = vsub.f32 %v512, %v1297
        %v1306 = vsub.f32 %v513, %v1298
        %v1307 = vsub.f32 %v514, %v1299
        %v1308 = vsub.f32 %v515, %v1300
        %v1309 = vsub.f32 %v516, %v1301
        %v1310 = vsub.f32 %v517, %v1302
        %v1319 = vrot.slane %v1305, 7
        %v1320 = vsel %vm665, %v1319, %v1303
        %v1321 = vrot.slane %v1307, 6
        %v1322 = vsel %vm668, %v1321, %v1320
        %v1323 = vrot.slane %v1309, 5
        %v1324 = vsel %vm671, %v1323, %v1322
        %v1325 = vrot.slane %v1306, 7
        %v1326 = vsel %vm665, %v1325, %v1304
        %v1327 = vrot.slane %v1308, 6
        %v1328 = vsel %vm668, %v1327, %v1326
        %v1329 = vrot.slane %v1310, 5
        %v1330 = vsel %vm671, %v1329, %v1328
        %v1333 = vsel %vm684, %v1324, 0.0
        %v1334 = vsel %vm684, %v1330, 0.0
        %1335 = vst [vmem:[#allocation2 + $0x40] sm:$0xff] %v1333
        %1336 = vst [vmem:[#allocation2 + $0x48] sm:$0xff] %v1334
        %vm1337 = vcmp.ge.f32.partialorder %v361, 0.295
        %vm1338 = vcmp.ge.f32.partialorder %v362, 0.295
        %vm1339 = vcmp.ge.f32.partialorder %v363, 0.295
        %vm1340 = vcmp.ge.f32.partialorder %v364, 0.295
        %vm1341 = vcmp.lt.f32.partialorder %v361, 0.305
        %vm1342 = vcmp.lt.f32.partialorder %v362, 0.305
        %vm1343 = vcmp.lt.f32.partialorder %v363, 0.305
        %vm1344 = vcmp.lt.f32.partialorder %v364, 0.305
        %vm1345 = vmand %vm1337, %vm1341
        %vm1346 = vmand %vm1338, %vm1342
        %vm1347 = vmand %vm1339, %vm1343
        %vm1348 = vmand %vm1340, %vm1344
        %v1349 = vsel %vm1345, 1, 0
        %v1350 = vsel %vm1346, 1, 0
        %v1351 = vsel %vm1347, 1, 0
        %v1352 = vsel %vm1348, 1, 0
        %v1353 = vcvt.s32.f32 %v1349
        %v1354 = vcvt.s32.f32 %v1350
        %v1355 = vcvt.s32.f32 %v1351
        %v1356 = vcvt.s32.f32 %v1352
        %v1357 = vmul.f32 %v349, %v1353
        %v1358 = vmul.f32 %v350, %v1354
        %v1359 = vmul.f32 %v351, %v1355
        %v1360 = vmul.f32 %v352, %v1356
        %v1361 = vmul.f32 %v353, %v1353
        %v1362 = vmul.f32 %v354, %v1354
        %v1363 = vmul.f32 %v355, %v1355
        %v1364 = vmul.f32 %v356, %v1356
        %v1365 = vmul.f32 %v357, %v1353
        %v1366 = vmul.f32 %v358, %v1354
        %v1367 = vmul.f32 %v359, %v1355
        %v1368 = vmul.f32 %v360, %v1356
        %v1369 = vmul.f32 %v361, %v1353
        %v1370 = vmul.f32 %v362, %v1354
        %v1371 = vmul.f32 %v363, %v1355
        %v1372 = vmul.f32 %v364, %v1356
        %v1373 = vsel %vm425, %v1359, 0.0
        %v1374 = vadd.f32 %v1357, %v1373
        %v1375 = vrot.slane %v1374, 4
        %v1376 = vadd.f32 %v1374, %v1375
        %v1377 = vrot.slane %v1376, 2
        %v1378 = vadd.f32 %v1376, %v1377
        %v1379 = vrot.slane %v1378, 1
        %v1380 = vadd.f32 %v1378, %v1379
        %v1381 = vsel %vm425, %v1360, 0.0
        %v1382 = vadd.f32 %v1358, %v1381
        %v1383 = vrot.slane %v1382, 4
        %v1384 = vadd.f32 %v1382, %v1383
        %v1385 = vrot.slane %v1384, 2
        %v1386 = vadd.f32 %v1384, %v1385
        %v1387 = vrot.slane %v1386, 1
        %v1388 = vadd.f32 %v1386, %v1387
        %v1389 = vsel %vm425, %v1363, 0.0
        %v1390 = vadd.f32 %v1361, %v1389
        %v1391 = vrot.slane %v1390, 4
        %v1392 = vadd.f32 %v1390, %v1391
        %v1393 = vrot.slane %v1392, 2
        %v1394 = vadd.f32 %v1392, %v1393
        %v1395 = vrot.slane %v1394, 1
        %v1396 = vadd.f32 %v1394, %v1395
        %v1397 = vsel %vm425, %v1364, 0.0
        %v1398 = vadd.f32 %v1362, %v1397
        %v1399 = vrot.slane %v1398, 4
        %v1400 = vadd.f32 %v1398, %v1399
        %v1401 = vrot.slane %v1400, 2
        %v1402 = vadd.f32 %v1400, %v1401
        %v1403 = vrot.slane %v1402, 1
        %v1404 = vadd.f32 %v1402, %v1403
        %v1405 = vsel %vm425, %v1367, 0.0
        %v1406 = vadd.f32 %v1365, %v1405
        %v1407 = vrot.slane %v1406, 4
        %v1408 = vadd.f32 %v1406, %v1407
        %v1409 = vrot.slane %v1408, 2
        %v1410 = vadd.f32 %v1408, %v1409
        %v1411 = vrot.slane %v1410, 1
        %v1412 = vadd.f32 %v1410, %v1411
        %v1413 = vsel %vm425, %v1368, 0.0
        %v1414 = vadd.f32 %v1366, %v1413
        %v1415 = vrot.slane %v1414, 4
        %v1416 = vadd.f32 %v1414, %v1415
        %v1417 = vrot.slane %v1416, 2
        %v1418 = vadd.f32 %v1416, %v1417
        %v1419 = vrot.slane %v1418, 1
        %v1420 = vadd.f32 %v1418, %v1419
        %v1421 = vsel %vm425, %v1371, 0.0
        %v1422 = vadd.f32 %v1369, %v1421
        %v1423 = vrot.slane %v1422, 4
        %v1424 = vadd.f32 %v1422, %v1423
        %v1425 = vrot.slane %v1424, 2
        %v1426 = vadd.f32 %v1424, %v1425
        %v1427 = vrot.slane %v1426, 1
        %v1428 = vadd.f32 %v1426, %v1427
        %v1429 = vsel %vm425, %v1372, 0.0
        %v1430 = vadd.f32 %v1370, %v1429
        %v1431 = vrot.slane %v1430, 4
        %v1432 = vadd.f32 %v1430, %v1431
        %v1433 = vrot.slane %v1432, 2
        %v1434 = vadd.f32 %v1432, %v1433
        %v1435 = vrot.slane %v1434, 1
        %v1436 = vadd.f32 %v1434, %v1435
        %v1437 = vsel %vm425, %v1355, 0.0
        %v1438 = vadd.f32 %v1353, %v1437
        %v1439 = vrot.slane %v1438, 4
        %v1440 = vadd.f32 %v1438, %v1439
        %v1441 = vrot.slane %v1440, 2
        %v1442 = vadd.f32 %v1440, %v1441
        %v1443 = vrot.slane %v1442, 1
        %v1444 = vadd.f32 %v1442, %v1443
        %v1445 = vsel %vm425, %v1356, 0.0
        %v1446 = vadd.f32 %v1354, %v1445
        %v1447 = vrot.slane %v1446, 4
        %v1448 = vadd.f32 %v1446, %v1447
        %v1449 = vrot.slane %v1448, 2
        %v1450 = vadd.f32 %v1448, %v1449
        %v1451 = vrot.slane %v1450, 1
        %v1452 = vadd.f32 %v1450, %v1451
        %v1453 = vmax.f32 %v1444, 1.0
        %v1454 = vmax.f32 %v1452, 1.0
        %v1455 = vrcp.pop %v1453
        %v1456 = vrcp.pop %v1454
        %v1457 = vmul.f32 %v1380, %v1455
        %v1458 = vmul.f32 %v1388, %v1456
        %v1459 = vmul.f32 %v1396, %v1455
        %v1460 = vmul.f32 %v1404, %v1456
        %v1461 = vmul.f32 %v1412, %v1455
        %v1462 = vmul.f32 %v1420, %v1456
        %v1463 = vmul.f32 %v1428, %v1455
        %v1464 = vmul.f32 %v1436, %v1456
        %v1465 = vsub.f32 %v510, %v1457
        %v1466 = vsub.f32 %v511, %v1458
        %v1467 = vsub.f32 %v512, %v1459
        %v1468 = vsub.f32 %v513, %v1460
        %v1469 = vsub.f32 %v514, %v1461
        %v1470 = vsub.f32 %v515, %v1462
        %v1471 = vsub.f32 %v516, %v1463
        %v1472 = vsub.f32 %v517, %v1464
        %v1481 = vrot.slane %v1467, 7
        %v1482 = vsel %vm665, %v1481, %v1465
        %v1483 = vrot.slane %v1469, 6
        %v1484 = vsel %vm668, %v1483, %v1482
        %v1485 = vrot.slane %v1471, 5
        %v1486 = vsel %vm671, %v1485, %v1484
        %v1487 = vrot.slane %v1468, 7
        %v1488 = vsel %vm665, %v1487, %v1466
        %v1489 = vrot.slane %v1470, 6
        %v1490 = vsel %vm668, %v1489, %v1488
        %v1491 = vrot.slane %v1472, 5
        %v1492 = vsel %vm671, %v1491, %v1490
        %v1495 = vsel %vm684, %v1486, 0.0
        %v1496 = vsel %vm684, %v1492, 0.0
        %1497 = vst [vmem:[#allocation2 + $0x50] sm:$0xff] %v1495
        %1498 = vst [vmem:[#allocation2 + $0x58] sm:$0xff] %v1496
        %vm1499 = vcmp.ge.f32.partialorder %v361, 0.345
        %vm1500 = vcmp.ge.f32.partialorder %v362, 0.345
        %vm1501 = vcmp.ge.f32.partialorder %v363, 0.345
        %vm1502 = vcmp.ge.f32.partialorder %v364, 0.345
        %vm1503 = vcmp.lt.f32.partialorder %v361, 0.355
        %vm1504 = vcmp.lt.f32.partialorder %v362, 0.355
        %vm1505 = vcmp.lt.f32.partialorder %v363, 0.355
        %vm1506 = vcmp.lt.f32.partialorder %v364, 0.355
        %vm1507 = vmand %vm1499, %vm1503
        %vm1508 = vmand %vm1500, %vm1504
        %vm1509 = vmand %vm1501, %vm1505
        %vm1510 = vmand %vm1502, %vm1506
        %v1511 = vsel %vm1507, 1, 0
        %v1512 = vsel %vm1508, 1, 0
        %v1513 = vsel %vm1509, 1, 0
        %v1514 = vsel %vm1510, 1, 0
        %v1515 = vcvt.s32.f32 %v1511
        %v1516 = vcvt.s32.f32 %v1512
        %v1517 = vcvt.s32.f32 %v1513
        %v1518 = vcvt.s32.f32 %v1514
        %v1519 = vmul.f32 %v349, %v1515
        %v1520 = vmul.f32 %v350, %v1516
        %v1521 = vmul.f32 %v351, %v1517
        %v1522 = vmul.f32 %v352, %v1518
        %v1523 = vmul.f32 %v353, %v1515
        %v1524 = vmul.f32 %v354, %v1516
        %v1525 = vmul.f32 %v355, %v1517
        %v1526 = vmul.f32 %v356, %v1518
        %v1527 = vmul.f32 %v357, %v1515
        %v1528 = vmul.f32 %v358, %v1516
        %v1529 = vmul.f32 %v359, %v1517
        %v1530 = vmul.f32 %v360, %v1518
        %v1531 = vmul.f32 %v361, %v1515
        %v1532 = vmul.f32 %v362, %v1516
        %v1533 = vmul.f32 %v363, %v1517
        %v1534 = vmul.f32 %v364, %v1518
        %v1535 = vsel %vm425, %v1521, 0.0
        %v1536 = vadd.f32 %v1519, %v1535
        %v1537 = vrot.slane %v1536, 4
        %v1538 = vadd.f32 %v1536, %v1537
        %v1539 = vrot.slane %v1538, 2
        %v1540 = vadd.f32 %v1538, %v1539
        %v1541 = vrot.slane %v1540, 1
        %v1542 = vadd.f32 %v1540, %v1541
        %v1543 = vsel %vm425, %v1522, 0.0
        %v1544 = vadd.f32 %v1520, %v1543
        %v1545 = vrot.slane %v1544, 4
        %v1546 = vadd.f32 %v1544, %v1545
        %v1547 = vrot.slane %v1546, 2
        %v1548 = vadd.f32 %v1546, %v1547
        %v1549 = vrot.slane %v1548, 1
        %v1550 = vadd.f32 %v1548, %v1549
        %v1551 = vsel %vm425, %v1525, 0.0
        %v1552 = vadd.f32 %v1523, %v1551
        %v1553 = vrot.slane %v1552, 4
        %v1554 = vadd.f32 %v1552, %v1553
        %v1555 = vrot.slane %v1554, 2
        %v1556 = vadd.f32 %v1554, %v1555
        %v1557 = vrot.slane %v1556, 1
        %v1558 = vadd.f32 %v1556, %v1557
        %v1559 = vsel %vm425, %v1526, 0.0
        %v1560 = vadd.f32 %v1524, %v1559
        %v1561 = vrot.slane %v1560, 4
        %v1562 = vadd.f32 %v1560, %v1561
        %v1563 = vrot.slane %v1562, 2
        %v1564 = vadd.f32 %v1562, %v1563
        %v1565 = vrot.slane %v1564, 1
        %v1566 = vadd.f32 %v1564, %v1565
        %v1567 = vsel %vm425, %v1529, 0.0
        %v1568 = vadd.f32 %v1527, %v1567
        %v1569 = vrot.slane %v1568, 4
        %v1570 = vadd.f32 %v1568, %v1569
        %v1571 = vrot.slane %v1570, 2
        %v1572 = vadd.f32 %v1570, %v1571
        %v1573 = vrot.slane %v1572, 1
        %v1574 = vadd.f32 %v1572, %v1573
        %v1575 = vsel %vm425, %v1530, 0.0
        %v1576 = vadd.f32 %v1528, %v1575
        %v1577 = vrot.slane %v1576, 4
        %v1578 = vadd.f32 %v1576, %v1577
        %v1579 = vrot.slane %v1578, 2
        %v1580 = vadd.f32 %v1578, %v1579
        %v1581 = vrot.slane %v1580, 1
        %v1582 = vadd.f32 %v1580, %v1581
        %v1583 = vsel %vm425, %v1533, 0.0
        %v1584 = vadd.f32 %v1531, %v1583
        %v1585 = vrot.slane %v1584, 4
        %v1586 = vadd.f32 %v1584, %v1585
        %v1587 = vrot.slane %v1586, 2
        %v1588 = vadd.f32 %v1586, %v1587
        %v1589 = vrot.slane %v1588, 1
        %v1590 = vadd.f32 %v1588, %v1589
        %v1591 = vsel %vm425, %v1534, 0.0
        %v1592 = vadd.f32 %v1532, %v1591
        %v1593 = vrot.slane %v1592, 4
        %v1594 = vadd.f32 %v1592, %v1593
        %v1595 = vrot.slane %v1594, 2
        %v1596 = vadd.f32 %v1594, %v1595
        %v1597 = vrot.slane %v1596, 1
        %v1598 = vadd.f32 %v1596, %v1597
        %v1599 = vsel %vm425, %v1517, 0.0
        %v1600 = vadd.f32 %v1515, %v1599
        %v1601 = vrot.slane %v1600, 4
        %v1602 = vadd.f32 %v1600, %v1601
        %v1603 = vrot.slane %v1602, 2
        %v1604 = vadd.f32 %v1602, %v1603
        %v1605 = vrot.slane %v1604, 1
        %v1606 = vadd.f32 %v1604, %v1605
        %v1607 = vsel %vm425, %v1518, 0.0
        %v1608 = vadd.f32 %v1516, %v1607
        %v1609 = vrot.slane %v1608, 4
        %v1610 = vadd.f32 %v1608, %v1609
        %v1611 = vrot.slane %v1610, 2
        %v1612 = vadd.f32 %v1610, %v1611
        %v1613 = vrot.slane %v1612, 1
        %v1614 = vadd.f32 %v1612, %v1613
        %v1615 = vmax.f32 %v1606, 1.0
        %v1616 = vmax.f32 %v1614, 1.0
        %v1617 = vrcp.pop %v1615
        %v1618 = vrcp.pop %v1616
        %v1619 = vmul.f32 %v1542, %v1617
        %v1620 = vmul.f32 %v1550, %v1618
        %v1621 = vmul.f32 %v1558, %v1617
        %v1622 = vmul.f32 %v1566, %v1618
        %v1623 = vmul.f32 %v1574, %v1617
        %v1624 = vmul.f32 %v1582, %v1618
        %v1625 = vmul.f32 %v1590, %v1617
        %v1626 = vmul.f32 %v1598, %v1618
        %v1627 = vsub.f32 %v510, %v1619
        %v1628 = vsub.f32 %v511, %v1620
        %v1629 = vsub.f32 %v512, %v1621
        %v1630 = vsub.f32 %v513, %v1622
        %v1631 = vsub.f32 %v514, %v1623
        %v1632 = vsub.f32 %v515, %v1624
        %v1633 = vsub.f32 %v516, %v1625
        %v1634 = vsub.f32 %v517, %v1626
        %v1643 = vrot.slane %v1629, 7
        %v1644 = vsel %vm665, %v1643, %v1627
        %v1645 = vrot.slane %v1631, 6
        %v1646 = vsel %vm668, %v1645, %v1644
        %v1647 = vrot.slane %v1633, 5
        %v1648 = vsel %vm671, %v1647, %v1646
        %v1649 = vrot.slane %v1630, 7
        %v1650 = vsel %vm665, %v1649, %v1628
        %v1651 = vrot.slane %v1632, 6
        %v1652 = vsel %vm668, %v1651, %v1650
        %v1653 = vrot.slane %v1634, 5
        %v1654 = vsel %vm671, %v1653, %v1652
        %v1657 = vsel %vm684, %v1648, 0.0
        %v1658 = vsel %vm684, %v1654, 0.0
        %1659 = vst [vmem:[#allocation2 + $0x60] sm:$0xff] %v1657
        %1660 = vst [vmem:[#allocation2 + $0x68] sm:$0xff] %v1658
        %vm1661 = vcmp.ge.f32.partialorder %v361, 0.395
        %vm1662 = vcmp.ge.f32.partialorder %v362, 0.395
        %vm1663 = vcmp.ge.f32.partialorder %v363, 0.395
        %vm1664 = vcmp.ge.f32.partialorder %v364, 0.395
        %vm1665 = vcmp.lt.f32.partialorder %v361, 0.405
        %vm1666 = vcmp.lt.f32.partialorder %v362, 0.405
        %vm1667 = vcmp.lt.f32.partialorder %v363, 0.405
        %vm1668 = vcmp.lt.f32.partialorder %v364, 0.405
        %vm1669 = vmand %vm1661, %vm1665
        %vm1670 = vmand %vm1662, %vm1666
        %vm1671 = vmand %vm1663, %vm1667
        %vm1672 = vmand %vm1664, %vm1668
        %v1673 = vsel %vm1669, 1, 0
        %v1674 = vsel %vm1670, 1, 0
        %v1675 = vsel %vm1671, 1, 0
        %v1676 = vsel %vm1672, 1, 0
        %v1677 = vcvt.s32.f32 %v1673
        %v1678 = vcvt.s32.f32 %v1674
        %v1679 = vcvt.s32.f32 %v1675
        %v1680 = vcvt.s32.f32 %v1676
        %v1681 = vmul.f32 %v349, %v1677
        %v1682 = vmul.f32 %v350, %v1678
        %v1683 = vmul.f32 %v351, %v1679
        %v1684 = vmul.f32 %v352, %v1680
        %v1685 = vmul.f32 %v353, %v1677
        %v1686 = vmul.f32 %v354, %v1678
        %v1687 = vmul.f32 %v355, %v1679
        %v1688 = vmul.f32 %v356, %v1680
        %v1689 = vmul.f32 %v357, %v1677
        %v1690 = vmul.f32 %v358, %v1678
        %v1691 = vmul.f32 %v359, %v1679
        %v1692 = vmul.f32 %v360, %v1680
        %v1693 = vmul.f32 %v361, %v1677
        %v1694 = vmul.f32 %v362, %v1678
        %v1695 = vmul.f32 %v363, %v1679
        %v1696 = vmul.f32 %v364, %v1680
        %v1697 = vsel %vm425, %v1683, 0.0
        %v1698 = vadd.f32 %v1681, %v1697
        %v1699 = vrot.slane %v1698, 4
        %v1700 = vadd.f32 %v1698, %v1699
        %v1701 = vrot.slane %v1700, 2
        %v1702 = vadd.f32 %v1700, %v1701
        %v1703 = vrot.slane %v1702, 1
        %v1704 = vadd.f32 %v1702, %v1703
        %v1705 = vsel %vm425, %v1684, 0.0
        %v1706 = vadd.f32 %v1682, %v1705
        %v1707 = vrot.slane %v1706, 4
        %v1708 = vadd.f32 %v1706, %v1707
        %v1709 = vrot.slane %v1708, 2
        %v1710 = vadd.f32 %v1708, %v1709
        %v1711 = vrot.slane %v1710, 1
        %v1712 = vadd.f32 %v1710, %v1711
        %v1713 = vsel %vm425, %v1687, 0.0
        %v1714 = vadd.f32 %v1685, %v1713
        %v1715 = vrot.slane %v1714, 4
        %v1716 = vadd.f32 %v1714, %v1715
        %v1717 = vrot.slane %v1716, 2
        %v1718 = vadd.f32 %v1716, %v1717
        %v1719 = vrot.slane %v1718, 1
        %v1720 = vadd.f32 %v1718, %v1719
        %v1721 = vsel %vm425, %v1688, 0.0
        %v1722 = vadd.f32 %v1686, %v1721
        %v1723 = vrot.slane %v1722, 4
        %v1724 = vadd.f32 %v1722, %v1723
        %v1725 = vrot.slane %v1724, 2
        %v1726 = vadd.f32 %v1724, %v1725
        %v1727 = vrot.slane %v1726, 1
        %v1728 = vadd.f32 %v1726, %v1727
        %v1729 = vsel %vm425, %v1691, 0.0
        %v1730 = vadd.f32 %v1689, %v1729
        %v1731 = vrot.slane %v1730, 4
        %v1732 = vadd.f32 %v1730, %v1731
        %v1733 = vrot.slane %v1732, 2
        %v1734 = vadd.f32 %v1732, %v1733
        %v1735 = vrot.slane %v1734, 1
        %v1736 = vadd.f32 %v1734, %v1735
        %v1737 = vsel %vm425, %v1692, 0.0
        %v1738 = vadd.f32 %v1690, %v1737
        %v1739 = vrot.slane %v1738, 4
        %v1740 = vadd.f32 %v1738, %v1739
        %v1741 = vrot.slane %v1740, 2
        %v1742 = vadd.f32 %v1740, %v1741
        %v1743 = vrot.slane %v1742, 1
        %v1744 = vadd.f32 %v1742, %v1743
        %v1745 = vsel %vm425, %v1695, 0.0
        %v1746 = vadd.f32 %v1693, %v1745
        %v1747 = vrot.slane %v1746, 4
        %v1748 = vadd.f32 %v1746, %v1747
        %v1749 = vrot.slane %v1748, 2
        %v1750 = vadd.f32 %v1748, %v1749
        %v1751 = vrot.slane %v1750, 1
        %v1752 = vadd.f32 %v1750, %v1751
        %v1753 = vsel %vm425, %v1696, 0.0
        %v1754 = vadd.f32 %v1694, %v1753
        %v1755 = vrot.slane %v1754, 4
        %v1756 = vadd.f32 %v1754, %v1755
        %v1757 = vrot.slane %v1756, 2
        %v1758 = vadd.f32 %v1756, %v1757
        %v1759 = vrot.slane %v1758, 1
        %v1760 = vadd.f32 %v1758, %v1759
        %v1761 = vsel %vm425, %v1679, 0.0
        %v1762 = vadd.f32 %v1677, %v1761
        %v1763 = vrot.slane %v1762, 4
        %v1764 = vadd.f32 %v1762, %v1763
        %v1765 = vrot.slane %v1764, 2
        %v1766 = vadd.f32 %v1764, %v1765
        %v1767 = vrot.slane %v1766, 1
        %v1768 = vadd.f32 %v1766, %v1767
        %v1769 = vsel %vm425, %v1680, 0.0
        %v1770 = vadd.f32 %v1678, %v1769
        %v1771 = vrot.slane %v1770, 4
        %v1772 = vadd.f32 %v1770, %v1771
        %v1773 = vrot.slane %v1772, 2
        %v1774 = vadd.f32 %v1772, %v1773
        %v1775 = vrot.slane %v1774, 1
        %v1776 = vadd.f32 %v1774, %v1775
        %v1777 = vmax.f32 %v1768, 1.0
        %v1778 = vmax.f32 %v1776, 1.0
        %v1779 = vrcp.pop %v1777
        %v1780 = vrcp.pop %v1778
        %v1781 = vmul.f32 %v1704, %v1779
        %v1782 = vmul.f32 %v1712, %v1780
        %v1783 = vmul.f32 %v1720, %v1779
        %v1784 = vmul.f32 %v1728, %v1780
        %v1785 = vmul.f32 %v1736, %v1779
        %v1786 = vmul.f32 %v1744, %v1780
        %v1787 = vmul.f32 %v1752, %v1779
        %v1788 = vmul.f32 %v1760, %v1780
        %v1789 = vsub.f32 %v510, %v1781
        %v1790 = vsub.f32 %v511, %v1782
        %v1791 = vsub.f32 %v512, %v1783
        %v1792 = vsub.f32 %v513, %v1784
        %v1793 = vsub.f32 %v514, %v1785
        %v1794 = vsub.f32 %v515, %v1786
        %v1795 = vsub.f32 %v516, %v1787
        %v1796 = vsub.f32 %v517, %v1788
        %v1805 = vrot.slane %v1791, 7
        %v1806 = vsel %vm665, %v1805, %v1789
        %v1807 = vrot.slane %v1793, 6
        %v1808 = vsel %vm668, %v1807, %v1806
        %v1809 = vrot.slane %v1795, 5
        %v1810 = vsel %vm671, %v1809, %v1808
        %v1811 = vrot.slane %v1792, 7
        %v1812 = vsel %vm665, %v1811, %v1790
        %v1813 = vrot.slane %v1794, 6
        %v1814 = vsel %vm668, %v1813, %v1812
        %v1815 = vrot.slane %v1796, 5
        %v1816 = vsel %vm671, %v1815, %v1814
        %v1819 = vsel %vm684, %v1810, 0.0
        %v1820 = vsel %vm684, %v1816, 0.0
        %1821 = vst [vmem:[#allocation2 + $0x70] sm:$0xff] %v1819
        %1822 = vst [vmem:[#allocation2 + $0x78] sm:$0xff] %v1820
        %vm1823 = vcmp.gt.f32.partialorder %v361, 0.445
        %vm1824 = vcmp.gt.f32.partialorder %v362, 0.445
        %vm1825 = vcmp.gt.f32.partialorder %v363, 0.445
        %vm1826 = vcmp.gt.f32.partialorder %v364, 0.445
        %v1827 = vsel %vm1823, 1, 0
        %v1828 = vsel %vm1824, 1, 0
        %v1829 = vsel %vm1825, 1, 0
        %v1830 = vsel %vm1826, 1, 0
        %v1831 = vcvt.s32.f32 %v1827
        %v1832 = vcvt.s32.f32 %v1828
        %v1833 = vcvt.s32.f32 %v1829
        %v1834 = vcvt.s32.f32 %v1830
        %v1835 = vmul.f32 %v349, %v1831
        %v1836 = vmul.f32 %v350, %v1832
        %v1837 = vmul.f32 %v351, %v1833
        %v1838 = vmul.f32 %v352, %v1834
        %v1839 = vmul.f32 %v353, %v1831
        %v1840 = vmul.f32 %v354, %v1832
        %v1841 = vmul.f32 %v355, %v1833
        %v1842 = vmul.f32 %v356, %v1834
        %v1843 = vmul.f32 %v357, %v1831
        %v1844 = vmul.f32 %v358, %v1832
        %v1845 = vmul.f32 %v359, %v1833
        %v1846 = vmul.f32 %v360, %v1834
        %v1847 = vmul.f32 %v361, %v1831
        %v1848 = vmul.f32 %v362, %v1832
        %v1849 = vmul.f32 %v363, %v1833
        %v1850 = vmul.f32 %v364, %v1834
        %v1851 = vsel %vm425, %v1837, 0.0
        %v1852 = vadd.f32 %v1835, %v1851
        %v1853 = vrot.slane %v1852, 4
        %v1854 = vadd.f32 %v1852, %v1853
        %v1855 = vrot.slane %v1854, 2
        %v1856 = vadd.f32 %v1854, %v1855
        %v1857 = vrot.slane %v1856, 1
        %v1858 = vadd.f32 %v1856, %v1857
        %v1859 = vsel %vm425, %v1838, 0.0
        %v1860 = vadd.f32 %v1836, %v1859
        %v1861 = vrot.slane %v1860, 4
        %v1862 = vadd.f32 %v1860, %v1861
        %v1863 = vrot.slane %v1862, 2
        %v1864 = vadd.f32 %v1862, %v1863
        %v1865 = vrot.slane %v1864, 1
        %v1866 = vadd.f32 %v1864, %v1865
        %v1867 = vsel %vm425, %v1841, 0.0
        %v1868 = vadd.f32 %v1839, %v1867
        %v1869 = vrot.slane %v1868, 4
        %v1870 = vadd.f32 %v1868, %v1869
        %v1871 = vrot.slane %v1870, 2
        %v1872 = vadd.f32 %v1870, %v1871
        %v1873 = vrot.slane %v1872, 1
        %v1874 = vadd.f32 %v1872, %v1873
        %v1875 = vsel %vm425, %v1842, 0.0
        %v1876 = vadd.f32 %v1840, %v1875
        %v1877 = vrot.slane %v1876, 4
        %v1878 = vadd.f32 %v1876, %v1877
        %v1879 = vrot.slane %v1878, 2
        %v1880 = vadd.f32 %v1878, %v1879
        %v1881 = vrot.slane %v1880, 1
        %v1882 = vadd.f32 %v1880, %v1881
        %v1883 = vsel %vm425, %v1845, 0.0
        %v1884 = vadd.f32 %v1843, %v1883
        %v1885 = vrot.slane %v1884, 4
        %v1886 = vadd.f32 %v1884, %v1885
        %v1887 = vrot.slane %v1886, 2
        %v1888 = vadd.f32 %v1886, %v1887
        %v1889 = vrot.slane %v1888, 1
        %v1890 = vadd.f32 %v1888, %v1889
        %v1891 = vsel %vm425, %v1846, 0.0
        %v1892 = vadd.f32 %v1844, %v1891
        %v1893 = vrot.slane %v1892, 4
        %v1894 = vadd.f32 %v1892, %v1893
        %v1895 = vrot.slane %v1894, 2
        %v1896 = vadd.f32 %v1894, %v1895
        %v1897 = vrot.slane %v1896, 1
        %v1898 = vadd.f32 %v1896, %v1897
        %v1899 = vsel %vm425, %v1849, 0.0
        %v1900 = vadd.f32 %v1847, %v1899
        %v1901 = vrot.slane %v1900, 4
        %v1902 = vadd.f32 %v1900, %v1901
        %v1903 = vrot.slane %v1902, 2
        %v1904 = vadd.f32 %v1902, %v1903
        %v1905 = vrot.slane %v1904, 1
        %v1906 = vadd.f32 %v1904, %v1905
        %v1907 = vsel %vm425, %v1850, 0.0
        %v1908 = vadd.f32 %v1848, %v1907
        %v1909 = vrot.slane %v1908, 4
        %v1910 = vadd.f32 %v1908, %v1909
        %v1911 = vrot.slane %v1910, 2
        %v1912 = vadd.f32 %v1910, %v1911
        %v1913 = vrot.slane %v1912, 1
        %v1914 = vadd.f32 %v1912, %v1913
        %v1915 = vsel %vm425, %v1833, 0.0
        %v1916 = vadd.f32 %v1831, %v1915
        %v1917 = vrot.slane %v1916, 4
        %v1918 = vadd.f32 %v1916, %v1917
        %v1919 = vrot.slane %v1918, 2
        %v1920 = vadd.f32 %v1918, %v1919
        %v1921 = vrot.slane %v1920, 1
        %v1922 = vadd.f32 %v1920, %v1921
        %v1923 = vsel %vm425, %v1834, 0.0
        %v1924 = vadd.f32 %v1832, %v1923
        %v1925 = vrot.slane %v1924, 4
        %v1926 = vadd.f32 %v1924, %v1925
        %v1927 = vrot.slane %v1926, 2
        %v1928 = vadd.f32 %v1926, %v1927
        %v1929 = vrot.slane %v1928, 1
        %v1930 = vadd.f32 %v1928, %v1929
        %v1931 = vmax.f32 %v1922, 1.0
        %v1932 = vmax.f32 %v1930, 1.0
        %v1933 = vrcp.pop %v1931
        %v1934 = vrcp.pop %v1932
        %v1935 = vmul.f32 %v1858, %v1933
        %v1936 = vmul.f32 %v1866, %v1934
        %v1937 = vmul.f32 %v1874, %v1933
        %v1938 = vmul.f32 %v1882, %v1934
        %v1939 = vmul.f32 %v1890, %v1933
        %v1940 = vmul.f32 %v1898, %v1934
        %v1941 = vmul.f32 %v1906, %v1933
        %v1942 = vmul.f32 %v1914, %v1934
        %v1943 = vsub.f32 %v510, %v1935
        %v1944 = vsub.f32 %v511, %v1936
        %v1945 = vsub.f32 %v512, %v1937
        %v1946 = vsub.f32 %v513, %v1938
        %v1947 = vsub.f32 %v514, %v1939
        %v1948 = vsub.f32 %v515, %v1940
        %v1949 = vsub.f32 %v516, %v1941
        %v1950 = vsub.f32 %v517, %v1942
        %v1959 = vrot.slane %v1945, 7
        %v1960 = vsel %vm665, %v1959, %v1943
        %v1961 = vrot.slane %v1947, 6
        %v1962 = vsel %vm668, %v1961, %v1960
        %v1963 = vrot.slane %v1949, 5
        %v1964 = vsel %vm671, %v1963, %v1962
        %v1965 = vrot.slane %v1946, 7
        %v1966 = vsel %vm665, %v1965, %v1944
        %v1967 = vrot.slane %v1948, 6
        %v1968 = vsel %vm668, %v1967, %v1966
        %v1969 = vrot.slane %v1950, 5
        %v1970 = vsel %vm671, %v1969, %v1968
        %v1973 = vsel %vm684, %v1964, 0.0
        %v1974 = vsel %vm684, %v1970, 0.0
        %1975 = vst [vmem:[#allocation2 + $0x80] sm:$0xff] %v1973
        %1976 = vst [vmem:[#allocation2 + $0x88] sm:$0xff] %v1974
        %v1977 = vld [vmem:[#allocation2] sm:$0xff]
        %v1978 = vld [vmem:[#allocation2 + $0x8] sm:$0xff]
        %v1979 = vld [vmem:[#allocation2 + $0x10] sm:$0xff]
        %v1980 = vld [vmem:[#allocation2 + $0x18] sm:$0xff]
        %v1981 = vld [vmem:[#allocation2 + $0x20] sm:$0xff]
        %v1982 = vld [vmem:[#allocation2 + $0x28] sm:$0xff]
        %v1983 = vld [vmem:[#allocation2 + $0x30] sm:$0xff]
        %v1984 = vld [vmem:[#allocation2 + $0x38] sm:$0xff]
        %v1985 = vld [vmem:[#allocation2 + $0x40] sm:$0xff]
        %v1986 = vld [vmem:[#allocation2 + $0x48] sm:$0xff]
        %v1987 = vld [vmem:[#allocation2 + $0x50] sm:$0xff]
        %v1988 = vld [vmem:[#allocation2 + $0x58] sm:$0xff]
        %v1989 = vld [vmem:[#allocation2 + $0x60] sm:$0xff]
        %v1990 = vld [vmem:[#allocation2 + $0x68] sm:$0xff]
        %v1991 = vld [vmem:[#allocation2 + $0x70] sm:$0xff]
        %v1992 = vld [vmem:[#allocation2 + $0x78] sm:$0xff]
        %v1993 = vld [vmem:[#allocation2 + $0x80] sm:$0xff]
        %v1994 = vld [vmem:[#allocation2 + $0x88] sm:$0xff]
        %v1995 = vpack.c.bf16 %v1979, %v1977
        %v1996 = vpack.c.bf16 %v1980, %v1978
        %v1997 = vpack.c.bf16 %v1983, %v1981
        %v1998 = vpack.c.bf16 %v1984, %v1982
        %v1999 = vpack.c.bf16 %v1987, %v1985
        %v2000 = vpack.c.bf16 %v1988, %v1986
        %v2001 = vpack.c.bf16 %v1991, %v1989
        %v2002 = vpack.c.bf16 %v1992, %v1990
        %v2003 = vpack.c.bf16 %v1993, %v1993
        %v2004 = vpack.c.bf16 %v1994, %v1994
        %v2005 = vld [vmem:[%s2] sm:$0xf]
        %v2006 = vld [vmem:[%s2 + $0x4] sm:$0xf]
        %v2007 = vld [vmem:[%s2 + $0x8] sm:$0xf]
        %v2008 = vld [vmem:[%s2 + $0xc] sm:$0xf]
        %v2009 = vld [vmem:[%s2 + $0x10] sm:$0xf]
        %v2010 = vld [vmem:[%s2 + $0x14] sm:$0xf]
        %v2011 = vld [vmem:[%s2 + $0x18] sm:$0xf]
        %v2012 = vld [vmem:[%s2 + $0x1c] sm:$0xf]
        %v2013 = vld [vmem:[%s2 + $0x20] sm:$0xf]
        %v2014 = vld [vmem:[%s2 + $0x24] sm:$0xf]
        %v2015 = vld [vmem:[%s2 + $0x28] sm:$0xf]
        %v2016 = vld [vmem:[%s2 + $0x2c] sm:$0xf]
        %v2017 = vld [vmem:[%s2 + $0x30] sm:$0xf]
        %v2018 = vld [vmem:[%s2 + $0x34] sm:$0xf]
        %v2019 = vld [vmem:[%s2 + $0x38] sm:$0xf]
        %v2020 = vld [vmem:[%s2 + $0x3c] sm:$0xf]
        %v2021 = vld [vmem:[%s2 + $0x40] sm:$0xf]
        %v2022 = vld [vmem:[%s2 + $0x44] sm:$0xf]
        %v2041 = vunpack.c.l.b16 %v2005
        %v2042 = vunpack.c.l.b16 %v2006
        %v2043 = vunpack.c.l.b16 %v2007
        %v2044 = vunpack.c.l.b16 %v2008
        %v2045 = vunpack.c.l.b16 %v2009
        %v2046 = vunpack.c.l.b16 %v2010
        %v2047 = vunpack.c.l.b16 %v2011
        %v2048 = vunpack.c.l.b16 %v2012
        %v2049 = vunpack.c.l.b16 %v2013
        %v2050 = vunpack.c.l.b16 %v2014
        %v2051 = vunpack.c.l.b16 %v2015
        %v2052 = vunpack.c.l.b16 %v2016
        %v2053 = vunpack.c.l.b16 %v2017
        %v2054 = vunpack.c.l.b16 %v2018
        %v2055 = vunpack.c.l.b16 %v2019
        %v2056 = vunpack.c.l.b16 %v2020
        %v2057 = vunpack.c.l.b16 %v2021
        %v2058 = vunpack.c.l.b16 %v2022
        %v2059 = vpack.c.b16 %v2042, %v2041
        %v2060 = vpack.c.b16 %v2044, %v2043
        %v2061 = vpack.c.b16 %v2046, %v2045
        %v2062 = vpack.c.b16 %v2048, %v2047
        %v2063 = vpack.c.b16 %v2050, %v2049
        %v2064 = vpack.c.b16 %v2052, %v2051
        %v2065 = vpack.c.b16 %v2054, %v2053
        %v2066 = vpack.c.b16 %v2056, %v2055
        %v2067 = vpack.c.b16 %v2058, %v2057
        %vm2068 = vcmask 588800
        %v2070 = vsel %vm2068, %v2059, 0
        %v2073 = vsel %vm2068, %v2060, 0
        %v2076 = vsel %vm2068, %v2061, 0
        %v2079 = vsel %vm2068, %v2062, 0
        %v2082 = vsel %vm2068, %v2063, 0
        %v2085 = vsel %vm2068, %v2064, 0
        %v2088 = vsel %vm2068, %v2065, 0
        %v2091 = vsel %vm2068, %v2066, 0
        %v2094 = vsel %vm2068, %v2067, 0
        %v2097 = vsel %vm684, %v2003, 0
        %v2100 = vsel %vm684, %v2004, 0
        %2102 = vmatprep.subr.bf16.mxu0 %v1996
        %2103 = vmatpush1.bf16.msra.mxu0 %v1995
        %2104 = vmatprep.subr.bf16.mxu0 %v1998
        %2105 = vmatpush1.bf16.msra.mxu0 %v1997
        %2106 = vmatprep.subr.bf16.mxu0 %v2000
        %2107 = vmatpush1.bf16.msra.mxu0 %v1999
        %2108 = vmatprep.subr.bf16.mxu0 %v2002
        %2109 = vmatpush1.bf16.msra.mxu0 %v2001
        %2110 = vmatprep.subr.bf16.mxu0 %v2100
        %2111 = vmatpush1.bf16.msra.mxu0 %v2097
        %2112 = vmatprep.subr.bf16.mxu0 0
        %2113 = vmatpush1.bf16.msra.mxu0 0
        %2114 = vmatprep.subr.bf16.mxu0 0
        %2115 = vmatpush1.bf16.msra.mxu0 0
        %2116 = vmatprep.subr.bf16.mxu0 0
        %2117 = vmatpush1.bf16.msra.mxu0 0
        %2118 = vmatprep.subr.bf16.mxu0 0
        %2119 = vmatpush1.bf16.msra.mxu0 0
        %2120 = vmatprep.subr.bf16.mxu0 0
        %2121 = vmatpush1.bf16.msra.mxu0 0
        %2122 = vmatprep.subr.bf16.mxu0 0
        %2123 = vmatpush1.bf16.msra.mxu0 0
        %2124 = vmatprep.subr.bf16.mxu0 0
        %2125 = vmatpush1.bf16.msra.mxu0 0
        %2126 = vmatprep.subr.bf16.mxu0 0
        %2127 = vmatpush1.bf16.msra.mxu0 0
        %2128 = vmatprep.subr.bf16.mxu0 0
        %2129 = vmatpush1.bf16.msra.mxu0 0
        %2130 = vmatprep.subr.bf16.mxu0 0
        %2131 = vmatpush1.bf16.msra.mxu0 0
        %2132 = vmatprep.subr.bf16.mxu0 0
        %2133 = vmatpush1.bf16.msra.mxu0 0
        %2134 = vmatprep.mubr.bf16.mxu0 0
        %2135 = vmatmul.mubr.bf16.gmra.mrb[0].mxu0 %v2070
        %v2136 = vpop.f32.mrb[0].mxu0
        %v2137 = vadd.f32 0.0, %v2136
        %v2138 = vpop.f32.mrb[0].mxu0
        %v2139 = vadd.f32 0.0, %v2138
        %v2140 = vpop.f32.mrb[0].mxu0
        %v2141 = vadd.f32 0.0, %v2140
        %v2142 = vpop.f32.mrb[0].mxu0
        %v2143 = vadd.f32 0.0, %v2142
        %2144 = vmatprep.mubr.bf16.mxu0 0
        %2145 = vmatmul.mubr.bf16.gmra.mrb[0].mxu0 %v2073
        %v2146 = vpop.f32.mrb[0].mxu0
        %v2147 = vadd.f32 0.0, %v2146
        %v2148 = vpop.f32.mrb[0].mxu0
        %v2149 = vadd.f32 0.0, %v2148
        %v2150 = vpop.f32.mrb[0].mxu0
        %v2151 = vadd.f32 0.0, %v2150
        %v2152 = vpop.f32.mrb[0].mxu0
        %v2153 = vadd.f32 0.0, %v2152
        %2154 = vmatprep.mubr.bf16.mxu0 0
        %2155 = vmatmul.mubr.bf16.gmra.mrb[0].mxu0 %v2076
        %v2156 = vpop.f32.mrb[0].mxu0
        %v2157 = vadd.f32 0.0, %v2156
        %v2158 = vpop.f32.mrb[0].mxu0
        %v2159 = vadd.f32 0.0, %v2158
        %v2160 = vpop.f32.mrb[0].mxu0
        %v2161 = vadd.f32 0.0, %v2160
        %v2162 = vpop.f32.mrb[0].mxu0
        %v2163 = vadd.f32 0.0, %v2162
        %2164 = vmatprep.mubr.bf16.mxu0 0
        %2165 = vmatmul.mubr.bf16.gmra.mrb[0].mxu0 %v2079
        %v2166 = vpop.f32.mrb[0].mxu0
        %v2167 = vadd.f32 0.0, %v2166
        %v2168 = vpop.f32.mrb[0].mxu0
        %v2169 = vadd.f32 0.0, %v2168
        %v2170 = vpop.f32.mrb[0].mxu0
        %v2171 = vadd.f32 0.0, %v2170
        %v2172 = vpop.f32.mrb[0].mxu0
        %v2173 = vadd.f32 0.0, %v2172
        %2174 = vmatprep.mubr.bf16.mxu0 0
        %2175 = vmatmul.mubr.bf16.gmra.mrb[0].mxu0 %v2082
        %v2176 = vpop.f32.mrb[0].mxu0
        %v2177 = vadd.f32 0.0, %v2176
        %v2178 = vpop.f32.mrb[0].mxu0
        %v2179 = vadd.f32 0.0, %v2178
        %v2180 = vpop.f32.mrb[0].mxu0
        %v2181 = vadd.f32 0.0, %v2180
        %v2182 = vpop.f32.mrb[0].mxu0
        %v2183 = vadd.f32 0.0, %v2182
        %2184 = vmatprep.mubr.bf16.mxu0 0
        %2185 = vmatmul.mubr.bf16.gmra.mrb[0].mxu0 %v2085
        %v2186 = vpop.f32.mrb[0].mxu0
        %v2187 = vadd.f32 0.0, %v2186
        %v2188 = vpop.f32.mrb[0].mxu0
        %v2189 = vadd.f32 0.0, %v2188
        %v2190 = vpop.f32.mrb[0].mxu0
        %v2191 = vadd.f32 0.0, %v2190
        %v2192 = vpop.f32.mrb[0].mxu0
        %v2193 = vadd.f32 0.0, %v2192
        %2194 = vmatprep.mubr.bf16.mxu0 0
        %2195 = vmatmul.mubr.bf16.gmra.mrb[0].mxu0 %v2088
        %v2196 = vpop.f32.mrb[0].mxu0
        %v2197 = vadd.f32 0.0, %v2196
        %v2198 = vpop.f32.mrb[0].mxu0
        %v2199 = vadd.f32 0.0, %v2198
        %v2200 = vpop.f32.mrb[0].mxu0
        %v2201 = vadd.f32 0.0, %v2200
        %v2202 = vpop.f32.mrb[0].mxu0
        %v2203 = vadd.f32 0.0, %v2202
        %2204 = vmatprep.mubr.bf16.mxu0 0
        %2205 = vmatmul.mubr.bf16.gmra.mrb[0].mxu0 %v2091
        %v2206 = vpop.f32.mrb[0].mxu0
        %v2207 = vadd.f32 0.0, %v2206
        %v2208 = vpop.f32.mrb[0].mxu0
        %v2209 = vadd.f32 0.0, %v2208
        %v2210 = vpop.f32.mrb[0].mxu0
        %v2211 = vadd.f32 0.0, %v2210
        %v2212 = vpop.f32.mrb[0].mxu0
        %v2213 = vadd.f32 0.0, %v2212
        %2214 = vmatprep.mubr.bf16.mxu0 0
        %2215 = vmatmul.mubr.bf16.gmra.mrb[0].mxu0 %v2094
        %v2216 = vpop.f32.mrb[0].mxu0
        %v2217 = vadd.f32 0.0, %v2216
        %v2218 = vpop.f32.mrb[0].mxu0
        %v2219 = vadd.f32 0.0, %v2218
        %v2220 = vpop.f32.mrb[0].mxu0
        %v2221 = vadd.f32 0.0, %v2220
        %v2222 = vpop.f32.mrb[0].mxu0
        %v2223 = vadd.f32 0.0, %v2222
        %2224 = vdwg.mxu0
        %v2225 = vmax.f32 %v2137, 0.0
        %v2226 = vmax.f32 %v2139, 0.0
        %v2227 = vmax.f32 %v2141, 0.0
        %v2228 = vmax.f32 %v2143, 0.0
        %v2229 = vmax.f32 %v2147, 0.0
        %v2230 = vmax.f32 %v2149, 0.0
        %v2231 = vmax.f32 %v2151, 0.0
        %v2232 = vmax.f32 %v2153, 0.0
        %v2233 = vmax.f32 %v2157, 0.0
        %v2234 = vmax.f32 %v2159, 0.0
        %v2235 = vmax.f32 %v2161, 0.0
        %v2236 = vmax.f32 %v2163, 0.0
        %v2237 = vmax.f32 %v2167, 0.0
        %v2238 = vmax.f32 %v2169, 0.0
        %v2239 = vmax.f32 %v2171, 0.0
        %v2240 = vmax.f32 %v2173, 0.0
        %v2241 = vmax.f32 %v2177, 0.0
        %v2242 = vmax.f32 %v2179, 0.0
        %v2243 = vmax.f32 %v2181, 0.0
        %v2244 = vmax.f32 %v2183, 0.0
        %v2245 = vmax.f32 %v2187, 0.0
        %v2246 = vmax.f32 %v2189, 0.0
        %v2247 = vmax.f32 %v2191, 0.0
        %v2248 = vmax.f32 %v2193, 0.0
        %v2249 = vmax.f32 %v2197, 0.0
        %v2250 = vmax.f32 %v2199, 0.0
        %v2251 = vmax.f32 %v2201, 0.0
        %v2252 = vmax.f32 %v2203, 0.0
        %v2253 = vmax.f32 %v2207, 0.0
        %v2254 = vmax.f32 %v2209, 0.0
        %v2255 = vmax.f32 %v2211, 0.0
        %v2256 = vmax.f32 %v2213, 0.0
        %v2257 = vmax.f32 %v2217, 0.0
        %v2258 = vmax.f32 %v2219, 0.0
        %v2259 = vmax.f32 %v2221, 0.0
        %v2260 = vmax.f32 %v2223, 0.0
        %v2261 = vld [vmem:[%s3] sm:$0xff]
        %v2262 = vld [vmem:[%s3 + $0x8] sm:$0xff]
        %v2263 = vld [vmem:[%s3 + $0x10] sm:$0xff]
        %v2264 = vld [vmem:[%s3 + $0x18] sm:$0xff]
        %v2265 = vld [vmem:[%s3 + $0x20] sm:$0xff]
        %v2266 = vld [vmem:[%s3 + $0x28] sm:$0xff]
        %v2267 = vld [vmem:[%s3 + $0x30] sm:$0xff]
        %v2268 = vld [vmem:[%s3 + $0x38] sm:$0xff]
        %v2269 = vld [vmem:[%s3 + $0x40] sm:$0xff]
        %v2270 = vld [vmem:[%s3 + $0x48] sm:$0xff]
        %v2271 = vld [vmem:[%s3 + $0x50] sm:$0xff]
        %v2272 = vld [vmem:[%s3 + $0x58] sm:$0xff]
        %v2273 = vld [vmem:[%s3 + $0x60] sm:$0xff]
        %v2274 = vld [vmem:[%s3 + $0x68] sm:$0xff]
        %v2275 = vld [vmem:[%s3 + $0x70] sm:$0xff]
        %v2276 = vld [vmem:[%s3 + $0x78] sm:$0xff]
        %v2277 = vld [vmem:[%s3 + $0x80] sm:$0xff]
        %v2278 = vld [vmem:[%s3 + $0x88] sm:$0xff]
        %v2279 = vpack.c.bf16 %v2227, %v2225
        %v2280 = vpack.c.bf16 %v2228, %v2226
        %v2281 = vpack.c.bf16 %v2231, %v2229
        %v2282 = vpack.c.bf16 %v2232, %v2230
        %v2283 = vpack.c.bf16 %v2235, %v2233
        %v2284 = vpack.c.bf16 %v2236, %v2234
        %v2285 = vpack.c.bf16 %v2239, %v2237
        %v2286 = vpack.c.bf16 %v2240, %v2238
        %v2287 = vpack.c.bf16 %v2243, %v2241
        %v2288 = vpack.c.bf16 %v2244, %v2242
        %v2289 = vpack.c.bf16 %v2247, %v2245
        %v2290 = vpack.c.bf16 %v2248, %v2246
        %v2291 = vpack.c.bf16 %v2251, %v2249
        %v2292 = vpack.c.bf16 %v2252, %v2250
        %v2293 = vpack.c.bf16 %v2255, %v2253
        %v2294 = vpack.c.bf16 %v2256, %v2254
        %v2295 = vpack.c.bf16 %v2259, %v2257
        %v2296 = vpack.c.bf16 %v2260, %v2258
        %v2297 = vld [vmem:[%s5] sm:$0xff]
        %v2298 = vld [vmem:[%s5 + $0x8] sm:$0xff]
        %v2299 = vld [vmem:[%s5 + $0x10] sm:$0xff]
        %v2300 = vld [vmem:[%s5 + $0x18] sm:$0xff]
        %v2301 = vld [vmem:[%s5 + $0x20] sm:$0xff]
        %v2302 = vld [vmem:[%s5 + $0x28] sm:$0xff]
        %v2303 = vld [vmem:[%s5 + $0x30] sm:$0xff]
        %v2304 = vld [vmem:[%s5 + $0x38] sm:$0xff]
        %v2305 = vld [vmem:[%s5 + $0x40] sm:$0xff]
        %v2306 = vld [vmem:[%s5 + $0x48] sm:$0xff]
        %v2307 = vld [vmem:[%s5 + $0x50] sm:$0xff]
        %v2308 = vld [vmem:[%s5 + $0x58] sm:$0xff]
        %v2309 = vld [vmem:[%s5 + $0x60] sm:$0xff]
        %v2310 = vld [vmem:[%s5 + $0x68] sm:$0xff]
        %v2311 = vld [vmem:[%s5 + $0x70] sm:$0xff]
        %v2312 = vld [vmem:[%s5 + $0x78] sm:$0xff]
        %v2313 = vld [vmem:[%s5 + $0x80] sm:$0xff]
        %v2314 = vld [vmem:[%s5 + $0x88] sm:$0xff]
        %2316 = vset.pattern.permute.xlu0 0
        %2317 = vperm.xlu0 %2316, %v2297
        %v2318 = vpop.permute.xlu0 %2317
        %2321 = vset.pattern.permute.xlu0 0
        %2322 = vperm.xlu0 %2321, %v2298
        %v2323 = vpop.permute.xlu0 %2322
        %2326 = vset.pattern.permute.xlu0 0
        %2327 = vperm.xlu0 %2326, %v2299
        %v2328 = vpop.permute.xlu0 %2327
        %2331 = vset.pattern.permute.xlu0 0
        %2332 = vperm.xlu0 %2331, %v2300
        %v2333 = vpop.permute.xlu0 %2332
        %2336 = vset.pattern.permute.xlu0 0
        %2337 = vperm.xlu0 %2336, %v2301
        %v2338 = vpop.permute.xlu0 %2337
        %2341 = vset.pattern.permute.xlu0 0
        %2342 = vperm.xlu0 %2341, %v2302
        %v2343 = vpop.permute.xlu0 %2342
        %2346 = vset.pattern.permute.xlu0 0
        %2347 = vperm.xlu0 %2346, %v2303
        %v2348 = vpop.permute.xlu0 %2347
        %2351 = vset.pattern.permute.xlu0 0
        %2352 = vperm.xlu0 %2351, %v2304
        %v2353 = vpop.permute.xlu0 %2352
        %2356 = vset.pattern.permute.xlu0 0
        %2357 = vperm.xlu0 %2356, %v2305
        %v2358 = vpop.permute.xlu0 %2357
        %2361 = vset.pattern.permute.xlu0 0
        %2362 = vperm.xlu0 %2361, %v2306
        %v2363 = vpop.permute.xlu0 %2362
        %2366 = vset.pattern.permute.xlu0 0
        %2367 = vperm.xlu0 %2366, %v2307
        %v2368 = vpop.permute.xlu0 %2367
        %2371 = vset.pattern.permute.xlu0 0
        %2372 = vperm.xlu0 %2371, %v2308
        %v2373 = vpop.permute.xlu0 %2372
        %2376 = vset.pattern.permute.xlu0 0
        %2377 = vperm.xlu0 %2376, %v2309
        %v2378 = vpop.permute.xlu0 %2377
        %2381 = vset.pattern.permute.xlu0 0
        %2382 = vperm.xlu0 %2381, %v2310
        %v2383 = vpop.permute.xlu0 %2382
        %2386 = vset.pattern.permute.xlu0 0
        %2387 = vperm.xlu0 %2386, %v2311
        %v2388 = vpop.permute.xlu0 %2387
        %2391 = vset.pattern.permute.xlu0 0
        %2392 = vperm.xlu0 %2391, %v2312
        %v2393 = vpop.permute.xlu0 %2392
        %2396 = vset.pattern.permute.xlu0 0
        %2397 = vperm.xlu0 %2396, %v2313
        %v2398 = vpop.permute.xlu0 %2397
        %2401 = vset.pattern.permute.xlu0 0
        %2402 = vperm.xlu0 %2401, %v2314
        %v2403 = vpop.permute.xlu0 %2402
        %v2423 = vunpack.c.l.b16 %v2261
        %v2424 = vunpack.c.h.b16 %v2261
        %v2425 = vunpack.c.l.b16 %v2262
        %v2426 = vunpack.c.h.b16 %v2262
        %v2427 = vunpack.c.l.b16 %v2263
        %v2428 = vunpack.c.h.b16 %v2263
        %v2429 = vunpack.c.l.b16 %v2264
        %v2430 = vunpack.c.h.b16 %v2264
        %v2431 = vunpack.c.l.b16 %v2265
        %v2432 = vunpack.c.h.b16 %v2265
        %v2433 = vunpack.c.l.b16 %v2266
        %v2434 = vunpack.c.h.b16 %v2266
        %v2435 = vunpack.c.l.b16 %v2267
        %v2436 = vunpack.c.h.b16 %v2267
        %v2437 = vunpack.c.l.b16 %v2268
        %v2438 = vunpack.c.h.b16 %v2268
        %v2439 = vunpack.c.l.b16 %v2269
        %v2440 = vunpack.c.h.b16 %v2269
        %v2441 = vunpack.c.l.b16 %v2270
        %v2442 = vunpack.c.h.b16 %v2270
        %v2443 = vunpack.c.l.b16 %v2271
        %v2444 = vunpack.c.h.b16 %v2271
        %v2445 = vunpack.c.l.b16 %v2272
        %v2446 = vunpack.c.h.b16 %v2272
        %v2447 = vunpack.c.l.b16 %v2273
        %v2448 = vunpack.c.h.b16 %v2273
        %v2449 = vunpack.c.l.b16 %v2274
        %v2450 = vunpack.c.h.b16 %v2274
        %v2451 = vunpack.c.l.b16 %v2275
        %v2452 = vunpack.c.h.b16 %v2275
        %v2453 = vunpack.c.l.b16 %v2276
        %v2454 = vunpack.c.h.b16 %v2276
        %v2455 = vunpack.c.l.b16 %v2277
        %v2456 = vunpack.c.h.b16 %v2277
        %v2457 = vunpack.c.l.b16 %v2278
        %v2458 = vunpack.c.h.b16 %v2278
        %v2459 = vpack.c.b16 %v2425, %v2423
        %v2460 = vpack.c.b16 %v2426, %v2424
        %v2461 = vpack.c.b16 %v2429, %v2427
        %v2462 = vpack.c.b16 %v2430, %v2428
        %v2463 = vpack.c.b16 %v2433, %v2431
        %v2464 = vpack.c.b16 %v2434, %v2432
        %v2465 = vpack.c.b16 %v2437, %v2435
        %v2466 = vpack.c.b16 %v2438, %v2436
        %v2467 = vpack.c.b16 %v2441, %v2439
        %v2468 = vpack.c.b16 %v2442, %v2440
        %v2469 = vpack.c.b16 %v2445, %v2443
        %v2470 = vpack.c.b16 %v2446, %v2444
        %v2471 = vpack.c.b16 %v2449, %v2447
        %v2472 = vpack.c.b16 %v2450, %v2448
        %v2473 = vpack.c.b16 %v2453, %v2451
        %v2474 = vpack.c.b16 %v2454, %v2452
        %v2475 = vpack.c.b16 %v2457, %v2455
        %v2476 = vpack.c.b16 %v2458, %v2456
        %vm2486 = vcmask 130048
        %v2488 = vsel %vm2486, %v2460, 0
        %v2491 = vsel %vm2486, %v2462, 0
        %v2494 = vsel %vm2486, %v2464, 0
        %v2497 = vsel %vm2486, %v2466, 0
        %v2500 = vsel %vm2486, %v2468, 0
        %v2503 = vsel %vm2486, %v2470, 0
        %v2506 = vsel %vm2486, %v2472, 0
        %v2509 = vsel %vm2486, %v2474, 0
        %v2512 = vsel %vm2486, %v2476, 0
        %2514 = vmatprep.subr.bf16.mxu0 %v2280
        %2515 = vmatpush1.bf16.msra.mxu0 %v2279
        %2516 = vmatprep.subr.bf16.mxu0 %v2282
        %2517 = vmatpush1.bf16.msra.mxu0 %v2281
        %2518 = vmatprep.subr.bf16.mxu0 %v2284
        %2519 = vmatpush1.bf16.msra.mxu0 %v2283
        %2520 = vmatprep.subr.bf16.mxu0 %v2286
        %2521 = vmatpush1.bf16.msra.mxu0 %v2285
        %2522 = vmatprep.subr.bf16.mxu0 %v2288
        %2523 = vmatpush1.bf16.msra.mxu0 %v2287
        %2524 = vmatprep.subr.bf16.mxu0 %v2290
        %2525 = vmatpush1.bf16.msra.mxu0 %v2289
        %2526 = vmatprep.subr.bf16.mxu0 %v2292
        %2527 = vmatpush1.bf16.msra.mxu0 %v2291
        %2528 = vmatprep.subr.bf16.mxu0 %v2294
        %2529 = vmatpush1.bf16.msra.mxu0 %v2293
        %2530 = vmatprep.subr.bf16.mxu0 %v2296
        %2531 = vmatpush1.bf16.msra.mxu0 %v2295
        %2532 = vmatprep.subr.bf16.mxu0 0
        %2533 = vmatpush1.bf16.msra.mxu0 0
        %2534 = vmatprep.subr.bf16.mxu0 0
        %2535 = vmatpush1.bf16.msra.mxu0 0
        %2536 = vmatprep.subr.bf16.mxu0 0
        %2537 = vmatpush1.bf16.msra.mxu0 0
        %2538 = vmatprep.subr.bf16.mxu0 0
        %2539 = vmatpush1.bf16.msra.mxu0 0
        %2540 = vmatprep.subr.bf16.mxu0 0
        %2541 = vmatpush1.bf16.msra.mxu0 0
        %2542 = vmatprep.subr.bf16.mxu0 0
        %2543 = vmatpush1.bf16.msra.mxu0 0
        %2544 = vmatprep.subr.bf16.mxu0 0
        %2545 = vmatpush1.bf16.msra.mxu0 0
        %2546 = vmatprep.mubr.bf16.mxu0 %v2488
        %2547 = vmatmul.mubr.bf16.gmra.mrb[0].mxu0 %v2459
        %v2548 = vpop.f32.mrb[0].mxu0
        %v2549 = vadd.f32 %v2318, %v2548
        %v2550 = vpop.f32.mrb[0].mxu0
        %v2551 = vadd.f32 %v2318, %v2550
        %v2552 = vpop.f32.mrb[0].mxu0
        %v2553 = vadd.f32 %v2323, %v2552
        %v2554 = vpop.f32.mrb[0].mxu0
        %v2555 = vadd.f32 %v2323, %v2554
        %2556 = vmatprep.mubr.bf16.mxu0 %v2491
        %2557 = vmatmul.mubr.bf16.gmra.mrb[0].mxu0 %v2461
        %v2558 = vpop.f32.mrb[0].mxu0
        %v2559 = vadd.f32 %v2328, %v2558
        %v2560 = vpop.f32.mrb[0].mxu0
        %v2561 = vadd.f32 %v2328, %v2560
        %v2562 = vpop.f32.mrb[0].mxu0
        %v2563 = vadd.f32 %v2333, %v2562
        %v2564 = vpop.f32.mrb[0].mxu0
        %v2565 = vadd.f32 %v2333, %v2564
        %2566 = vmatprep.mubr.bf16.mxu0 %v2494
        %2567 = vmatmul.mubr.bf16.gmra.mrb[0].mxu0 %v2463
        %v2568 = vpop.f32.mrb[0].mxu0
        %v2569 = vadd.f32 %v2338, %v2568
        %v2570 = vpop.f32.mrb[0].mxu0
        %v2571 = vadd.f32 %v2338, %v2570
        %v2572 = vpop.f32.mrb[0].mxu0
        %v2573 = vadd.f32 %v2343, %v2572
        %v2574 = vpop.f32.mrb[0].mxu0
        %v2575 = vadd.f32 %v2343, %v2574
        %2576 = vmatprep.mubr.bf16.mxu0 %v2497
        %2577 = vmatmul.mubr.bf16.gmra.mrb[0].mxu0 %v2465
        %v2578 = vpop.f32.mrb[0].mxu0
        %v2579 = vadd.f32 %v2348, %v2578
        %v2580 = vpop.f32.mrb[0].mxu0
        %v2581 = vadd.f32 %v2348, %v2580
        %v2582 = vpop.f32.mrb[0].mxu0
        %v2583 = vadd.f32 %v2353, %v2582
        %v2584 = vpop.f32.mrb[0].mxu0
        %v2585 = vadd.f32 %v2353, %v2584
        %2586 = vmatprep.mubr.bf16.mxu0 %v2500
        %2587 = vmatmul.mubr.bf16.gmra.mrb[0].mxu0 %v2467
        %v2588 = vpop.f32.mrb[0].mxu0
        %v2589 = vadd.f32 %v2358, %v2588
        %v2590 = vpop.f32.mrb[0].mxu0
        %v2591 = vadd.f32 %v2358, %v2590
        %v2592 = vpop.f32.mrb[0].mxu0
        %v2593 = vadd.f32 %v2363, %v2592
        %v2594 = vpop.f32.mrb[0].mxu0
        %v2595 = vadd.f32 %v2363, %v2594
        %2596 = vmatprep.mubr.bf16.mxu0 %v2503
        %2597 = vmatmul.mubr.bf16.gmra.mrb[0].mxu0 %v2469
        %v2598 = vpop.f32.mrb[0].mxu0
        %v2599 = vadd.f32 %v2368, %v2598
        %v2600 = vpop.f32.mrb[0].mxu0
        %v2601 = vadd.f32 %v2368, %v2600
        %v2602 = vpop.f32.mrb[0].mxu0
        %v2603 = vadd.f32 %v2373, %v2602
        %v2604 = vpop.f32.mrb[0].mxu0
        %v2605 = vadd.f32 %v2373, %v2604
        %2606 = vmatprep.mubr.bf16.mxu0 %v2506
        %2607 = vmatmul.mubr.bf16.gmra.mrb[0].mxu0 %v2471
        %v2608 = vpop.f32.mrb[0].mxu0
        %v2609 = vadd.f32 %v2378, %v2608
        %v2610 = vpop.f32.mrb[0].mxu0
        %v2611 = vadd.f32 %v2378, %v2610
        %v2612 = vpop.f32.mrb[0].mxu0
        %v2613 = vadd.f32 %v2383, %v2612
        %v2614 = vpop.f32.mrb[0].mxu0
        %v2615 = vadd.f32 %v2383, %v2614
        %2616 = vmatprep.mubr.bf16.mxu0 %v2509
        %2617 = vmatmul.mubr.bf16.gmra.mrb[0].mxu0 %v2473
        %v2618 = vpop.f32.mrb[0].mxu0
        %v2619 = vadd.f32 %v2388, %v2618
        %v2620 = vpop.f32.mrb[0].mxu0
        %v2621 = vadd.f32 %v2388, %v2620
        %v2622 = vpop.f32.mrb[0].mxu0
        %v2623 = vadd.f32 %v2393, %v2622
        %v2624 = vpop.f32.mrb[0].mxu0
        %v2625 = vadd.f32 %v2393, %v2624
        %2626 = vmatprep.mubr.bf16.mxu0 %v2512
        %2627 = vmatmul.mubr.bf16.gmra.mrb[0].mxu0 %v2475
        %v2628 = vpop.f32.mrb[0].mxu0
        %v2629 = vadd.f32 %v2398, %v2628
        %v2630 = vpop.f32.mrb[0].mxu0
        %v2631 = vadd.f32 %v2398, %v2630
        %v2632 = vpop.f32.mrb[0].mxu0
        %v2633 = vadd.f32 %v2403, %v2632
        %v2634 = vpop.f32.mrb[0].mxu0
        %v2635 = vadd.f32 %v2403, %v2634
        %2636 = vdwg.mxu0
        %v2637 = vmul.f32 %v2549, 0.5
        %v2638 = vmul.f32 %v2551, 0.5
        %v2639 = vmul.f32 %v2553, 0.5
        %v2640 = vmul.f32 %v2555, 0.5
        %v2641 = vmul.f32 %v2559, 0.5
        %v2642 = vmul.f32 %v2561, 0.5
        %v2643 = vmul.f32 %v2563, 0.5
        %v2644 = vmul.f32 %v2565, 0.5
        %v2645 = vmul.f32 %v2569, 0.5
        %v2646 = vmul.f32 %v2571, 0.5
        %v2647 = vmul.f32 %v2573, 0.5
        %v2648 = vmul.f32 %v2575, 0.5
        %v2649 = vmul.f32 %v2579, 0.5
        %v2650 = vmul.f32 %v2581, 0.5
        %v2651 = vmul.f32 %v2583, 0.5
        %v2652 = vmul.f32 %v2585, 0.5
        %v2653 = vmul.f32 %v2589, 0.5
        %v2654 = vmul.f32 %v2591, 0.5
        %v2655 = vmul.f32 %v2593, 0.5
        %v2656 = vmul.f32 %v2595, 0.5
        %v2657 = vmul.f32 %v2599, 0.5
        %v2658 = vmul.f32 %v2601, 0.5
        %v2659 = vmul.f32 %v2603, 0.5
        %v2660 = vmul.f32 %v2605, 0.5
        %v2661 = vmul.f32 %v2609, 0.5
        %v2662 = vmul.f32 %v2611, 0.5
        %v2663 = vmul.f32 %v2613, 0.5
        %v2664 = vmul.f32 %v2615, 0.5
        %v2665 = vmul.f32 %v2619, 0.5
        %v2666 = vmul.f32 %v2621, 0.5
        %v2667 = vmul.f32 %v2623, 0.5
        %v2668 = vmul.f32 %v2625, 0.5
        %v2669 = vmul.f32 %v2629, 0.5
        %v2670 = vmul.f32 %v2631, 0.5
        %v2671 = vmul.f32 %v2633, 0.5
        %v2672 = vmul.f32 %v2635, 0.5
        %v2673 = vtanh.pop %v2637
        %v2674 = vtanh.pop %v2638
        %v2675 = vtanh.pop %v2639
        %v2676 = vtanh.pop %v2640
        %v2677 = vtanh.pop %v2641
        %v2678 = vtanh.pop %v2642
        %v2679 = vtanh.pop %v2643
        %v2680 = vtanh.pop %v2644
        %v2681 = vtanh.pop %v2645
        %v2682 = vtanh.pop %v2646
        %v2683 = vtanh.pop %v2647
        %v2684 = vtanh.pop %v2648
        %v2685 = vtanh.pop %v2649
        %v2686 = vtanh.pop %v2650
        %v2687 = vtanh.pop %v2651
        %v2688 = vtanh.pop %v2652
        %v2689 = vtanh.pop %v2653
        %v2690 = vtanh.pop %v2654
        %v2691 = vtanh.pop %v2655
        %v2692 = vtanh.pop %v2656
        %v2693 = vtanh.pop %v2657
        %v2694 = vtanh.pop %v2658
        %v2695 = vtanh.pop %v2659
        %v2696 = vtanh.pop %v2660
        %v2697 = vtanh.pop %v2661
        %v2698 = vtanh.pop %v2662
        %v2699 = vtanh.pop %v2663
        %v2700 = vtanh.pop %v2664
        %v2701 = vtanh.pop %v2665
        %v2702 = vtanh.pop %v2666
        %v2703 = vtanh.pop %v2667
        %v2704 = vtanh.pop %v2668
        %v2705 = vtanh.pop %v2669
        %v2706 = vtanh.pop %v2670
        %v2707 = vtanh.pop %v2671
        %v2708 = vtanh.pop %v2672
        %v2709 = vmul.f32 %v2673, 0.5
        %v2710 = vmul.f32 %v2674, 0.5
        %v2711 = vmul.f32 %v2675, 0.5
        %v2712 = vmul.f32 %v2676, 0.5
        %v2713 = vmul.f32 %v2677, 0.5
        %v2714 = vmul.f32 %v2678, 0.5
        %v2715 = vmul.f32 %v2679, 0.5
        %v2716 = vmul.f32 %v2680, 0.5
        %v2717 = vmul.f32 %v2681, 0.5
        %v2718 = vmul.f32 %v2682, 0.5
        %v2719 = vmul.f32 %v2683, 0.5
        %v2720 = vmul.f32 %v2684, 0.5
        %v2721 = vmul.f32 %v2685, 0.5
        %v2722 = vmul.f32 %v2686, 0.5
        %v2723 = vmul.f32 %v2687, 0.5
        %v2724 = vmul.f32 %v2688, 0.5
        %v2725 = vmul.f32 %v2689, 0.5
        %v2726 = vmul.f32 %v2690, 0.5
        %v2727 = vmul.f32 %v2691, 0.5
        %v2728 = vmul.f32 %v2692, 0.5
        %v2729 = vmul.f32 %v2693, 0.5
        %v2730 = vmul.f32 %v2694, 0.5
        %v2731 = vmul.f32 %v2695, 0.5
        %v2732 = vmul.f32 %v2696, 0.5
        %v2733 = vmul.f32 %v2697, 0.5
        %v2734 = vmul.f32 %v2698, 0.5
        %v2735 = vmul.f32 %v2699, 0.5
        %v2736 = vmul.f32 %v2700, 0.5
        %v2737 = vmul.f32 %v2701, 0.5
        %v2738 = vmul.f32 %v2702, 0.5
        %v2739 = vmul.f32 %v2703, 0.5
        %v2740 = vmul.f32 %v2704, 0.5
        %v2741 = vmul.f32 %v2705, 0.5
        %v2742 = vmul.f32 %v2706, 0.5
        %v2743 = vmul.f32 %v2707, 0.5
        %v2744 = vmul.f32 %v2708, 0.5
        %v2745 = vadd.f32 %v2709, 0.5
        %v2746 = vadd.f32 %v2710, 0.5
        %v2747 = vadd.f32 %v2711, 0.5
        %v2748 = vadd.f32 %v2712, 0.5
        %v2749 = vadd.f32 %v2713, 0.5
        %v2750 = vadd.f32 %v2714, 0.5
        %v2751 = vadd.f32 %v2715, 0.5
        %v2752 = vadd.f32 %v2716, 0.5
        %v2753 = vadd.f32 %v2717, 0.5
        %v2754 = vadd.f32 %v2718, 0.5
        %v2755 = vadd.f32 %v2719, 0.5
        %v2756 = vadd.f32 %v2720, 0.5
        %v2757 = vadd.f32 %v2721, 0.5
        %v2758 = vadd.f32 %v2722, 0.5
        %v2759 = vadd.f32 %v2723, 0.5
        %v2760 = vadd.f32 %v2724, 0.5
        %v2761 = vadd.f32 %v2725, 0.5
        %v2762 = vadd.f32 %v2726, 0.5
        %v2763 = vadd.f32 %v2727, 0.5
        %v2764 = vadd.f32 %v2728, 0.5
        %v2765 = vadd.f32 %v2729, 0.5
        %v2766 = vadd.f32 %v2730, 0.5
        %v2767 = vadd.f32 %v2731, 0.5
        %v2768 = vadd.f32 %v2732, 0.5
        %v2769 = vadd.f32 %v2733, 0.5
        %v2770 = vadd.f32 %v2734, 0.5
        %v2771 = vadd.f32 %v2735, 0.5
        %v2772 = vadd.f32 %v2736, 0.5
        %v2773 = vadd.f32 %v2737, 0.5
        %v2774 = vadd.f32 %v2738, 0.5
        %v2775 = vadd.f32 %v2739, 0.5
        %v2776 = vadd.f32 %v2740, 0.5
        %v2777 = vadd.f32 %v2741, 0.5
        %v2778 = vadd.f32 %v2742, 0.5
        %v2779 = vadd.f32 %v2743, 0.5
        %v2780 = vadd.f32 %v2744, 0.5
        %v2781 = vmul.f32 %v2745, %v2225
        %v2782 = vmul.f32 %v2746, %v2226
        %v2783 = vmul.f32 %v2747, %v2227
        %v2784 = vmul.f32 %v2748, %v2228
        %v2785 = vmul.f32 %v2749, %v2229
        %v2786 = vmul.f32 %v2750, %v2230
        %v2787 = vmul.f32 %v2751, %v2231
        %v2788 = vmul.f32 %v2752, %v2232
        %v2789 = vmul.f32 %v2753, %v2233
        %v2790 = vmul.f32 %v2754, %v2234
        %v2791 = vmul.f32 %v2755, %v2235
        %v2792 = vmul.f32 %v2756, %v2236
        %v2793 = vmul.f32 %v2757, %v2237
        %v2794 = vmul.f32 %v2758, %v2238
        %v2795 = vmul.f32 %v2759, %v2239
        %v2796 = vmul.f32 %v2760, %v2240
        %v2797 = vmul.f32 %v2761, %v2241
        %v2798 = vmul.f32 %v2762, %v2242
        %v2799 = vmul.f32 %v2763, %v2243
        %v2800 = vmul.f32 %v2764, %v2244
        %v2801 = vmul.f32 %v2765, %v2245
        %v2802 = vmul.f32 %v2766, %v2246
        %v2803 = vmul.f32 %v2767, %v2247
        %v2804 = vmul.f32 %v2768, %v2248
        %v2805 = vmul.f32 %v2769, %v2249
        %v2806 = vmul.f32 %v2770, %v2250
        %v2807 = vmul.f32 %v2771, %v2251
        %v2808 = vmul.f32 %v2772, %v2252
        %v2809 = vmul.f32 %v2773, %v2253
        %v2810 = vmul.f32 %v2774, %v2254
        %v2811 = vmul.f32 %v2775, %v2255
        %v2812 = vmul.f32 %v2776, %v2256
        %v2813 = vmul.f32 %v2777, %v2257
        %v2814 = vmul.f32 %v2778, %v2258
        %v2815 = vmul.f32 %v2779, %v2259
        %v2816 = vmul.f32 %v2780, %v2260
        %v2817 = vld [vmem:[%s4] sm:$0xff]
        %v2818 = vld [vmem:[%s4 + $0x8] sm:$0xff]
        %v2819 = vpack.c.bf16 %v2783, %v2781
        %v2820 = vpack.c.bf16 %v2784, %v2782
        %v2821 = vpack.c.bf16 %v2787, %v2785
        %v2822 = vpack.c.bf16 %v2788, %v2786
        %v2823 = vpack.c.bf16 %v2791, %v2789
        %v2824 = vpack.c.bf16 %v2792, %v2790
        %v2825 = vpack.c.bf16 %v2795, %v2793
        %v2826 = vpack.c.bf16 %v2796, %v2794
        %v2827 = vpack.c.bf16 %v2799, %v2797
        %v2828 = vpack.c.bf16 %v2800, %v2798
        %v2829 = vpack.c.bf16 %v2803, %v2801
        %v2830 = vpack.c.bf16 %v2804, %v2802
        %v2831 = vpack.c.bf16 %v2807, %v2805
        %v2832 = vpack.c.bf16 %v2808, %v2806
        %v2833 = vpack.c.bf16 %v2811, %v2809
        %v2834 = vpack.c.bf16 %v2812, %v2810
        %v2835 = vpack.c.bf16 %v2815, %v2813
        %v2836 = vpack.c.bf16 %v2816, %v2814
        %v2837 = vld [vmem:[%s6] sm:$0xff]
        %v2838 = vld [vmem:[%s6 + $0x8] sm:$0xff]
        %2840 = vset.pattern.permute.xlu0 0
        %2841 = vperm.xlu0 %2840, %v2837
        %v2842 = vpop.permute.xlu0 %2841
        %2845 = vset.pattern.permute.xlu0 0
        %2846 = vperm.xlu0 %2845, %v2838
        %v2847 = vpop.permute.xlu0 %2846
        %v2851 = vunpack.c.l.b16 %v2817
        %v2852 = vunpack.c.h.b16 %v2817
        %v2853 = vunpack.c.l.b16 %v2818
        %v2854 = vunpack.c.h.b16 %v2818
        %v2855 = vpack.c.b16 %v2853, %v2851
        %v2856 = vpack.c.b16 %v2854, %v2852
        %v2859 = vsel %vm2486, %v2856, 0
        %2861 = vmatprep.subr.bf16.mxu0 %v2820
        %2862 = vmatpush1.bf16.msra.mxu0 %v2819
        %2863 = vmatprep.subr.bf16.mxu0 %v2822
        %2864 = vmatpush1.bf16.msra.mxu0 %v2821
        %2865 = vmatprep.subr.bf16.mxu0 %v2824
        %2866 = vmatpush1.bf16.msra.mxu0 %v2823
        %2867 = vmatprep.subr.bf16.mxu0 %v2826
        %2868 = vmatpush1.bf16.msra.mxu0 %v2825
        %2869 = vmatprep.subr.bf16.mxu0 %v2828
        %2870 = vmatpush1.bf16.msra.mxu0 %v2827
        %2871 = vmatprep.subr.bf16.mxu0 %v2830
        %2872 = vmatpush1.bf16.msra.mxu0 %v2829
        %2873 = vmatprep.subr.bf16.mxu0 %v2832
        %2874 = vmatpush1.bf16.msra.mxu0 %v2831
        %2875 = vmatprep.subr.bf16.mxu0 %v2834
        %2876 = vmatpush1.bf16.msra.mxu0 %v2833
        %2877 = vmatprep.subr.bf16.mxu0 %v2836
        %2878 = vmatpush1.bf16.msra.mxu0 %v2835
        %2879 = vmatprep.subr.bf16.mxu0 0
        %2880 = vmatpush1.bf16.msra.mxu0 0
        %2881 = vmatprep.subr.bf16.mxu0 0
        %2882 = vmatpush1.bf16.msra.mxu0 0
        %2883 = vmatprep.subr.bf16.mxu0 0
        %2884 = vmatpush1.bf16.msra.mxu0 0
        %2885 = vmatprep.subr.bf16.mxu0 0
        %2886 = vmatpush1.bf16.msra.mxu0 0
        %2887 = vmatprep.subr.bf16.mxu0 0
        %2888 = vmatpush1.bf16.msra.mxu0 0
        %2889 = vmatprep.subr.bf16.mxu0 0
        %2890 = vmatpush1.bf16.msra.mxu0 0
        %2891 = vmatprep.subr.bf16.mxu0 0
        %2892 = vmatpush1.bf16.msra.mxu0 0
        %2893 = vmatprep.mubr.bf16.mxu0 %v2859
        %2894 = vmatmul.mubr.bf16.gmra.mrb[0].mxu0 %v2855
        %v2895 = vpop.f32.mrb[0].mxu0
        %v2896 = vadd.f32 %v2842, %v2895
        %v2897 = vpop.f32.mrb[0].mxu0
        %v2898 = vadd.f32 %v2842, %v2897
        %v2899 = vpop.f32.mrb[0].mxu0
        %v2900 = vadd.f32 %v2847, %v2899
        %v2901 = vpop.f32.mrb[0].mxu0
        %v2902 = vadd.f32 %v2847, %v2901
        %2903 = vdwg.mxu0
        %v2904 = vmax.f32 %v2896, 0.0
        %v2905 = vmax.f32 %v2898, 0.0
        %v2906 = vmax.f32 %v2900, 0.0
        %v2907 = vmax.f32 %v2902, 0.0
        %v2908 = vld [vmem:[%s345] sm:$0x3]
        %v2909 = vsel %vm425, %v351, 0.0
        %v2910 = vadd.f32 %v349, %v2909
        %v2911 = vrot.slane %v2910, 4
        %v2912 = vadd.f32 %v2910, %v2911
        %v2913 = vrot.slane %v2912, 2
        %v2914 = vadd.f32 %v2912, %v2913
        %v2915 = vrot.slane %v2914, 1
        %v2916 = vadd.f32 %v2914, %v2915
        %v2917 = vsel %vm425, %v352, 0.0
        %v2918 = vadd.f32 %v350, %v2917
        %v2919 = vrot.slane %v2918, 4
        %v2920 = vadd.f32 %v2918, %v2919
        %v2921 = vrot.slane %v2920, 2
        %v2922 = vadd.f32 %v2920, %v2921
        %v2923 = vrot.slane %v2922, 1
        %v2924 = vadd.f32 %v2922, %v2923
        %v2925 = vsel %vm425, %v355, 0.0
        %v2926 = vadd.f32 %v353, %v2925
        %v2927 = vrot.slane %v2926, 4
        %v2928 = vadd.f32 %v2926, %v2927
        %v2929 = vrot.slane %v2928, 2
        %v2930 = vadd.f32 %v2928, %v2929
        %v2931 = vrot.slane %v2930, 1
        %v2932 = vadd.f32 %v2930, %v2931
        %v2933 = vsel %vm425, %v356, 0.0
        %v2934 = vadd.f32 %v354, %v2933
        %v2935 = vrot.slane %v2934, 4
        %v2936 = vadd.f32 %v2934, %v2935
        %v2937 = vrot.slane %v2936, 2
        %v2938 = vadd.f32 %v2936, %v2937
        %v2939 = vrot.slane %v2938, 1
        %v2940 = vadd.f32 %v2938, %v2939
        %v2941 = vsel %vm425, %v359, 0.0
        %v2942 = vadd.f32 %v357, %v2941
        %v2943 = vrot.slane %v2942, 4
        %v2944 = vadd.f32 %v2942, %v2943
        %v2945 = vrot.slane %v2944, 2
        %v2946 = vadd.f32 %v2944, %v2945
        %v2947 = vrot.slane %v2946, 1
        %v2948 = vadd.f32 %v2946, %v2947
        %v2949 = vsel %vm425, %v360, 0.0
        %v2950 = vadd.f32 %v358, %v2949
        %v2951 = vrot.slane %v2950, 4
        %v2952 = vadd.f32 %v2950, %v2951
        %v2953 = vrot.slane %v2952, 2
        %v2954 = vadd.f32 %v2952, %v2953
        %v2955 = vrot.slane %v2954, 1
        %v2956 = vadd.f32 %v2954, %v2955
        %v2957 = vsel %vm425, %v363, 0.0
        %v2958 = vadd.f32 %v361, %v2957
        %v2959 = vrot.slane %v2958, 4
        %v2960 = vadd.f32 %v2958, %v2959
        %v2961 = vrot.slane %v2960, 2
        %v2962 = vadd.f32 %v2960, %v2961
        %v2963 = vrot.slane %v2962, 1
        %v2964 = vadd.f32 %v2962, %v2963
        %v2965 = vsel %vm425, %v364, 0.0
        %v2966 = vadd.f32 %v362, %v2965
        %v2967 = vrot.slane %v2966, 4
        %v2968 = vadd.f32 %v2966, %v2967
        %v2969 = vrot.slane %v2968, 2
        %v2970 = vadd.f32 %v2968, %v2969
        %v2971 = vrot.slane %v2970, 1
        %v2972 = vadd.f32 %v2970, %v2971
        %v2973 = vrcp.pop %v2908
        %v2975 = vlaneseq
        %v2976 = vshrl.u32 %v2975, 7
        %v2977 = vsub.s32 0, %v2976
        %v2978 = vrot.slane %v2973, %v2977
        %v2979 = vlaneseq
        %v2980 = vshrl.u32 %v2979, 7
        %v2981 = vsub.s32 1, %v2980
        %v2982 = vrot.slane %v2973, %v2981
        %v2985 = vmul.f32 %v2916, %v2978
        %v2986 = vmul.f32 %v2924, %v2982
        %v2987 = vmul.f32 %v2932, %v2978
        %v2988 = vmul.f32 %v2940, %v2982
        %v2989 = vmul.f32 %v2948, %v2978
        %v2990 = vmul.f32 %v2956, %v2982
        %v2991 = vmul.f32 %v2964, %v2978
        %v2992 = vmul.f32 %v2972, %v2982
        %2993 = vst [vmem:[%s340] sm:$0xff] %v2904
        %2994 = vst [vmem:[%s340 + $0x8] sm:$0xff] %v2905
        %2995 = vst [vmem:[%s340 + $0x10] sm:$0xff] %v2906
        %2996 = vst [vmem:[%s340 + $0x18] sm:$0xff] %v2907
        %v3005 = vrot.slane %v2987, 7
        %v3006 = vsel %vm665, %v3005, %v2985
        %v3007 = vrot.slane %v2989, 6
        %v3008 = vsel %vm668, %v3007, %v3006
        %v3009 = vrot.slane %v2991, 5
        %v3010 = vsel %vm671, %v3009, %v3008
        %v3011 = vrot.slane %v2988, 7
        %v3012 = vsel %vm665, %v3011, %v2986
        %v3013 = vrot.slane %v2990, 6
        %v3014 = vsel %vm668, %v3013, %v3012
        %v3015 = vrot.slane %v2992, 5
        %v3016 = vsel %vm671, %v3015, %v3014
        %3019 = vst [vmem:[%s340 + $0x20] sm:$0xf] %v3010
        %3020 = vst [vmem:[%s340 + $0x28] sm:$0xf] %v3016
        %s3021 = sand.u32 %s186, 1
        %s3022 = scalar_lea.sflag [#allocation5], %s3021
        %s3023 = sand.u32 %s186, 1
        %s3024 = smul.addr %s3023, 48
        %s3025 = scalar_lea.vmem [#allocation4], %s3024
        // Predicated region
        $region72: #{tpu_custom_call.1} parent=66 // pred_check
          %p3026 = pneg %p196
        $region73: #{tpu_custom_call.1} parent=66 // pred_check_branch
          %3028 = sbr.rel (%p3026) target = $region75
        $region74: #{tpu_custom_call.1} parent=66 // pred_region
          %s3029 = smul.u32 2, %s21
          %s3031 = ssub.s32 768, 768
          %3032 = vsyncadd %s3022, %s3031
          %s3033 = smul.addr %s3029, 128
          %s3034 = scalar_lea.hbm %s7, %s3033
          %s3035 = sshll.u32 %s3025, 4
          %s3036 = int_to_ptr.vmem [resolvable:$true] %s3035
          %3041 = dma.vmem_to_hbm [thread:$0]  %s3036, 768, %s3034, %s3022, 256, 1024, 16
        $region75: #{tpu_custom_call.1} parent=66 // pred_fallthru
          _
      $region67: #{tpu_custom_call.1} parent=5 // pred_fallthru
        _
      %p3042 = scmp.le.s32.totalorder 2, %s16
      // Predicated region
      $region76: #{tpu_custom_call.1} parent=5 // pred_check
        %p3043 = pneg %p3042
      $region77: #{tpu_custom_call.1} parent=5 // pred_check_branch
        %3045 = sbr.rel (%p3043) target = $region79
      $region78: #{tpu_custom_call.1} parent=5 // pred_region
        %s3046 = ssub.s32 %s16, 2
        // Predicated region
        $region80: #{tpu_custom_call.1} parent=78 // pred_check
          %p3047 = pneg %p202
        $region81: #{tpu_custom_call.1} parent=78 // pred_check_branch
          %3049 = sbr.rel (%p3047) target = $region83
        $region82: #{tpu_custom_call.1} parent=78 // pred_region
          %s3050 = sand.u32 %s187, 1
          %s3051 = scalar_lea.sflag [#allocation5], %s3050
          %s3052 = sand.u32 %s187, 1
          %s3053 = smul.addr %s3052, 48
          %s3054 = scalar_lea.vmem [#allocation4], %s3053
          %3055 = dma.done %s3051, 768
        $region83: #{tpu_custom_call.1} parent=78 // pred_fallthru
          _
      $region79: #{tpu_custom_call.1} parent=5 // pred_fallthru
        _
    $region6: #{tpu_custom_call.1} parent=1 // loop_footer
      %s20 = sadd.s32 1, %s16
    $region7: #{tpu_custom_call.1} parent=1 // loop_footer_branch
      %15 = sbr.rel target = $region3
    $region8: #{tpu_custom_call.1} parent=1 // loop_exit
      _
    %3056 = vsyncpa [#allocation5], 1
    %s3057 = scalar_lea.sflag [#allocation5], 1
    %3058 = vsyncpa %s3057, 1

</llo_original>
